<compile_context>
chip_gen: v7x
topology: tpu7x:2x2x1
jax: 0.10.0
libtpu: 0.0.40
codegen_flags: <defaults>
</compile_context>

<pallas_src>
import functools
import math

import jax
import jax.numpy as jnp
import numpy as np
from jax.experimental import pallas as pl
from jax.experimental.pallas import tpu as pltpu


# ----------------------------------------------------------------------------------
# Kernel
# ----------------------------------------------------------------------------------
def residual_block_kernel(x_ref, m1_ref, bb1_ref, m2_ref, bb2_ref,
                          sumc_ref, bcast_ref, alpha_ref, o_ref, *, H, block_g):
    """One grid step: block_g row-groups of H rows; each row packs P images along lanes.

    x_ref    : (R, PL)     bf16  activations, R = block_g*H rows, PL = P*W*C lanes
    m*_ref   : (3, PL, PL) bf16  per-dy conv tap matrices (dx taps + column reflection
                                 folded in, block-diagonal over the P lane-packed images)
    bb*_ref  : (1, PL)     f32   conv bias tiled across the (P, W) column groups
    sumc_ref : (PL, PC)    f32   lane -> (image, channel) column-sum selector
    bcast_ref: (PC, PL)    f32   (image, channel) -> lane broadcast, scaled by 1/(H*W)
    alpha_ref: (1,)        SMEM  shared PReLU slope
    o_ref    : (R, PL)     f32
    """
    R = block_g * H
    PL = o_ref.shape[1]
    PC = sumc_ref.shape[1]
    alpha = alpha_ref[0]

    sumc = sumc_ref[...]
    bcast = bcast_ref[...]

    # Row-within-image index (computed once; cheap VPU iota/compare).
    row = jax.lax.broadcasted_iota(jnp.int32, (R, PL), 0) % H
    top = row == 0
    bot = row == H - 1

    def mm_bf16(a, b):                       # MXU: bf16 operands, f32 accumulation
        return jnp.dot(a, b, preferred_element_type=jnp.float32)

    def mm_f32(a, b):                        # tiny statistics matmuls stay f32
        return jnp.dot(a, b, preferred_element_type=jnp.float32,
                       precision=jax.lax.Precision.HIGHEST)

    def conv3x3(y, m_ref, bb_ref):
        # dy = -1 / +1 rows with per-image reflection: two sublane rotations (pure data
        # movement, no MXU) + masked fix of the image top/bottom rows.
        up_roll = jnp.concatenate([y[R - 1:R], y[:R - 1]], axis=0)   # y[i-1 (mod R)]
        dn_roll = jnp.concatenate([y[1:], y[:1]], axis=0)            # y[i+1 (mod R)]
        up = jnp.where(top, dn_roll, up_roll)    # row -1 -> row  1  (reflect)
        dn = jnp.where(bot, up_roll, dn_roll)    # row  H -> row H-2 (reflect)
        # Three (R, PL) @ (PL, PL) matmuls (one per dy) summed in f32 — no lane-axis
        # concat / 3x patch tensor.
        acc = mm_bf16(up, m_ref[0])
        acc = acc + mm_bf16(y, m_ref[1])
        acc = acc + mm_bf16(dn, m_ref[2])
        return acc + bb_ref[...]

    def stat(t):
        # Per-(image, channel) sum over H*W, broadcast back to (R, PL), all in f32:
        # lanes -> channels via a skinny (PL, PC) matmul, rows via a sublane sum per
        # image, channels -> lanes via a (PC, PL) matmul pre-scaled by 1/(H*W).
        tc = mm_f32(t, sumc)                                   # (R, PC)
        parts = []
        for g in range(block_g):                               # static, tiny loop
            s = jnp.sum(tc[g * H:(g + 1) * H], axis=0, keepdims=True)
            parts.append(jnp.broadcast_to(s, (H, PC)))
        tg = parts[0] if block_g == 1 else jnp.concatenate(parts, axis=0)
        return mm_f32(tg, bcast)                               # (R, PL)

    def instance_norm(y):
        mean = stat(y)
        cen = y - mean
        var = stat(cen * cen)                 # two-pass variance in f32
        return cen * jax.lax.rsqrt(var + 1e-5)

    def prelu(y):
        return jnp.where(y >= 0.0, y, alpha * y)

    x = x_ref[...]                                             # (R, PL) bf16
    h = prelu(instance_norm(conv3x3(x, m1_ref, bb1_ref)))
    h = instance_norm(conv3x3(h.astype(jnp.bfloat16), m2_ref, bb2_ref))
    o_ref[...] = prelu(h + x.astype(jnp.float32))


# ----------------------------------------------------------------------------------
# Wrapper-side constant construction (vectorized numpy, shape-cached where possible)
# ----------------------------------------------------------------------------------
def _conv_tap_matrices(w_oihw, W, C, P):
    """OIHW (Cout,Cin,3,3) conv weights -> (3, P*W*C, P*W*C) per-dy tap matrices.

    For each dy (ky), the (L, L) block maps input lane (w_in, c_in) to output lane
    (w_out, c_out), folding the dx taps and the reflect-pad column handling into a
    banded matrix; the P lane-packed images get one block-diagonal copy each.
    """
    w = np.transpose(np.asarray(w_oihw, np.float32), (2, 3, 1, 0))  # (ky, kx, Cin, Cout)
    m = np.zeros((3, W, C, W, C), np.float32)                       # (ky, w_in, c_in, w_out, c_out)
    jout = np.arange(W)
    for ky in range(3):
        for kx in range(3):
            jin = jout + kx - 1
            jin = np.where(jin < 0, 1, np.where(jin >= W, W - 2, jin))   # reflect cols
            m[ky, jin, :, jout, :] += w[ky, kx]
    m = m.reshape(3, W * C, W * C)
    if P > 1:
        m = np.einsum("pq,kab->kpaqb", np.eye(P, dtype=np.float32), m)
        m = m.reshape(3, P * W * C, P * W * C)
    return m


@functools.lru_cache(maxsize=None)
def _channel_selectors(H, W, C, P):
    """(PL, PC) lane->channel column-sum matrix and (PC, PL) broadcast matrix (scaled)."""
    L = W * C
    lane = np.arange(P * L)
    chan = (lane // L) * C + (lane % C)
    sumc = np.zeros((P * L, P * C), np.float32)
    sumc[lane, chan] = 1.0
    bcast = sumc.T * np.float32(1.0 / (H * W))
    return sumc, bcast


# ----------------------------------------------------------------------------------
# Public entry point (PyTorch NCHW / OIHW convention)
# ----------------------------------------------------------------------------------
def residual_block(x_nchw, w1_oihw, b1, w2_oihw, b2, alpha, *,
                   lane_pack=None, block_g=None):
    """x: (N,C,H,W) f32; w*: (C,C,3,3) OIHW; b*: (C,); alpha: (1,) shared PReLU slope."""
    N, C, H, W = x_nchw.shape
    assert H >= 2 and W >= 2
    L = W * C

    # Pack P images along lanes so the kernel lane width P*W*C is >= 128 when possible.
    if lane_pack is None:
        P = N
        for cand in range(1, N + 1):
            if N % cand == 0:
                P = cand
                if cand * L >= 128:
                    break
    else:
        P = lane_pack
    assert N % P == 0
    G = N // P                       # number of lane-packed row groups
    PL, PC = P * L, P * C

    # Row-groups per grid step: aim for >=256 matmul rows (fills the v6e/v7x MXU) while
    # keeping the grid as long as divisibility allows (pipelining / megacore sharding).
    if block_g is None:
        block_g = math.gcd(G, max(1, 256 // H))
    assert G % block_g == 0
    R = block_g * H

    # Layout plumbing (XLA side): NCHW -> (G*H, P*W*C) lane-dense rows, bf16 for the MXU.
    x_rows = (jnp.transpose(x_nchw, (0, 2, 3, 1))          # N,H,W,C
              .reshape(G, P, H, W, C)
              .transpose(0, 2, 1, 3, 4)                    # G,H,P,W,C
              .reshape(G * H, PL)
              .astype(jnp.bfloat16))

    m1 = jnp.asarray(_conv_tap_matrices(w1_oihw, W, C, P), jnp.bfloat16)
    m2 = jnp.asarray(_conv_tap_matrices(w2_oihw, W, C, P), jnp.bfloat16)
    bb1 = jnp.asarray(np.tile(np.asarray(b1, np.float32), P * W).reshape(1, PL))
    bb2 = jnp.asarray(np.tile(np.asarray(b2, np.float32), P * W).reshape(1, PL))
    sumc_np, bcast_np = _channel_selectors(H, W, C, P)
    sumc, bcast = jnp.asarray(sumc_np), jnp.asarray(bcast_np)
    alpha = jnp.asarray(alpha, jnp.float32).reshape(1)
    # TODO(synk): per-channel PReLU (num_parameters=C) would need a (1, PL) lane-tiled
    # alpha instead of the SMEM scalar.

    kernel = functools.partial(residual_block_kernel, H=H, block_g=block_g)
    const2 = lambda g: (0, 0)
    const3 = lambda g: (0, 0, 0)

    # TODO(synk): for production C >= 128, switch to a (rows, C)-lane layout with nine
    # dense (C,C) tap matmuls + lane rolls (removes the ~W/3-sparse tap matrices).
    # TODO(synk): add a second grid axis over H row-chunks (1-row halo) for large
    # images / N==1, and pipeline_mode=pl.Buffered(1) on the constant specs /
    # pl.Buffered(3) on x once the grid is long (v7x 64 MiB VMEM budget).
    grid_spec = pltpu.PrefetchScalarGridSpec(
        num_scalar_prefetch=0,
        grid=(G // block_g,),
        in_specs=[
            pl.BlockSpec((R, PL), lambda g: (g, 0)),       # activations (bf16)
            pl.BlockSpec((3, PL, PL), const3),             # conv1 tap matrices (bf16)
            pl.BlockSpec((1, PL), const2),                 # conv1 bias (f32)
            pl.BlockSpec((3, PL, PL), const3),             # conv2 tap matrices (bf16)
            pl.BlockSpec((1, PL), const2),                 # conv2 bias (f32)
            pl.BlockSpec((PL, PC), const2),                # channel column-sum selector
            pl.BlockSpec((PC, PL), const2),                # channel broadcast (scaled)
            pl.BlockSpec(memory_space=pltpu.SMEM),         # PReLU slope
        ],
        out_specs=pl.BlockSpec((R, PL), lambda g: (g, 0)),
    )

    out_rows = pl.pallas_call(
        kernel,
        out_shape=jax.ShapeDtypeStruct((G * H, PL), jnp.float32),
        grid_spec=grid_spec,
        compiler_params=pltpu.CompilerParams(
            dimension_semantics=("parallel",),             # independent row groups
            vmem_limit_bytes=32 * 1024 * 1024,             # safe on v5e/v6e/v7x
        ),
    )(x_rows, m1, bb1, m2, bb2, sumc, bcast, alpha)

    out = (out_rows.reshape(G, H, P, W, C)
           .transpose(0, 2, 1, 3, 4)                       # G,P,H,W,C
           .reshape(N, H, W, C)
           .transpose(0, 3, 1, 2))
    return out


# ----------------------------------------------------------------------------------
# Pure-JAX reference (matches the PyTorch module semantics), NCHW in / NCHW out
# ----------------------------------------------------------------------------------
def residual_block_ref(x_nchw, w1_oihw, b1, w2_oihw, b2, alpha):
    x = jnp.transpose(x_nchw, (0, 2, 3, 1))
    w1 = jnp.transpose(w1_oihw, (2, 3, 1, 0))
    w2 = jnp.transpose(w2_oihw, (2, 3, 1, 0))

    def rpad(y):
        return jnp.pad(y, ((0, 0), (1, 1), (1, 1), (0, 0)), mode="reflect")

    def conv(y, w, b):
        out = jax.lax.conv_general_dilated(
            y, w, window_strides=(1, 1), padding="VALID",
            dimension_numbers=("NHWC", "HWIO", "NHWC"),
            precision=jax.lax.Precision.HIGHEST)
        return out + b.reshape(1, 1, 1, -1)

    def inorm(y):
        m = jnp.mean(y, axis=(1, 2), keepdims=True)
        v = jnp.mean((y - m) ** 2, axis=(1, 2), keepdims=True)
        return (y - m) * jax.lax.rsqrt(v + 1e-5)

    def prelu(y):
        return jnp.where(y >= 0, y, alpha[0] * y)

    out = prelu(inorm(conv(rpad(x), w1, b1)))
    out = inorm(conv(rpad(out), w2, b2))
    out = prelu(out + x)
    return jnp.transpose(out, (0, 3, 1, 2))


if __name__ == "__main__":
    # Small shapes consistent with the module (residual add requires Cin == Cout).
    N, C, H, W = 2, 4, 16, 16

    key = jax.random.PRNGKey(0)
    kx, kw1, kb1, kw2, kb2 = jax.random.split(key, 5)

    x_nchw = jax.random.normal(kx, (N, C, H, W), jnp.float32)
    w1_oihw = jax.random.normal(kw1, (C, C, 3, 3), jnp.float32) * 0.1
    b1 = jax.random.normal(kb1, (C,), jnp.float32) * 0.1
    w2_oihw = jax.random.normal(kw2, (C, C, 3, 3), jnp.float32) * 0.1
    b2 = jax.random.normal(kb2, (C,), jnp.float32) * 0.1
    alpha = jnp.array([0.25], jnp.float32)      # nn.PReLU() default shared parameter

    out = residual_block(x_nchw, w1_oihw, b1, w2_oihw, b2, alpha)
    out = jax.block_until_ready(out)

    ref = residual_block_ref(x_nchw, w1_oihw, b1, w2_oihw, b2, alpha)
    ref = jax.block_until_ready(ref)

    # Tolerance reflects bf16 MXU operands (f32 accumulation) in the kernel vs. the
    # f32/HIGHEST reference; a real indexing/normalization bug would be O(1) off.
    if not np.allclose(np.asarray(out), np.asarray(ref), rtol=5e-2, atol=5e-2):
        err = np.max(np.abs(np.asarray(out) - np.asarray(ref)))
        raise SystemExit(f"mismatch vs reference (max abs err {err:.4f})")

    assert out.shape == (N, C, H, W)
    print("KERNEL_OK")
</pallas_src>

<mosaic_0001>
module attributes {stable_mosaic.version = 11 : i64} {
  func.func @residual_block_kernel(%arg0: i32, %arg1: memref<16x128xbf16, #tpu.memory_space<vmem>>, %arg2: memref<3x128x128xbf16, #tpu.memory_space<vmem>>, %arg3: memref<1x128xf32, #tpu.memory_space<vmem>>, %arg4: memref<3x128x128xbf16, #tpu.memory_space<vmem>>, %arg5: memref<1x128xf32, #tpu.memory_space<vmem>>, %arg6: memref<128x8xf32, #tpu.memory_space<vmem>>, %arg7: memref<8x128xf32, #tpu.memory_space<vmem>>, %arg8: memref<1xf32, #tpu.memory_space<smem>>, %arg9: memref<16x128xf32, #tpu.memory_space<vmem>>) attributes {dimension_semantics = [#tpu.dimension_semantics<parallel>], iteration_bounds = array<i64: 1>, scalar_prefetch = 0 : i64, scratch_operands = 0 : i64, tpu.core_type = #tpu.core_type<tc>, window_params = [{transform_indices = @transform_0, window_bounds = array<i64: 16, 128>}, {pipeline_mode = #tpu.pipeline_mode<synchronous>, transform_indices = @transform_1, window_bounds = array<i64: 3, 128, 128>}, {pipeline_mode = #tpu.pipeline_mode<synchronous>, transform_indices = @transform_2, window_bounds = array<i64: 1, 128>}, {pipeline_mode = #tpu.pipeline_mode<synchronous>, transform_indices = @transform_3, window_bounds = array<i64: 3, 128, 128>}, {pipeline_mode = #tpu.pipeline_mode<synchronous>, transform_indices = @transform_4, window_bounds = array<i64: 1, 128>}, {pipeline_mode = #tpu.pipeline_mode<synchronous>, transform_indices = @transform_5, window_bounds = array<i64: 128, 8>}, {pipeline_mode = #tpu.pipeline_mode<synchronous>, transform_indices = @transform_6, window_bounds = array<i64: 8, 128>}, {transform_indices = @transform_7, window_bounds = array<i64: 1>}, {transform_indices = @transform_8, window_bounds = array<i64: 16, 128>}]} {
    %c0 = arith.constant 0 : index
    %0 = memref.load %arg8[%c0] : memref<1xf32, #tpu.memory_space<smem>>
    %c0_0 = arith.constant 0 : index
    %c0_1 = arith.constant 0 : index
    %1 = vector.load %arg6[%c0_0, %c0_1] : memref<128x8xf32, #tpu.memory_space<vmem>>, vector<128x8xf32>
    %c0_2 = arith.constant 0 : index
    %c0_3 = arith.constant 0 : index
    %2 = vector.load %arg7[%c0_2, %c0_3] : memref<8x128xf32, #tpu.memory_space<vmem>>, vector<8x128xf32>
    %3 = tpu.iota {dimensions = array<i32: 0>} : vector<16x128xi32>
    %c16_i32 = arith.constant 16 : i32
    %c0_i32 = arith.constant 0 : i32
    %4 = arith.cmpi eq, %c16_i32, %c0_i32 : i32
    %c1_i32 = arith.constant 1 : i32
    %5 = arith.select %4, %c1_i32, %c16_i32 : i32
    %6 = vector.broadcast %5 : i32 to vector<16x128xi32>
    %7 = arith.remsi %3, %6 : vector<16x128xi32>
    %c0_i32_4 = arith.constant 0 : i32
    %8 = vector.broadcast %c0_i32_4 : i32 to vector<16x128xi32>
    %9 = arith.cmpi ne, %7, %8 : vector<16x128xi32>
    %c0_i32_5 = arith.constant 0 : i32
    %10 = vector.broadcast %c0_i32_5 : i32 to vector<16x128xi32>
    %11 = arith.cmpi slt, %7, %10 : vector<16x128xi32>
    %c0_i32_6 = arith.constant 0 : i32
    %12 = arith.cmpi slt, %5, %c0_i32_6 : i32
    %13 = vector.broadcast %12 : i1 to vector<16x128xi1>
    %14 = vector.broadcast %13 : vector<16x128xi1> to vector<16x128xi1>
    %15 = arith.xori %11, %14 : vector<16x128xi1>
    %16 = arith.andi %15, %9 : vector<16x128xi1>
    %17 = vector.broadcast %5 : i32 to vector<16x128xi32>
    %18 = arith.addi %7, %17 : vector<16x128xi32>
    %19 = arith.select %16, %18, %7 : vector<16x128xi1>, vector<16x128xi32>
    %c0_i32_7 = arith.constant 0 : i32
    %20 = vector.broadcast %c0_i32_7 : i32 to vector<16x128xi32>
    %21 = arith.cmpi eq, %19, %20 : vector<16x128xi32>
    %c15_i32 = arith.constant 15 : i32
    %22 = vector.broadcast %c15_i32 : i32 to vector<16x128xi32>
    %23 = arith.cmpi eq, %19, %22 : vector<16x128xi32>
    %c0_8 = arith.constant 0 : index
    %c0_9 = arith.constant 0 : index
    %24 = vector.load %arg1[%c0_8, %c0_9] : memref<16x128xbf16, #tpu.memory_space<vmem>>, vector<16x128xbf16>
    %25 = vector.extract_strided_slice %24 {offsets = [15, 0], sizes = [1, 128], strides = [1, 1]} : vector<16x128xbf16> to vector<1x128xbf16>
    %26 = vector.extract_strided_slice %24 {offsets = [0, 0], sizes = [15, 128], strides = [1, 1]} : vector<16x128xbf16> to vector<15x128xbf16>
    %27 = tpu.concatenate %25, %26 in 0 : vector<1x128xbf16>, vector<15x128xbf16> -> vector<16x128xbf16>
    %28 = vector.extract_strided_slice %24 {offsets = [1, 0], sizes = [15, 128], strides = [1, 1]} : vector<16x128xbf16> to vector<15x128xbf16>
    %29 = vector.extract_strided_slice %24 {offsets = [0, 0], sizes = [1, 128], strides = [1, 1]} : vector<16x128xbf16> to vector<1x128xbf16>
    %30 = tpu.concatenate %28, %29 in 0 : vector<15x128xbf16>, vector<1x128xbf16> -> vector<16x128xbf16>
    %31 = arith.select %21, %30, %27 : vector<16x128xi1>, vector<16x128xbf16>
    %32 = arith.select %23, %27, %30 : vector<16x128xi1>, vector<16x128xbf16>
    %c0_10 = arith.constant 0 : index
    %c0_11 = arith.constant 0 : index
    %c0_12 = arith.constant 0 : index
    %33 = vector.load %arg2[%c0_10, %c0_11, %c0_12] : memref<3x128x128xbf16, #tpu.memory_space<vmem>>, vector<1x128x128xbf16>
    %34 = vector.shape_cast %33 : vector<1x128x128xbf16> to vector<128x128xbf16>
    %cst = arith.constant dense<0.000000e+00> : vector<16x128xf32>
    %35 = tpu.matmul %31, %34, %cst {dimension_numbers = #tpu.dot_dimension_numbers<[1], [0], [0], [1], [0, 0, 1, 1], [], []>} : vector<16x128xbf16>, vector<128x128xbf16>, vector<16x128xf32> -> vector<16x128xf32>
    %c1 = arith.constant 1 : index
    %c0_13 = arith.constant 0 : index
    %c0_14 = arith.constant 0 : index
    %36 = vector.load %arg2[%c1, %c0_13, %c0_14] : memref<3x128x128xbf16, #tpu.memory_space<vmem>>, vector<1x128x128xbf16>
    %37 = vector.shape_cast %36 : vector<1x128x128xbf16> to vector<128x128xbf16>
    %cst_15 = arith.constant dense<0.000000e+00> : vector<16x128xf32>
    %38 = tpu.matmul %24, %37, %cst_15 {dimension_numbers = #tpu.dot_dimension_numbers<[1], [0], [0], [1], [0, 0, 1, 1], [], []>} : vector<16x128xbf16>, vector<128x128xbf16>, vector<16x128xf32> -> vector<16x128xf32>
    %39 = arith.addf %35, %38 : vector<16x128xf32>
    %c2 = arith.constant 2 : index
    %c0_16 = arith.constant 0 : index
    %c0_17 = arith.constant 0 : index
    %40 = vector.load %arg2[%c2, %c0_16, %c0_17] : memref<3x128x128xbf16, #tpu.memory_space<vmem>>, vector<1x128x128xbf16>
    %41 = vector.shape_cast %40 : vector<1x128x128xbf16> to vector<128x128xbf16>
    %cst_18 = arith.constant dense<0.000000e+00> : vector<16x128xf32>
    %42 = tpu.matmul %32, %41, %cst_18 {dimension_numbers = #tpu.dot_dimension_numbers<[1], [0], [0], [1], [0, 0, 1, 1], [], []>} : vector<16x128xbf16>, vector<128x128xbf16>, vector<16x128xf32> -> vector<16x128xf32>
    %43 = arith.addf %39, %42 : vector<16x128xf32>
    %c0_19 = arith.constant 0 : index
    %c0_20 = arith.constant 0 : index
    %44 = vector.load %arg3[%c0_19, %c0_20] : memref<1x128xf32, #tpu.memory_space<vmem>>, vector<1x128xf32>
    %45 = vector.broadcast %44 : vector<1x128xf32> to vector<16x128xf32>
    %46 = arith.addf %43, %45 : vector<16x128xf32>
    %cst_21 = arith.constant dense<0.000000e+00> : vector<16x8xf32>
    %47 = tpu.matmul %46, %1, %cst_21 {dimension_numbers = #tpu.dot_dimension_numbers<[1], [0], [0], [1], [0, 0, 1, 1], [], []>, precision = #tpu.contract_precision<fp32>} : vector<16x128xf32>, vector<128x8xf32>, vector<16x8xf32> -> vector<16x8xf32>
    %cst_22 = arith.constant dense<0.000000e+00> : vector<8xf32>
    %48 = vector.multi_reduction <add>, %47, %cst_22 [0] : vector<16x8xf32> to vector<8xf32>
    %49 = vector.shape_cast %48 : vector<8xf32> to vector<1x8xf32>
    %50 = vector.shape_cast %49 : vector<1x8xf32> to vector<1x8xf32>
    %51 = vector.broadcast %50 : vector<1x8xf32> to vector<16x8xf32>
    %cst_23 = arith.constant dense<0.000000e+00> : vector<16x128xf32>
    %52 = tpu.matmul %51, %2, %cst_23 {dimension_numbers = #tpu.dot_dimension_numbers<[1], [0], [0], [1], [0, 0, 1, 1], [], []>, precision = #tpu.contract_precision<fp32>} : vector<16x8xf32>, vector<8x128xf32>, vector<16x128xf32> -> vector<16x128xf32>
    %53 = arith.subf %46, %52 : vector<16x128xf32>
    %54 = arith.mulf %53, %53 : vector<16x128xf32>
    %cst_24 = arith.constant dense<0.000000e+00> : vector<16x8xf32>
    %55 = tpu.matmul %54, %1, %cst_24 {dimension_numbers = #tpu.dot_dimension_numbers<[1], [0], [0], [1], [0, 0, 1, 1], [], []>, precision = #tpu.contract_precision<fp32>} : vector<16x128xf32>, vector<128x8xf32>, vector<16x8xf32> -> vector<16x8xf32>
    %cst_25 = arith.constant dense<0.000000e+00> : vector<8xf32>
    %56 = vector.multi_reduction <add>, %55, %cst_25 [0] : vector<16x8xf32> to vector<8xf32>
    %57 = vector.shape_cast %56 : vector<8xf32> to vector<1x8xf32>
    %58 = vector.shape_cast %57 : vector<1x8xf32> to vector<1x8xf32>
    %59 = vector.broadcast %58 : vector<1x8xf32> to vector<16x8xf32>
    %cst_26 = arith.constant dense<0.000000e+00> : vector<16x128xf32>
    %60 = tpu.matmul %59, %2, %cst_26 {dimension_numbers = #tpu.dot_dimension_numbers<[1], [0], [0], [1], [0, 0, 1, 1], [], []>, precision = #tpu.contract_precision<fp32>} : vector<16x8xf32>, vector<8x128xf32>, vector<16x128xf32> -> vector<16x128xf32>
    %cst_27 = arith.constant 9.99999974E-6 : f32
    %61 = vector.broadcast %cst_27 : f32 to vector<16x128xf32>
    %62 = arith.addf %60, %61 : vector<16x128xf32>
    %63 = math.rsqrt %62 : vector<16x128xf32>
    %64 = arith.mulf %53, %63 : vector<16x128xf32>
    %cst_28 = arith.constant 0.000000e+00 : f32
    %65 = vector.broadcast %cst_28 : f32 to vector<16x128xf32>
    %66 = arith.cmpf oge, %64, %65 : vector<16x128xf32>
    %67 = vector.broadcast %0 : f32 to vector<16x128xf32>
    %68 = arith.mulf %67, %64 : vector<16x128xf32>
    %69 = arith.select %66, %64, %68 : vector<16x128xi1>, vector<16x128xf32>
    %70 = arith.truncf %69 : vector<16x128xf32> to vector<16x128xbf16>
    %71 = vector.extract_strided_slice %70 {offsets = [15, 0], sizes = [1, 128], strides = [1, 1]} : vector<16x128xbf16> to vector<1x128xbf16>
    %72 = vector.extract_strided_slice %70 {offsets = [0, 0], sizes = [15, 128], strides = [1, 1]} : vector<16x128xbf16> to vector<15x128xbf16>
    %73 = tpu.concatenate %71, %72 in 0 : vector<1x128xbf16>, vector<15x128xbf16> -> vector<16x128xbf16>
    %74 = vector.extract_strided_slice %70 {offsets = [1, 0], sizes = [15, 128], strides = [1, 1]} : vector<16x128xbf16> to vector<15x128xbf16>
    %75 = vector.extract_strided_slice %70 {offsets = [0, 0], sizes = [1, 128], strides = [1, 1]} : vector<16x128xbf16> to vector<1x128xbf16>
    %76 = tpu.concatenate %74, %75 in 0 : vector<15x128xbf16>, vector<1x128xbf16> -> vector<16x128xbf16>
    %77 = arith.select %21, %76, %73 : vector<16x128xi1>, vector<16x128xbf16>
    %78 = arith.select %23, %73, %76 : vector<16x128xi1>, vector<16x128xbf16>
    %c0_29 = arith.constant 0 : index
    %c0_30 = arith.constant 0 : index
    %c0_31 = arith.constant 0 : index
    %79 = vector.load %arg4[%c0_29, %c0_30, %c0_31] : memref<3x128x128xbf16, #tpu.memory_space<vmem>>, vector<1x128x128xbf16>
    %80 = vector.shape_cast %79 : vector<1x128x128xbf16> to vector<128x128xbf16>
    %cst_32 = arith.constant dense<0.000000e+00> : vector<16x128xf32>
    %81 = tpu.matmul %77, %80, %cst_32 {dimension_numbers = #tpu.dot_dimension_numbers<[1], [0], [0], [1], [0, 0, 1, 1], [], []>} : vector<16x128xbf16>, vector<128x128xbf16>, vector<16x128xf32> -> vector<16x128xf32>
    %c1_33 = arith.constant 1 : index
    %c0_34 = arith.constant 0 : index
    %c0_35 = arith.constant 0 : index
    %82 = vector.load %arg4[%c1_33, %c0_34, %c0_35] : memref<3x128x128xbf16, #tpu.memory_space<vmem>>, vector<1x128x128xbf16>
    %83 = vector.shape_cast %82 : vector<1x128x128xbf16> to vector<128x128xbf16>
    %cst_36 = arith.constant dense<0.000000e+00> : vector<16x128xf32>
    %84 = tpu.matmul %70, %83, %cst_36 {dimension_numbers = #tpu.dot_dimension_numbers<[1], [0], [0], [1], [0, 0, 1, 1], [], []>} : vector<16x128xbf16>, vector<128x128xbf16>, vector<16x128xf32> -> vector<16x128xf32>
    %85 = arith.addf %81, %84 : vector<16x128xf32>
    %c2_37 = arith.constant 2 : index
    %c0_38 = arith.constant 0 : index
    %c0_39 = arith.constant 0 : index
    %86 = vector.load %arg4[%c2_37, %c0_38, %c0_39] : memref<3x128x128xbf16, #tpu.memory_space<vmem>>, vector<1x128x128xbf16>
    %87 = vector.shape_cast %86 : vector<1x128x128xbf16> to vector<128x128xbf16>
    %cst_40 = arith.constant dense<0.000000e+00> : vector<16x128xf32>
    %88 = tpu.matmul %78, %87, %cst_40 {dimension_numbers = #tpu.dot_dimension_numbers<[1], [0], [0], [1], [0, 0, 1, 1], [], []>} : vector<16x128xbf16>, vector<128x128xbf16>, vector<16x128xf32> -> vector<16x128xf32>
    %89 = arith.addf %85, %88 : vector<16x128xf32>
    %c0_41 = arith.constant 0 : index
    %c0_42 = arith.constant 0 : index
    %90 = vector.load %arg5[%c0_41, %c0_42] : memref<1x128xf32, #tpu.memory_space<vmem>>, vector<1x128xf32>
    %91 = vector.broadcast %90 : vector<1x128xf32> to vector<16x128xf32>
    %92 = arith.addf %89, %91 : vector<16x128xf32>
    %cst_43 = arith.constant dense<0.000000e+00> : vector<16x8xf32>
    %93 = tpu.matmul %92, %1, %cst_43 {dimension_numbers = #tpu.dot_dimension_numbers<[1], [0], [0], [1], [0, 0, 1, 1], [], []>, precision = #tpu.contract_precision<fp32>} : vector<16x128xf32>, vector<128x8xf32>, vector<16x8xf32> -> vector<16x8xf32>
    %cst_44 = arith.constant dense<0.000000e+00> : vector<8xf32>
    %94 = vector.multi_reduction <add>, %93, %cst_44 [0] : vector<16x8xf32> to vector<8xf32>
    %95 = vector.shape_cast %94 : vector<8xf32> to vector<1x8xf32>
    %96 = vector.shape_cast %95 : vector<1x8xf32> to vector<1x8xf32>
    %97 = vector.broadcast %96 : vector<1x8xf32> to vector<16x8xf32>
    %cst_45 = arith.constant dense<0.000000e+00> : vector<16x128xf32>
    %98 = tpu.matmul %97, %2, %cst_45 {dimension_numbers = #tpu.dot_dimension_numbers<[1], [0], [0], [1], [0, 0, 1, 1], [], []>, precision = #tpu.contract_precision<fp32>} : vector<16x8xf32>, vector<8x128xf32>, vector<16x128xf32> -> vector<16x128xf32>
    %99 = arith.subf %92, %98 : vector<16x128xf32>
    %100 = arith.mulf %99, %99 : vector<16x128xf32>
    %cst_46 = arith.constant dense<0.000000e+00> : vector<16x8xf32>
    %101 = tpu.matmul %100, %1, %cst_46 {dimension_numbers = #tpu.dot_dimension_numbers<[1], [0], [0], [1], [0, 0, 1, 1], [], []>, precision = #tpu.contract_precision<fp32>} : vector<16x128xf32>, vector<128x8xf32>, vector<16x8xf32> -> vector<16x8xf32>
    %cst_47 = arith.constant dense<0.000000e+00> : vector<8xf32>
    %102 = vector.multi_reduction <add>, %101, %cst_47 [0] : vector<16x8xf32> to vector<8xf32>
    %103 = vector.shape_cast %102 : vector<8xf32> to vector<1x8xf32>
    %104 = vector.shape_cast %103 : vector<1x8xf32> to vector<1x8xf32>
    %105 = vector.broadcast %104 : vector<1x8xf32> to vector<16x8xf32>
    %cst_48 = arith.constant dense<0.000000e+00> : vector<16x128xf32>
    %106 = tpu.matmul %105, %2, %cst_48 {dimension_numbers = #tpu.dot_dimension_numbers<[1], [0], [0], [1], [0, 0, 1, 1], [], []>, precision = #tpu.contract_precision<fp32>} : vector<16x8xf32>, vector<8x128xf32>, vector<16x128xf32> -> vector<16x128xf32>
    %cst_49 = arith.constant 9.99999974E-6 : f32
    %107 = vector.broadcast %cst_49 : f32 to vector<16x128xf32>
    %108 = arith.addf %106, %107 : vector<16x128xf32>
    %109 = math.rsqrt %108 : vector<16x128xf32>
    %110 = arith.mulf %99, %109 : vector<16x128xf32>
    %111 = arith.extf %24 : vector<16x128xbf16> to vector<16x128xf32>
    %112 = arith.addf %110, %111 : vector<16x128xf32>
    %cst_50 = arith.constant 0.000000e+00 : f32
    %113 = vector.broadcast %cst_50 : f32 to vector<16x128xf32>
    %114 = arith.cmpf oge, %112, %113 : vector<16x128xf32>
    %115 = vector.broadcast %0 : f32 to vector<16x128xf32>
    %116 = arith.mulf %115, %112 : vector<16x128xf32>
    %117 = arith.select %114, %112, %116 : vector<16x128xi1>, vector<16x128xf32>
    %c0_51 = arith.constant 0 : index
    %c0_52 = arith.constant 0 : index
    %118 = vector.load %arg9[%c0_51, %c0_52] : memref<16x128xf32, #tpu.memory_space<vmem>>, vector<16x128xf32>
    tpu.vector_store %arg9[%c0_51, %c0_52], %117 {strides = array<i32>} : memref<16x128xf32, #tpu.memory_space<vmem>>, vector<16x128xf32>,
    return
  }
  func.func @transform_0(%arg0: i32) -> (i32, i32) {
    %c0_i32 = arith.constant 0 : i32
    %c0_i32_0 = arith.constant 0 : i32
    return %arg0, %c0_i32 : i32, i32
  }
  func.func @transform_1(%arg0: i32) -> (i32, i32, i32) {
    %c0_i32 = arith.constant 0 : i32
    %c0_i32_0 = arith.constant 0 : i32
    %c0_i32_1 = arith.constant 0 : i32
    %c0_i32_2 = arith.constant 0 : i32
    return %c0_i32, %c0_i32_0, %c0_i32_1 : i32, i32, i32
  }
  func.func @transform_2(%arg0: i32) -> (i32, i32) {
    %c0_i32 = arith.constant 0 : i32
    %c0_i32_0 = arith.constant 0 : i32
    %c0_i32_1 = arith.constant 0 : i32
    return %c0_i32, %c0_i32_0 : i32, i32
  }
  func.func @transform_3(%arg0: i32) -> (i32, i32, i32) {
    %c0_i32 = arith.constant 0 : i32
    %c0_i32_0 = arith.constant 0 : i32
    %c0_i32_1 = arith.constant 0 : i32
    %c0_i32_2 = arith.constant 0 : i32
    return %c0_i32, %c0_i32_0, %c0_i32_1 : i32, i32, i32
  }
  func.func @transform_4(%arg0: i32) -> (i32, i32) {
    %c0_i32 = arith.constant 0 : i32
    %c0_i32_0 = arith.constant 0 : i32
    %c0_i32_1 = arith.constant 0 : i32
    return %c0_i32, %c0_i32_0 : i32, i32
  }
  func.func @transform_5(%arg0: i32) -> (i32, i32) {
    %c0_i32 = arith.constant 0 : i32
    %c0_i32_0 = arith.constant 0 : i32
    %c0_i32_1 = arith.constant 0 : i32
    return %c0_i32, %c0_i32_0 : i32, i32
  }
  func.func @transform_6(%arg0: i32) -> (i32, i32) {
    %c0_i32 = arith.constant 0 : i32
    %c0_i32_0 = arith.constant 0 : i32
    %c0_i32_1 = arith.constant 0 : i32
    return %c0_i32, %c0_i32_0 : i32, i32
  }
  func.func @transform_7(%arg0: i32) -> i32 {
    %c0_i32 = arith.constant 0 : i32
    %c0_i32_0 = arith.constant 0 : i32
    return %c0_i32 : i32
  }
  func.func @transform_8(%arg0: i32) -> (i32, i32) {
    %c0_i32 = arith.constant 0 : i32
    %c0_i32_0 = arith.constant 0 : i32
    return %arg0, %c0_i32 : i32, i32
  }
}

</mosaic_0001>

<llo_original>
// kernel: tpu_custom_call.1
$region0: #{tpu_custom_call.1}
  #allocation0 [shape = 'u32[]', space=smem, size = 0x4, offset = 0x4, fixed_abs, tag = 'smem constant byte address 0x4 - core index']
  #allocation1 [shape = 'u32[144,128]{1,0:T(1,128)}', space=vmem, size = 0x12000, scoped, tag = 'internal scratch']
  #allocation2 [shape = 'f32[1]{0:T(128)S(6)}', space=smem, size = 0x200, scoped, tag = 'scoped memory for tpu_custom_call.1']
  %s0 = inlined_call_operand.vmem [shape: bf16[16,128], index: 0, kind: input, shape index: {}]
  %s1 = inlined_call_operand.hbm [shape: bf16[3,128,128], index: 1, kind: input, shape index: {}]
  %s2 = inlined_call_operand.vmem [shape: f32[1,128], index: 2, kind: input, shape index: {}]
  %s3 = inlined_call_operand.hbm [shape: bf16[3,128,128], index: 3, kind: input, shape index: {}]
  %s4 = inlined_call_operand.vmem [shape: f32[1,128], index: 4, kind: input, shape index: {}]
  %s5 = inlined_call_operand.vmem [shape: f32[128,8], index: 5, kind: input, shape index: {}]
  %s6 = inlined_call_operand.vmem [shape: f32[8,128], index: 6, kind: input, shape index: {}]
  %s7 = inlined_call_operand.<no memory space> [shape: f32[1], index: 7, kind: input, shape index: {}]
  %s8 = inlined_call_operand.hbm [shape: f32[16,128], index: 8, kind: output, shape index: {}]
  %s9 = sld [smem:[#allocation0]]
  $region50: #{tpu_custom_call.1} parent=0
    _
  %s11 = ssub.s32 1, %s9
  %s12 = scalar_select 0, %s11, %s9
  %13 = sst [smem:[#allocation2]] %s7
  $region1: #{tpu_custom_call.1} parent=0
    #allocation3 [shape = 'u8[98304]{0}', space=vmem, size = 0x18000, scoped, tag = 'input window, operand 1, single buffered']
    #allocation4 [shape = 's32[1]{0}', space=sflag, size = 0x4, scoped, tag = 'scoped memory for tpu_custom_call.1']
    #allocation5 [shape = 's32[1]{0}', space=sflag, size = 0x4, scoped, tag = 'scoped memory for tpu_custom_call.1']
    #allocation6 [shape = 'u8[98304]{0}', space=vmem, size = 0x18000, scoped, tag = 'input window, operand 3, single buffered']
    #allocation7 [shape = 's32[1]{0}', space=sflag, size = 0x4, scoped, tag = 'scoped memory for tpu_custom_call.1']
    #allocation8 [shape = 'u8[8192]{0}', space=vmem, size = 0x2000, scoped, tag = 'output window, operand 0, single buffered']
    %14 = vsyncpa [#allocation4], 0
    %15 = vsyncpa [#allocation7], 0
    %16 = vsyncpa [#allocation5], 0
    // Predicated region
    $region2: #{tpu_custom_call.1} parent=1 // pred_check
      _
    $region3: #{tpu_custom_call.1} parent=1 // pred_check_branch
      %18 = sbr.rel (0) target = $region5
    $region4: #{tpu_custom_call.1} parent=1 // pred_region
      _
    $region5: #{tpu_custom_call.1} parent=1 // pred_fallthru
      _
    // Predicated region
    $region6: #{tpu_custom_call.1} parent=1 // pred_check
      _
    $region7: #{tpu_custom_call.1} parent=1 // pred_check_branch
      %20 = sbr.rel (0) target = $region9
    $region8: #{tpu_custom_call.1} parent=1 // pred_region
      %s22 = ssub.s32 3072, 3072
      %23 = vsyncadd [#allocation4], %s22
      %s24 = sshll.u32 [#allocation3], 4
      %s25 = int_to_ptr.vmem [resolvable:$true] %s24
      %30 = dma.hbm_to_vmem [thread:$0]  %s1, 3072, %s25, [#allocation4], 64, 64, 4
    $region9: #{tpu_custom_call.1} parent=1 // pred_fallthru
      _
    // Predicated region
    $region10: #{tpu_custom_call.1} parent=1 // pred_check
      _
    $region11: #{tpu_custom_call.1} parent=1 // pred_check_branch
      %32 = sbr.rel (0) target = $region13
    $region12: #{tpu_custom_call.1} parent=1 // pred_region
      _
    $region13: #{tpu_custom_call.1} parent=1 // pred_fallthru
      _
    // Predicated region
    $region14: #{tpu_custom_call.1} parent=1 // pred_check
      _
    $region15: #{tpu_custom_call.1} parent=1 // pred_check_branch
      %34 = sbr.rel (0) target = $region17
    $region16: #{tpu_custom_call.1} parent=1 // pred_region
      %s36 = ssub.s32 3072, 3072
      %37 = vsyncadd [#allocation7], %s36
      %s38 = sshll.u32 [#allocation6], 4
      %s39 = int_to_ptr.vmem [resolvable:$true] %s38
      %44 = dma.hbm_to_vmem [thread:$0]  %s3, 3072, %s39, [#allocation7], 64, 64, 4
    $region17: #{tpu_custom_call.1} parent=1 // pred_fallthru
      _
    // Predicated region
    $region18: #{tpu_custom_call.1} parent=1 // pred_check
      _
    $region19: #{tpu_custom_call.1} parent=1 // pred_check_branch
      %46 = sbr.rel (0) target = $region21
    $region20: #{tpu_custom_call.1} parent=1 // pred_region
      _
    $region21: #{tpu_custom_call.1} parent=1 // pred_fallthru
      _
    // Predicated region
    $region22: #{tpu_custom_call.1} parent=1 // pred_check
      _
    $region23: #{tpu_custom_call.1} parent=1 // pred_check_branch
      %48 = sbr.rel (0) target = $region25
    $region24: #{tpu_custom_call.1} parent=1 // pred_region
      _
    $region25: #{tpu_custom_call.1} parent=1 // pred_fallthru
      _
    // Predicated region
    $region26: #{tpu_custom_call.1} parent=1 // pred_check
      _
    $region27: #{tpu_custom_call.1} parent=1 // pred_check_branch
      %50 = sbr.rel (0) target = $region29
    $region28: #{tpu_custom_call.1} parent=1 // pred_region
      _
    $region29: #{tpu_custom_call.1} parent=1 // pred_fallthru
      _
    // Predicated region
    $region30: #{tpu_custom_call.1} parent=1 // pred_check
      _
    $region31: #{tpu_custom_call.1} parent=1 // pred_check_branch
      %52 = sbr.rel (0) target = $region33
    $region32: #{tpu_custom_call.1} parent=1 // pred_region
      _
    $region33: #{tpu_custom_call.1} parent=1 // pred_fallthru
      _
    // Predicated region
    $region34: #{tpu_custom_call.1} parent=1 // pred_check
      _
    $region35: #{tpu_custom_call.1} parent=1 // pred_check_branch
      %54 = sbr.rel (0) target = $region37
    $region36: #{tpu_custom_call.1} parent=1 // pred_region
      %55 = dma.done [#allocation4], 3072
    $region37: #{tpu_custom_call.1} parent=1 // pred_fallthru
      _
    // Predicated region
    $region38: #{tpu_custom_call.1} parent=1 // pred_check
      _
    $region39: #{tpu_custom_call.1} parent=1 // pred_check_branch
      %57 = sbr.rel (0) target = $region41
    $region40: #{tpu_custom_call.1} parent=1 // pred_region
      %58 = dma.done [#allocation7], 3072
    $region41: #{tpu_custom_call.1} parent=1 // pred_fallthru
      _
    %s62 = sld [smem:[#allocation2]]
    %v63 = vld [vmem:[%s5] sm:$0xff]
    %v64 = vld [vmem:[%s5 + $0x8] sm:$0xff]
    %v65 = vld [vmem:[%s5 + $0x10] sm:$0xff]
    %v66 = vld [vmem:[%s5 + $0x18] sm:$0xff]
    %v67 = vld [vmem:[%s5 + $0x20] sm:$0xff]
    %v68 = vld [vmem:[%s5 + $0x28] sm:$0xff]
    %v69 = vld [vmem:[%s5 + $0x30] sm:$0xff]
    %v70 = vld [vmem:[%s5 + $0x38] sm:$0xff]
    %v71 = vld [vmem:[%s5 + $0x40] sm:$0xff]
    %v72 = vld [vmem:[%s5 + $0x48] sm:$0xff]
    %v73 = vld [vmem:[%s5 + $0x50] sm:$0xff]
    %v74 = vld [vmem:[%s5 + $0x58] sm:$0xff]
    %v75 = vld [vmem:[%s5 + $0x60] sm:$0xff]
    %v76 = vld [vmem:[%s5 + $0x68] sm:$0xff]
    %v77 = vld [vmem:[%s5 + $0x70] sm:$0xff]
    %v78 = vld [vmem:[%s5 + $0x78] sm:$0xff]
    %v79 = vld [vmem:[%s6] sm:$0xff]
    %v80 = vlaneseq
    %v81 = vshrl.u32 %v80, 7
    %v82 = vadd.s32 %v81, 8
    %vm83 = vcmp.lt.s32.totalorder %v81, 0
    %v84 = vsub.s32 0, %v81
    %v85 = vsel %vm83, %v84, %v81
    %v86 = vshrl.u32 %v85, 4
    %v87 = vand.u32 %v85, 15
    %v88 = vsub.s32 0, %v87
    %v89 = vsel %vm83, %v88, %v87
    %vm90 = vcmp.lt.s32.totalorder %v82, 0
    %v91 = vsub.s32 0, %v82
    %v92 = vsel %vm90, %v91, %v82
    %v93 = vshrl.u32 %v92, 4
    %v94 = vand.u32 %v92, 15
    %v95 = vsub.s32 0, %v94
    %v96 = vsel %vm90, %v95, %v94
    %vm97 = vcmp.ne.s32.totalorder %v89, 0
    %vm98 = vcmp.ne.s32.totalorder %v96, 0
    %vm99 = vcmp.lt.s32.totalorder %v89, 0
    %vm100 = vcmp.lt.s32.totalorder %v96, 0
    %vm101 = vmand %vm99, %vm97
    %vm102 = vmand %vm100, %vm98
    %v103 = vadd.s32 %v89, 16
    %v104 = vadd.s32 %v96, 16
    %v105 = vsel %vm101, %v103, %v89
    %v106 = vsel %vm102, %v104, %v96
    %vm107 = vcmp.eq.s32.totalorder %v105, 0
    %vm108 = vcmp.eq.s32.totalorder %v106, 0
    %vm109 = vcmp.eq.s32.totalorder %v105, 15
    %vm110 = vcmp.eq.s32.totalorder %v106, 15
    %v111 = vld [vmem:[%s0] sm:$0xf]
    %v112 = vld [vmem:[%s0 + $0x4] sm:$0xf]
    %v114 = vunpack.c.l.b16 %v112
    %v115 = vpack.c.b16 %v114, %v114
    %v117 = vshrl.u32 %v115, 16
    %v119 = vrot.slane %v117, 3
    %v122 = vunpack.c.l.b16 %v111
    %v123 = vpack.c.b16 %v114, %v122
    %v125 = vshrl.u32 %v123, 16
    %v127 = vrot.slane %v125, 7
    %v128 = vshll.u32 %v123, 16
    %v130 = vor.u32 %v127, %v128
    %vm132 = vcmask 1040384
    %vm133 = vsmask.f32 256
    %vm134 = vmand %vm132, %vm133
    %v135 = vsel %vm134, %v119, %v130
    %v136 = vrot.slane %v128, 1
    %v137 = vor.u32 %v125, %v136
    %v139 = vpack.c.b16 %v122, %v122
    %v141 = vshll.u32 %v139, 16
    %v143 = vrot.slane %v141, 1
    %vm145 = vcmask 1047552
    %vm146 = vsmask.f32 7424
    %vm147 = vmand %vm145, %vm146
    %v148 = vsel %vm147, %v137, %v143
    %vm149 = vmpackc.low %vm107, %vm107
    %vm150 = vmpackc.low %vm108, %vm108
    %v151 = vsel %vm149, 65537, 0
    %v152 = vsel %vm150, 65537, 0
    %v153 = vunpack.c.l.b16 %v151
    %v154 = vunpack.c.l.b16 %v152
    %v155 = vpack.c.b16 %v154, %v153
    %vm156 = vcmp.ne.s16.totalorder %v155, 0
    %v157 = vsel %vm156, %v148, %v135
    %vm158 = vmpackc.low %vm109, %vm109
    %vm159 = vmpackc.low %vm110, %vm110
    %v160 = vsel %vm158, 65537, 0
    %v161 = vsel %vm159, 65537, 0
    %v162 = vunpack.c.l.b16 %v160
    %v163 = vunpack.c.l.b16 %v161
    %v164 = vpack.c.b16 %v163, %v162
    %vm165 = vcmp.ne.s16.totalorder %v164, 0
    %v166 = vsel %vm165, %v135, %v148
    %v167 = vld [vmem:[#allocation3] sm:$0xf]
    %v168 = vld [vmem:[#allocation3 + $0x4] sm:$0xf]
    %v169 = vld [vmem:[#allocation3 + $0x8] sm:$0xf]
    %v170 = vld [vmem:[#allocation3 + $0xc] sm:$0xf]
    %v171 = vld [vmem:[#allocation3 + $0x10] sm:$0xf]
    %v172 = vld [vmem:[#allocation3 + $0x14] sm:$0xf]
    %v173 = vld [vmem:[#allocation3 + $0x18] sm:$0xf]
    %v174 = vld [vmem:[#allocation3 + $0x1c] sm:$0xf]
    %v175 = vld [vmem:[#allocation3 + $0x20] sm:$0xf]
    %v176 = vld [vmem:[#allocation3 + $0x24] sm:$0xf]
    %v177 = vld [vmem:[#allocation3 + $0x28] sm:$0xf]
    %v178 = vld [vmem:[#allocation3 + $0x2c] sm:$0xf]
    %v179 = vld [vmem:[#allocation3 + $0x30] sm:$0xf]
    %v180 = vld [vmem:[#allocation3 + $0x34] sm:$0xf]
    %v181 = vld [vmem:[#allocation3 + $0x38] sm:$0xf]
    %v182 = vld [vmem:[#allocation3 + $0x3c] sm:$0xf]
    %s183 = scalar_lea.vmem [#allocation3], 64
    %v184 = vld [vmem:[%s183] sm:$0xf]
    %v185 = vld [vmem:[%s183 + $0x4] sm:$0xf]
    %v186 = vld [vmem:[%s183 + $0x8] sm:$0xf]
    %v187 = vld [vmem:[%s183 + $0xc] sm:$0xf]
    %v188 = vld [vmem:[%s183 + $0x10] sm:$0xf]
    %v189 = vld [vmem:[%s183 + $0x14] sm:$0xf]
    %v190 = vld [vmem:[%s183 + $0x18] sm:$0xf]
    %v191 = vld [vmem:[%s183 + $0x1c] sm:$0xf]
    %v192 = vld [vmem:[%s183 + $0x20] sm:$0xf]
    %v193 = vld [vmem:[%s183 + $0x24] sm:$0xf]
    %v194 = vld [vmem:[%s183 + $0x28] sm:$0xf]
    %v195 = vld [vmem:[%s183 + $0x2c] sm:$0xf]
    %v196 = vld [vmem:[%s183 + $0x30] sm:$0xf]
    %v197 = vld [vmem:[%s183 + $0x34] sm:$0xf]
    %v198 = vld [vmem:[%s183 + $0x38] sm:$0xf]
    %v199 = vld [vmem:[%s183 + $0x3c] sm:$0xf]
    %v217 = vunpack.c.l.b16 %v184
    %v218 = vunpack.c.l.b16 %v185
    %v219 = vunpack.c.l.b16 %v186
    %v220 = vunpack.c.l.b16 %v187
    %v221 = vunpack.c.l.b16 %v188
    %v222 = vunpack.c.l.b16 %v189
    %v223 = vunpack.c.l.b16 %v190
    %v224 = vunpack.c.l.b16 %v191
    %v225 = vunpack.c.l.b16 %v192
    %v226 = vunpack.c.l.b16 %v193
    %v227 = vunpack.c.l.b16 %v194
    %v228 = vunpack.c.l.b16 %v195
    %v229 = vunpack.c.l.b16 %v196
    %v230 = vunpack.c.l.b16 %v197
    %v231 = vunpack.c.l.b16 %v198
    %v232 = vunpack.c.l.b16 %v199
    %v233 = vpack.c.b16 %v218, %v217
    %v234 = vpack.c.b16 %v220, %v219
    %v235 = vpack.c.b16 %v222, %v221
    %v236 = vpack.c.b16 %v224, %v223
    %v237 = vpack.c.b16 %v226, %v225
    %v238 = vpack.c.b16 %v228, %v227
    %v239 = vpack.c.b16 %v230, %v229
    %v240 = vpack.c.b16 %v232, %v231
    %249 = vmatprep.subr.bf16.mxu0 0
    %250 = vmatpush1.bf16.msra.mxu0 %v233
    %251 = vmatprep.subr.bf16.mxu0 0
    %252 = vmatpush1.bf16.msra.mxu0 %v234
    %253 = vmatprep.subr.bf16.mxu0 0
    %254 = vmatpush1.bf16.msra.mxu0 %v235
    %255 = vmatprep.subr.bf16.mxu0 0
    %256 = vmatpush1.bf16.msra.mxu0 %v236
    %257 = vmatprep.subr.bf16.mxu0 0
    %258 = vmatpush1.bf16.msra.mxu0 %v237
    %259 = vmatprep.subr.bf16.mxu0 0
    %260 = vmatpush1.bf16.msra.mxu0 %v238
    %261 = vmatprep.subr.bf16.mxu0 0
    %262 = vmatpush1.bf16.msra.mxu0 %v239
    %263 = vmatprep.subr.bf16.mxu0 0
    %264 = vmatpush1.bf16.msra.mxu0 %v240
    %265 = vmatprep.subr.bf16.mxu0 0
    %266 = vmatpush1.bf16.msra.mxu0 0
    %267 = vmatprep.subr.bf16.mxu0 0
    %268 = vmatpush1.bf16.msra.mxu0 0
    %269 = vmatprep.subr.bf16.mxu0 0
    %270 = vmatpush1.bf16.msra.mxu0 0
    %271 = vmatprep.subr.bf16.mxu0 0
    %272 = vmatpush1.bf16.msra.mxu0 0
    %273 = vmatprep.subr.bf16.mxu0 0
    %274 = vmatpush1.bf16.msra.mxu0 0
    %275 = vmatprep.subr.bf16.mxu0 0
    %276 = vmatpush1.bf16.msra.mxu0 0
    %277 = vmatprep.subr.bf16.mxu0 0
    %278 = vmatpush1.bf16.msra.mxu0 0
    %279 = vmatprep.subr.bf16.mxu0 0
    %280 = vmatpush1.bf16.msra.mxu0 0
    %281 = vmatprep.mubr.bf16.mxu0 0
    %282 = vmatmul.mubr.bf16.gmra.mrb[0].mxu0 %v123
    %v283 = vpop.f32.mrb[0].mxu0
    %v284 = vadd.f32 0.0, %v283
    %v285 = vpop.f32.mrb[0].mxu0
    %v286 = vpop.f32.mrb[0].mxu0
    %v287 = vadd.f32 0.0, %v286
    %v288 = vpop.f32.mrb[0].mxu0
    %289 = vdwg.mxu0
    %v306 = vunpack.c.l.b16 %v167
    %v307 = vunpack.c.l.b16 %v168
    %v308 = vunpack.c.l.b16 %v169
    %v309 = vunpack.c.l.b16 %v170
    %v310 = vunpack.c.l.b16 %v171
    %v311 = vunpack.c.l.b16 %v172
    %v312 = vunpack.c.l.b16 %v173
    %v313 = vunpack.c.l.b16 %v174
    %v314 = vunpack.c.l.b16 %v175
    %v315 = vunpack.c.l.b16 %v176
    %v316 = vunpack.c.l.b16 %v177
    %v317 = vunpack.c.l.b16 %v178
    %v318 = vunpack.c.l.b16 %v179
    %v319 = vunpack.c.l.b16 %v180
    %v320 = vunpack.c.l.b16 %v181
    %v321 = vunpack.c.l.b16 %v182
    %v322 = vpack.c.b16 %v307, %v306
    %v323 = vpack.c.b16 %v309, %v308
    %v324 = vpack.c.b16 %v311, %v310
    %v325 = vpack.c.b16 %v313, %v312
    %v326 = vpack.c.b16 %v315, %v314
    %v327 = vpack.c.b16 %v317, %v316
    %v328 = vpack.c.b16 %v319, %v318
    %v329 = vpack.c.b16 %v321, %v320
    %338 = vmatprep.subr.bf16.mxu0 0
    %339 = vmatpush1.bf16.msra.mxu0 %v322
    %340 = vmatprep.subr.bf16.mxu0 0
    %341 = vmatpush1.bf16.msra.mxu0 %v323
    %342 = vmatprep.subr.bf16.mxu0 0
    %343 = vmatpush1.bf16.msra.mxu0 %v324
    %344 = vmatprep.subr.bf16.mxu0 0
    %345 = vmatpush1.bf16.msra.mxu0 %v325
    %346 = vmatprep.subr.bf16.mxu0 0
    %347 = vmatpush1.bf16.msra.mxu0 %v326
    %348 = vmatprep.subr.bf16.mxu0 0
    %349 = vmatpush1.bf16.msra.mxu0 %v327
    %350 = vmatprep.subr.bf16.mxu0 0
    %351 = vmatpush1.bf16.msra.mxu0 %v328
    %352 = vmatprep.subr.bf16.mxu0 0
    %353 = vmatpush1.bf16.msra.mxu0 %v329
    %354 = vmatprep.subr.bf16.mxu0 0
    %355 = vmatpush1.bf16.msra.mxu0 0
    %356 = vmatprep.subr.bf16.mxu0 0
    %357 = vmatpush1.bf16.msra.mxu0 0
    %358 = vmatprep.subr.bf16.mxu0 0
    %359 = vmatpush1.bf16.msra.mxu0 0
    %360 = vmatprep.subr.bf16.mxu0 0
    %361 = vmatpush1.bf16.msra.mxu0 0
    %362 = vmatprep.subr.bf16.mxu0 0
    %363 = vmatpush1.bf16.msra.mxu0 0
    %364 = vmatprep.subr.bf16.mxu0 0
    %365 = vmatpush1.bf16.msra.mxu0 0
    %366 = vmatprep.subr.bf16.mxu0 0
    %367 = vmatpush1.bf16.msra.mxu0 0
    %368 = vmatprep.subr.bf16.mxu0 0
    %369 = vmatpush1.bf16.msra.mxu0 0
    %370 = vmatprep.mubr.bf16.mxu0 0
    %371 = vmatmul.mubr.bf16.gmra.mrb[0].mxu0 %v157
    %v372 = vpop.f32.mrb[0].mxu0
    %v373 = vadd.f32 %v284, %v372
    %v374 = vpop.f32.mrb[0].mxu0
    %v375 = vpop.f32.mrb[0].mxu0
    %v376 = vadd.f32 %v287, %v375
    %v377 = vpop.f32.mrb[0].mxu0
    %378 = vdwg.mxu0
    %s379 = scalar_lea.vmem [#allocation3], 128
    %v380 = vld [vmem:[%s379] sm:$0xf]
    %v381 = vld [vmem:[%s379 + $0x4] sm:$0xf]
    %v382 = vld [vmem:[%s379 + $0x8] sm:$0xf]
    %v383 = vld [vmem:[%s379 + $0xc] sm:$0xf]
    %v384 = vld [vmem:[%s379 + $0x10] sm:$0xf]
    %v385 = vld [vmem:[%s379 + $0x14] sm:$0xf]
    %v386 = vld [vmem:[%s379 + $0x18] sm:$0xf]
    %v387 = vld [vmem:[%s379 + $0x1c] sm:$0xf]
    %v388 = vld [vmem:[%s379 + $0x20] sm:$0xf]
    %v389 = vld [vmem:[%s379 + $0x24] sm:$0xf]
    %v390 = vld [vmem:[%s379 + $0x28] sm:$0xf]
    %v391 = vld [vmem:[%s379 + $0x2c] sm:$0xf]
    %v392 = vld [vmem:[%s379 + $0x30] sm:$0xf]
    %v393 = vld [vmem:[%s379 + $0x34] sm:$0xf]
    %v394 = vld [vmem:[%s379 + $0x38] sm:$0xf]
    %v395 = vld [vmem:[%s379 + $0x3c] sm:$0xf]
    %v412 = vunpack.c.l.b16 %v380
    %v413 = vunpack.c.l.b16 %v381
    %v414 = vunpack.c.l.b16 %v382
    %v415 = vunpack.c.l.b16 %v383
    %v416 = vunpack.c.l.b16 %v384
    %v417 = vunpack.c.l.b16 %v385
    %v418 = vunpack.c.l.b16 %v386
    %v419 = vunpack.c.l.b16 %v387
    %v420 = vunpack.c.l.b16 %v388
    %v421 = vunpack.c.l.b16 %v389
    %v422 = vunpack.c.l.b16 %v390
    %v423 = vunpack.c.l.b16 %v391
    %v424 = vunpack.c.l.b16 %v392
    %v425 = vunpack.c.l.b16 %v393
    %v426 = vunpack.c.l.b16 %v394
    %v427 = vunpack.c.l.b16 %v395
    %v428 = vpack.c.b16 %v413, %v412
    %v429 = vpack.c.b16 %v415, %v414
    %v430 = vpack.c.b16 %v417, %v416
    %v431 = vpack.c.b16 %v419, %v418
    %v432 = vpack.c.b16 %v421, %v420
    %v433 = vpack.c.b16 %v423, %v422
    %v434 = vpack.c.b16 %v425, %v424
    %v435 = vpack.c.b16 %v427, %v426
    %444 = vmatprep.subr.bf16.mxu0 0
    %445 = vmatpush1.bf16.msra.mxu0 %v428
    %446 = vmatprep.subr.bf16.mxu0 0
    %447 = vmatpush1.bf16.msra.mxu0 %v429
    %448 = vmatprep.subr.bf16.mxu0 0
    %449 = vmatpush1.bf16.msra.mxu0 %v430
    %450 = vmatprep.subr.bf16.mxu0 0
    %451 = vmatpush1.bf16.msra.mxu0 %v431
    %452 = vmatprep.subr.bf16.mxu0 0
    %453 = vmatpush1.bf16.msra.mxu0 %v432
    %454 = vmatprep.subr.bf16.mxu0 0
    %455 = vmatpush1.bf16.msra.mxu0 %v433
    %456 = vmatprep.subr.bf16.mxu0 0
    %457 = vmatpush1.bf16.msra.mxu0 %v434
    %458 = vmatprep.subr.bf16.mxu0 0
    %459 = vmatpush1.bf16.msra.mxu0 %v435
    %460 = vmatprep.subr.bf16.mxu0 0
    %461 = vmatpush1.bf16.msra.mxu0 0
    %462 = vmatprep.subr.bf16.mxu0 0
    %463 = vmatpush1.bf16.msra.mxu0 0
    %464 = vmatprep.subr.bf16.mxu0 0
    %465 = vmatpush1.bf16.msra.mxu0 0
    %466 = vmatprep.subr.bf16.mxu0 0
    %467 = vmatpush1.bf16.msra.mxu0 0
    %468 = vmatprep.subr.bf16.mxu0 0
    %469 = vmatpush1.bf16.msra.mxu0 0
    %470 = vmatprep.subr.bf16.mxu0 0
    %471 = vmatpush1.bf16.msra.mxu0 0
    %472 = vmatprep.subr.bf16.mxu0 0
    %473 = vmatpush1.bf16.msra.mxu0 0
    %474 = vmatprep.subr.bf16.mxu0 0
    %475 = vmatpush1.bf16.msra.mxu0 0
    %476 = vmatprep.mubr.bf16.mxu0 0
    %477 = vmatmul.mubr.bf16.gmra.mrb[0].mxu0 %v166
    %v478 = vpop.f32.mrb[0].mxu0
    %v479 = vadd.f32 0.0, %v478
    %v480 = vpop.f32.mrb[0].mxu0
    %v481 = vpop.f32.mrb[0].mxu0
    %v482 = vadd.f32 0.0, %v481
    %v483 = vpop.f32.mrb[0].mxu0
    %484 = vdwg.mxu0
    %v485 = vadd.f32 %v373, %v479
    %v486 = vadd.f32 %v376, %v482
    %v487 = vld [vmem:[%s2] sm:$0x1]
    %v489 = vlaneseq
    %v490 = vshrl.u32 %v489, 7
    %v491 = vsub.s32 0, %v490
    %v492 = vrot.slane %v487, %v491
    %v494 = vadd.f32 %v485, %v492
    %v495 = vadd.f32 %v486, %v492
    %496 = vmatprep.subr.mxu0 0.0
    %v497 = vand.u32 %v63, 4294901760
    %498 = vmatpush1.msra.mxu0 %v497
    %499 = vmatprep.subr.mxu0 0.0
    %v500 = vand.u32 %v64, 4294901760
    %501 = vmatpush1.msra.mxu0 %v500
    %502 = vmatprep.subr.mxu0 0.0
    %v503 = vand.u32 %v65, 4294901760
    %504 = vmatpush1.msra.mxu0 %v503
    %505 = vmatprep.subr.mxu0 0.0
    %v506 = vand.u32 %v66, 4294901760
    %507 = vmatpush1.msra.mxu0 %v506
    %508 = vmatprep.subr.mxu0 0.0
    %v509 = vand.u32 %v67, 4294901760
    %510 = vmatpush1.msra.mxu0 %v509
    %511 = vmatprep.subr.mxu0 0.0
    %v512 = vand.u32 %v68, 4294901760
    %513 = vmatpush1.msra.mxu0 %v512
    %514 = vmatprep.subr.mxu0 0.0
    %v515 = vand.u32 %v69, 4294901760
    %516 = vmatpush1.msra.mxu0 %v515
    %517 = vmatprep.subr.mxu0 0.0
    %v518 = vand.u32 %v70, 4294901760
    %519 = vmatpush1.msra.mxu0 %v518
    %520 = vmatprep.subr.mxu0 0.0
    %v521 = vand.u32 %v71, 4294901760
    %522 = vmatpush1.msra.mxu0 %v521
    %523 = vmatprep.subr.mxu0 0.0
    %v524 = vand.u32 %v72, 4294901760
    %525 = vmatpush1.msra.mxu0 %v524
    %526 = vmatprep.subr.mxu0 0.0
    %v527 = vand.u32 %v73, 4294901760
    %528 = vmatpush1.msra.mxu0 %v527
    %529 = vmatprep.subr.mxu0 0.0
    %v530 = vand.u32 %v74, 4294901760
    %531 = vmatpush1.msra.mxu0 %v530
    %532 = vmatprep.subr.mxu0 0.0
    %v533 = vand.u32 %v75, 4294901760
    %534 = vmatpush1.msra.mxu0 %v533
    %535 = vmatprep.subr.mxu0 0.0
    %v536 = vand.u32 %v76, 4294901760
    %537 = vmatpush1.msra.mxu0 %v536
    %538 = vmatprep.subr.mxu0 0.0
    %v539 = vand.u32 %v77, 4294901760
    %540 = vmatpush1.msra.mxu0 %v539
    %541 = vmatprep.subr.mxu0 0.0
    %v542 = vand.u32 %v78, 4294901760
    %543 = vmatpush1.msra.mxu0 %v542
    %544 = vmatprep.subr.mxu0 0.0
    %545 = vmatpush1.msra.mxu0 0.0
    %546 = vmatprep.subr.mxu0 0.0
    %547 = vmatpush1.msra.mxu0 0.0
    %548 = vmatprep.subr.mxu0 0.0
    %549 = vmatpush1.msra.mxu0 0.0
    %550 = vmatprep.subr.mxu0 0.0
    %551 = vmatpush1.msra.mxu0 0.0
    %552 = vmatprep.subr.mxu0 0.0
    %553 = vmatpush1.msra.mxu0 0.0
    %554 = vmatprep.subr.mxu0 0.0
    %555 = vmatpush1.msra.mxu0 0.0
    %556 = vmatprep.subr.mxu0 0.0
    %557 = vmatpush1.msra.mxu0 0.0
    %558 = vmatprep.subr.mxu0 0.0
    %559 = vmatpush1.msra.mxu0 0.0
    %560 = vmatprep.subr.mxu0 0.0
    %561 = vmatpush1.msra.mxu0 0.0
    %562 = vmatprep.subr.mxu0 0.0
    %563 = vmatpush1.msra.mxu0 0.0
    %564 = vmatprep.subr.mxu0 0.0
    %565 = vmatpush1.msra.mxu0 0.0
    %566 = vmatprep.subr.mxu0 0.0
    %567 = vmatpush1.msra.mxu0 0.0
    %568 = vmatprep.subr.mxu0 0.0
    %569 = vmatpush1.msra.mxu0 0.0
    %570 = vmatprep.subr.mxu0 0.0
    %571 = vmatpush1.msra.mxu0 0.0
    %572 = vmatprep.subr.mxu0 0.0
    %573 = vmatpush1.msra.mxu0 0.0
    %574 = vmatprep.subr.mxu0 0.0
    %575 = vmatpush1.msra.mxu0 0.0
    %576 = vmatprep.mubr.f32.mxu0 0.0
    %v577 = vand.u32 %v494, 4294901760
    %v578 = vsub.f32 %v494, %v577
    %v579 = vand.u32 %v578, 4294901760
    %v580 = vsub.f32 %v578, %v579
    %v581 = vand.u32 %v580, 4294901760
    %582 = vmatmul.mubr.f32.gmra.mrb[0].mxu0 %v581
    %v583 = vpop.f32.mrb[0].mxu0
    %v584 = vadd.f32 0.0, %v583
    %v585 = vpop.f32.mrb[0].mxu0
    %586 = vmatprep.mubr.f32.mxu0 0.0
    %v587 = vand.u32 %v495, 4294901760
    %v588 = vsub.f32 %v495, %v587
    %v589 = vand.u32 %v588, 4294901760
    %v590 = vsub.f32 %v588, %v589
    %v591 = vand.u32 %v590, 4294901760
    %592 = vmatmul.mubr.f32.gmra.mrb[0].mxu0 %v591
    %v593 = vpop.f32.mrb[0].mxu0
    %v594 = vadd.f32 0.0, %v593
    %v595 = vpop.f32.mrb[0].mxu0
    %596 = vdwg.mxu0
    %597 = vmatprep.subr.mxu0 0.0
    %v598 = vand.u32 %v63, 4294901760
    %v599 = vsub.f32 %v63, %v598
    %v600 = vand.u32 %v599, 4294901760
    %v601 = vsub.f32 %v599, %v600
    %v602 = vand.u32 %v601, 4294901760
    %603 = vmatpush1.msra.mxu0 %v602
    %604 = vmatprep.subr.mxu0 0.0
    %v605 = vand.u32 %v64, 4294901760
    %v606 = vsub.f32 %v64, %v605
    %v607 = vand.u32 %v606, 4294901760
    %v608 = vsub.f32 %v606, %v607
    %v609 = vand.u32 %v608, 4294901760
    %610 = vmatpush1.msra.mxu0 %v609
    %611 = vmatprep.subr.mxu0 0.0
    %v612 = vand.u32 %v65, 4294901760
    %v613 = vsub.f32 %v65, %v612
    %v614 = vand.u32 %v613, 4294901760
    %v615 = vsub.f32 %v613, %v614
    %v616 = vand.u32 %v615, 4294901760
    %617 = vmatpush1.msra.mxu0 %v616
    %618 = vmatprep.subr.mxu0 0.0
    %v619 = vand.u32 %v66, 4294901760
    %v620 = vsub.f32 %v66, %v619
    %v621 = vand.u32 %v620, 4294901760
    %v622 = vsub.f32 %v620, %v621
    %v623 = vand.u32 %v622, 4294901760
    %624 = vmatpush1.msra.mxu0 %v623
    %625 = vmatprep.subr.mxu0 0.0
    %v626 = vand.u32 %v67, 4294901760
    %v627 = vsub.f32 %v67, %v626
    %v628 = vand.u32 %v627, 4294901760
    %v629 = vsub.f32 %v627, %v628
    %v630 = vand.u32 %v629, 4294901760
    %631 = vmatpush1.msra.mxu0 %v630
    %632 = vmatprep.subr.mxu0 0.0
    %v633 = vand.u32 %v68, 4294901760
    %v634 = vsub.f32 %v68, %v633
    %v635 = vand.u32 %v634, 4294901760
    %v636 = vsub.f32 %v634, %v635
    %v637 = vand.u32 %v636, 4294901760
    %638 = vmatpush1.msra.mxu0 %v637
    %639 = vmatprep.subr.mxu0 0.0
    %v640 = vand.u32 %v69, 4294901760
    %v641 = vsub.f32 %v69, %v640
    %v642 = vand.u32 %v641, 4294901760
    %v643 = vsub.f32 %v641, %v642
    %v644 = vand.u32 %v643, 4294901760
    %645 = vmatpush1.msra.mxu0 %v644
    %646 = vmatprep.subr.mxu0 0.0
    %v647 = vand.u32 %v70, 4294901760
    %v648 = vsub.f32 %v70, %v647
    %v649 = vand.u32 %v648, 4294901760
    %v650 = vsub.f32 %v648, %v649
    %v651 = vand.u32 %v650, 4294901760
    %652 = vmatpush1.msra.mxu0 %v651
    %653 = vmatprep.subr.mxu0 0.0
    %v654 = vand.u32 %v71, 4294901760
    %v655 = vsub.f32 %v71, %v654
    %v656 = vand.u32 %v655, 4294901760
    %v657 = vsub.f32 %v655, %v656
    %v658 = vand.u32 %v657, 4294901760
    %659 = vmatpush1.msra.mxu0 %v658
    %660 = vmatprep.subr.mxu0 0.0
    %v661 = vand.u32 %v72, 4294901760
    %v662 = vsub.f32 %v72, %v661
    %v663 = vand.u32 %v662, 4294901760
    %v664 = vsub.f32 %v662, %v663
    %v665 = vand.u32 %v664, 4294901760
    %666 = vmatpush1.msra.mxu0 %v665
    %667 = vmatprep.subr.mxu0 0.0
    %v668 = vand.u32 %v73, 4294901760
    %v669 = vsub.f32 %v73, %v668
    %v670 = vand.u32 %v669, 4294901760
    %v671 = vsub.f32 %v669, %v670
    %v672 = vand.u32 %v671, 4294901760
    %673 = vmatpush1.msra.mxu0 %v672
    %674 = vmatprep.subr.mxu0 0.0
    %v675 = vand.u32 %v74, 4294901760
    %v676 = vsub.f32 %v74, %v675
    %v677 = vand.u32 %v676, 4294901760
    %v678 = vsub.f32 %v676, %v677
    %v679 = vand.u32 %v678, 4294901760
    %680 = vmatpush1.msra.mxu0 %v679
    %681 = vmatprep.subr.mxu0 0.0
    %v682 = vand.u32 %v75, 4294901760
    %v683 = vsub.f32 %v75, %v682
    %v684 = vand.u32 %v683, 4294901760
    %v685 = vsub.f32 %v683, %v684
    %v686 = vand.u32 %v685, 4294901760
    %687 = vmatpush1.msra.mxu0 %v686
    %688 = vmatprep.subr.mxu0 0.0
    %v689 = vand.u32 %v76, 4294901760
    %v690 = vsub.f32 %v76, %v689
    %v691 = vand.u32 %v690, 4294901760
    %v692 = vsub.f32 %v690, %v691
    %v693 = vand.u32 %v692, 4294901760
    %694 = vmatpush1.msra.mxu0 %v693
    %695 = vmatprep.subr.mxu0 0.0
    %v696 = vand.u32 %v77, 4294901760
    %v697 = vsub.f32 %v77, %v696
    %v698 = vand.u32 %v697, 4294901760
    %v699 = vsub.f32 %v697, %v698
    %v700 = vand.u32 %v699, 4294901760
    %701 = vmatpush1.msra.mxu0 %v700
    %702 = vmatprep.subr.mxu0 0.0
    %v703 = vand.u32 %v78, 4294901760
    %v704 = vsub.f32 %v78, %v703
    %v705 = vand.u32 %v704, 4294901760
    %v706 = vsub.f32 %v704, %v705
    %v707 = vand.u32 %v706, 4294901760
    %708 = vmatpush1.msra.mxu0 %v707
    %709 = vmatprep.subr.mxu0 0.0
    %710 = vmatpush1.msra.mxu0 0.0
    %711 = vmatprep.subr.mxu0 0.0
    %712 = vmatpush1.msra.mxu0 0.0
    %713 = vmatprep.subr.mxu0 0.0
    %714 = vmatpush1.msra.mxu0 0.0
    %715 = vmatprep.subr.mxu0 0.0
    %716 = vmatpush1.msra.mxu0 0.0
    %717 = vmatprep.subr.mxu0 0.0
    %718 = vmatpush1.msra.mxu0 0.0
    %719 = vmatprep.subr.mxu0 0.0
    %720 = vmatpush1.msra.mxu0 0.0
    %721 = vmatprep.subr.mxu0 0.0
    %722 = vmatpush1.msra.mxu0 0.0
    %723 = vmatprep.subr.mxu0 0.0
    %724 = vmatpush1.msra.mxu0 0.0
    %725 = vmatprep.subr.mxu0 0.0
    %726 = vmatpush1.msra.mxu0 0.0
    %727 = vmatprep.subr.mxu0 0.0
    %728 = vmatpush1.msra.mxu0 0.0
    %729 = vmatprep.subr.mxu0 0.0
    %730 = vmatpush1.msra.mxu0 0.0
    %731 = vmatprep.subr.mxu0 0.0
    %732 = vmatpush1.msra.mxu0 0.0
    %733 = vmatprep.subr.mxu0 0.0
    %734 = vmatpush1.msra.mxu0 0.0
    %735 = vmatprep.subr.mxu0 0.0
    %736 = vmatpush1.msra.mxu0 0.0
    %737 = vmatprep.subr.mxu0 0.0
    %738 = vmatpush1.msra.mxu0 0.0
    %739 = vmatprep.subr.mxu0 0.0
    %740 = vmatpush1.msra.mxu0 0.0
    %741 = vmatprep.mubr.f32.mxu0 0.0
    %v742 = vand.u32 %v494, 4294901760
    %743 = vmatmul.mubr.f32.gmra.mrb[0].mxu0 %v742
    %v744 = vpop.f32.mrb[0].mxu0
    %v745 = vadd.f32 %v584, %v744
    %v746 = vpop.f32.mrb[0].mxu0
    %747 = vmatprep.mubr.f32.mxu0 0.0
    %v748 = vand.u32 %v495, 4294901760
    %749 = vmatmul.mubr.f32.gmra.mrb[0].mxu0 %v748
    %v750 = vpop.f32.mrb[0].mxu0
    %v751 = vadd.f32 %v594, %v750
    %v752 = vpop.f32.mrb[0].mxu0
    %753 = vdwg.mxu0
    %754 = vmatprep.subr.mxu0 0.0
    %v755 = vand.u32 %v63, 4294901760
    %v756 = vsub.f32 %v63, %v755
    %757 = vmatpush1.msra.mxu0 %v756
    %758 = vmatprep.subr.mxu0 0.0
    %v759 = vand.u32 %v64, 4294901760
    %v760 = vsub.f32 %v64, %v759
    %761 = vmatpush1.msra.mxu0 %v760
    %762 = vmatprep.subr.mxu0 0.0
    %v763 = vand.u32 %v65, 4294901760
    %v764 = vsub.f32 %v65, %v763
    %765 = vmatpush1.msra.mxu0 %v764
    %766 = vmatprep.subr.mxu0 0.0
    %v767 = vand.u32 %v66, 4294901760
    %v768 = vsub.f32 %v66, %v767
    %769 = vmatpush1.msra.mxu0 %v768
    %770 = vmatprep.subr.mxu0 0.0
    %v771 = vand.u32 %v67, 4294901760
    %v772 = vsub.f32 %v67, %v771
    %773 = vmatpush1.msra.mxu0 %v772
    %774 = vmatprep.subr.mxu0 0.0
    %v775 = vand.u32 %v68, 4294901760
    %v776 = vsub.f32 %v68, %v775
    %777 = vmatpush1.msra.mxu0 %v776
    %778 = vmatprep.subr.mxu0 0.0
    %v779 = vand.u32 %v69, 4294901760
    %v780 = vsub.f32 %v69, %v779
    %781 = vmatpush1.msra.mxu0 %v780
    %782 = vmatprep.subr.mxu0 0.0
    %v783 = vand.u32 %v70, 4294901760
    %v784 = vsub.f32 %v70, %v783
    %785 = vmatpush1.msra.mxu0 %v784
    %786 = vmatprep.subr.mxu0 0.0
    %v787 = vand.u32 %v71, 4294901760
    %v788 = vsub.f32 %v71, %v787
    %789 = vmatpush1.msra.mxu0 %v788
    %790 = vmatprep.subr.mxu0 0.0
    %v791 = vand.u32 %v72, 4294901760
    %v792 = vsub.f32 %v72, %v791
    %793 = vmatpush1.msra.mxu0 %v792
    %794 = vmatprep.subr.mxu0 0.0
    %v795 = vand.u32 %v73, 4294901760
    %v796 = vsub.f32 %v73, %v795
    %797 = vmatpush1.msra.mxu0 %v796
    %798 = vmatprep.subr.mxu0 0.0
    %v799 = vand.u32 %v74, 4294901760
    %v800 = vsub.f32 %v74, %v799
    %801 = vmatpush1.msra.mxu0 %v800
    %802 = vmatprep.subr.mxu0 0.0
    %v803 = vand.u32 %v75, 4294901760
    %v804 = vsub.f32 %v75, %v803
    %805 = vmatpush1.msra.mxu0 %v804
    %806 = vmatprep.subr.mxu0 0.0
    %v807 = vand.u32 %v76, 4294901760
    %v808 = vsub.f32 %v76, %v807
    %809 = vmatpush1.msra.mxu0 %v808
    %810 = vmatprep.subr.mxu0 0.0
    %v811 = vand.u32 %v77, 4294901760
    %v812 = vsub.f32 %v77, %v811
    %813 = vmatpush1.msra.mxu0 %v812
    %814 = vmatprep.subr.mxu0 0.0
    %v815 = vand.u32 %v78, 4294901760
    %v816 = vsub.f32 %v78, %v815
    %817 = vmatpush1.msra.mxu0 %v816
    %818 = vmatprep.subr.mxu0 0.0
    %819 = vmatpush1.msra.mxu0 0.0
    %820 = vmatprep.subr.mxu0 0.0
    %821 = vmatpush1.msra.mxu0 0.0
    %822 = vmatprep.subr.mxu0 0.0
    %823 = vmatpush1.msra.mxu0 0.0
    %824 = vmatprep.subr.mxu0 0.0
    %825 = vmatpush1.msra.mxu0 0.0
    %826 = vmatprep.subr.mxu0 0.0
    %827 = vmatpush1.msra.mxu0 0.0
    %828 = vmatprep.subr.mxu0 0.0
    %829 = vmatpush1.msra.mxu0 0.0
    %830 = vmatprep.subr.mxu0 0.0
    %831 = vmatpush1.msra.mxu0 0.0
    %832 = vmatprep.subr.mxu0 0.0
    %833 = vmatpush1.msra.mxu0 0.0
    %834 = vmatprep.subr.mxu0 0.0
    %835 = vmatpush1.msra.mxu0 0.0
    %836 = vmatprep.subr.mxu0 0.0
    %837 = vmatpush1.msra.mxu0 0.0
    %838 = vmatprep.subr.mxu0 0.0
    %839 = vmatpush1.msra.mxu0 0.0
    %840 = vmatprep.subr.mxu0 0.0
    %841 = vmatpush1.msra.mxu0 0.0
    %842 = vmatprep.subr.mxu0 0.0
    %843 = vmatpush1.msra.mxu0 0.0
    %844 = vmatprep.subr.mxu0 0.0
    %845 = vmatpush1.msra.mxu0 0.0
    %846 = vmatprep.subr.mxu0 0.0
    %847 = vmatpush1.msra.mxu0 0.0
    %848 = vmatprep.subr.mxu0 0.0
    %849 = vmatpush1.msra.mxu0 0.0
    %850 = vmatprep.mubr.f32.mxu0 0.0
    %v851 = vand.u32 %v494, 4294901760
    %v852 = vsub.f32 %v494, %v851
    %853 = vmatmul.mubr.f32.gmra.mrb[0].mxu0 %v852
    %v854 = vpop.f32.mrb[0].mxu0
    %v855 = vadd.f32 %v745, %v854
    %v856 = vpop.f32.mrb[0].mxu0
    %857 = vmatprep.mubr.f32.mxu0 0.0
    %v858 = vand.u32 %v495, 4294901760
    %v859 = vsub.f32 %v495, %v858
    %860 = vmatmul.mubr.f32.gmra.mrb[0].mxu0 %v859
    %v861 = vpop.f32.mrb[0].mxu0
    %v862 = vadd.f32 %v751, %v861
    %v863 = vpop.f32.mrb[0].mxu0
    %864 = vdwg.mxu0
    %865 = vmatprep.subr.mxu0 0.0
    %v866 = vand.u32 %v63, 4294901760
    %867 = vmatpush1.msra.mxu0 %v866
    %868 = vmatprep.subr.mxu0 0.0
    %v869 = vand.u32 %v64, 4294901760
    %870 = vmatpush1.msra.mxu0 %v869
    %871 = vmatprep.subr.mxu0 0.0
    %v872 = vand.u32 %v65, 4294901760
    %873 = vmatpush1.msra.mxu0 %v872
    %874 = vmatprep.subr.mxu0 0.0
    %v875 = vand.u32 %v66, 4294901760
    %876 = vmatpush1.msra.mxu0 %v875
    %877 = vmatprep.subr.mxu0 0.0
    %v878 = vand.u32 %v67, 4294901760
    %879 = vmatpush1.msra.mxu0 %v878
    %880 = vmatprep.subr.mxu0 0.0
    %v881 = vand.u32 %v68, 4294901760
    %882 = vmatpush1.msra.mxu0 %v881
    %883 = vmatprep.subr.mxu0 0.0
    %v884 = vand.u32 %v69, 4294901760
    %885 = vmatpush1.msra.mxu0 %v884
    %886 = vmatprep.subr.mxu0 0.0
    %v887 = vand.u32 %v70, 4294901760
    %888 = vmatpush1.msra.mxu0 %v887
    %889 = vmatprep.subr.mxu0 0.0
    %v890 = vand.u32 %v71, 4294901760
    %891 = vmatpush1.msra.mxu0 %v890
    %892 = vmatprep.subr.mxu0 0.0
    %v893 = vand.u32 %v72, 4294901760
    %894 = vmatpush1.msra.mxu0 %v893
    %895 = vmatprep.subr.mxu0 0.0
    %v896 = vand.u32 %v73, 4294901760
    %897 = vmatpush1.msra.mxu0 %v896
    %898 = vmatprep.subr.mxu0 0.0
    %v899 = vand.u32 %v74, 4294901760
    %900 = vmatpush1.msra.mxu0 %v899
    %901 = vmatprep.subr.mxu0 0.0
    %v902 = vand.u32 %v75, 4294901760
    %903 = vmatpush1.msra.mxu0 %v902
    %904 = vmatprep.subr.mxu0 0.0
    %v905 = vand.u32 %v76, 4294901760
    %906 = vmatpush1.msra.mxu0 %v905
    %907 = vmatprep.subr.mxu0 0.0
    %v908 = vand.u32 %v77, 4294901760
    %909 = vmatpush1.msra.mxu0 %v908
    %910 = vmatprep.subr.mxu0 0.0
    %v911 = vand.u32 %v78, 4294901760
    %912 = vmatpush1.msra.mxu0 %v911
    %913 = vmatprep.subr.mxu0 0.0
    %914 = vmatpush1.msra.mxu0 0.0
    %915 = vmatprep.subr.mxu0 0.0
    %916 = vmatpush1.msra.mxu0 0.0
    %917 = vmatprep.subr.mxu0 0.0
    %918 = vmatpush1.msra.mxu0 0.0
    %919 = vmatprep.subr.mxu0 0.0
    %920 = vmatpush1.msra.mxu0 0.0
    %921 = vmatprep.subr.mxu0 0.0
    %922 = vmatpush1.msra.mxu0 0.0
    %923 = vmatprep.subr.mxu0 0.0
    %924 = vmatpush1.msra.mxu0 0.0
    %925 = vmatprep.subr.mxu0 0.0
    %926 = vmatpush1.msra.mxu0 0.0
    %927 = vmatprep.subr.mxu0 0.0
    %928 = vmatpush1.msra.mxu0 0.0
    %929 = vmatprep.subr.mxu0 0.0
    %930 = vmatpush1.msra.mxu0 0.0
    %931 = vmatprep.subr.mxu0 0.0
    %932 = vmatpush1.msra.mxu0 0.0
    %933 = vmatprep.subr.mxu0 0.0
    %934 = vmatpush1.msra.mxu0 0.0
    %935 = vmatprep.subr.mxu0 0.0
    %936 = vmatpush1.msra.mxu0 0.0
    %937 = vmatprep.subr.mxu0 0.0
    %938 = vmatpush1.msra.mxu0 0.0
    %939 = vmatprep.subr.mxu0 0.0
    %940 = vmatpush1.msra.mxu0 0.0
    %941 = vmatprep.subr.mxu0 0.0
    %942 = vmatpush1.msra.mxu0 0.0
    %943 = vmatprep.subr.mxu0 0.0
    %944 = vmatpush1.msra.mxu0 0.0
    %945 = vmatprep.mubr.f32.mxu0 0.0
    %v946 = vand.u32 %v494, 4294901760
    %v947 = vsub.f32 %v494, %v946
    %v948 = vand.u32 %v947, 4294901760
    %949 = vmatmul.mubr.f32.gmra.mrb[0].mxu0 %v948
    %v950 = vpop.f32.mrb[0].mxu0
    %v951 = vadd.f32 %v855, %v950
    %v952 = vpop.f32.mrb[0].mxu0
    %953 = vmatprep.mubr.f32.mxu0 0.0
    %v954 = vand.u32 %v495, 4294901760
    %v955 = vsub.f32 %v495, %v954
    %v956 = vand.u32 %v955, 4294901760
    %957 = vmatmul.mubr.f32.gmra.mrb[0].mxu0 %v956
    %v958 = vpop.f32.mrb[0].mxu0
    %v959 = vadd.f32 %v862, %v958
    %v960 = vpop.f32.mrb[0].mxu0
    %961 = vdwg.mxu0
    %962 = vmatprep.subr.mxu0 0.0
    %v963 = vand.u32 %v63, 4294901760
    %v964 = vsub.f32 %v63, %v963
    %v965 = vand.u32 %v964, 4294901760
    %966 = vmatpush1.msra.mxu0 %v965
    %967 = vmatprep.subr.mxu0 0.0
    %v968 = vand.u32 %v64, 4294901760
    %v969 = vsub.f32 %v64, %v968
    %v970 = vand.u32 %v969, 4294901760
    %971 = vmatpush1.msra.mxu0 %v970
    %972 = vmatprep.subr.mxu0 0.0
    %v973 = vand.u32 %v65, 4294901760
    %v974 = vsub.f32 %v65, %v973
    %v975 = vand.u32 %v974, 4294901760
    %976 = vmatpush1.msra.mxu0 %v975
    %977 = vmatprep.subr.mxu0 0.0
    %v978 = vand.u32 %v66, 4294901760
    %v979 = vsub.f32 %v66, %v978
    %v980 = vand.u32 %v979, 4294901760
    %981 = vmatpush1.msra.mxu0 %v980
    %982 = vmatprep.subr.mxu0 0.0
    %v983 = vand.u32 %v67, 4294901760
    %v984 = vsub.f32 %v67, %v983
    %v985 = vand.u32 %v984, 4294901760
    %986 = vmatpush1.msra.mxu0 %v985
    %987 = vmatprep.subr.mxu0 0.0
    %v988 = vand.u32 %v68, 4294901760
    %v989 = vsub.f32 %v68, %v988
    %v990 = vand.u32 %v989, 4294901760
    %991 = vmatpush1.msra.mxu0 %v990
    %992 = vmatprep.subr.mxu0 0.0
    %v993 = vand.u32 %v69, 4294901760
    %v994 = vsub.f32 %v69, %v993
    %v995 = vand.u32 %v994, 4294901760
    %996 = vmatpush1.msra.mxu0 %v995
    %997 = vmatprep.subr.mxu0 0.0
    %v998 = vand.u32 %v70, 4294901760
    %v999 = vsub.f32 %v70, %v998
    %v1000 = vand.u32 %v999, 4294901760
    %1001 = vmatpush1.msra.mxu0 %v1000
    %1002 = vmatprep.subr.mxu0 0.0
    %v1003 = vand.u32 %v71, 4294901760
    %v1004 = vsub.f32 %v71, %v1003
    %v1005 = vand.u32 %v1004, 4294901760
    %1006 = vmatpush1.msra.mxu0 %v1005
    %1007 = vmatprep.subr.mxu0 0.0
    %v1008 = vand.u32 %v72, 4294901760
    %v1009 = vsub.f32 %v72, %v1008
    %v1010 = vand.u32 %v1009, 4294901760
    %1011 = vmatpush1.msra.mxu0 %v1010
    %1012 = vmatprep.subr.mxu0 0.0
    %v1013 = vand.u32 %v73, 4294901760
    %v1014 = vsub.f32 %v73, %v1013
    %v1015 = vand.u32 %v1014, 4294901760
    %1016 = vmatpush1.msra.mxu0 %v1015
    %1017 = vmatprep.subr.mxu0 0.0
    %v1018 = vand.u32 %v74, 4294901760
    %v1019 = vsub.f32 %v74, %v1018
    %v1020 = vand.u32 %v1019, 4294901760
    %1021 = vmatpush1.msra.mxu0 %v1020
    %1022 = vmatprep.subr.mxu0 0.0
    %v1023 = vand.u32 %v75, 4294901760
    %v1024 = vsub.f32 %v75, %v1023
    %v1025 = vand.u32 %v1024, 4294901760
    %1026 = vmatpush1.msra.mxu0 %v1025
    %1027 = vmatprep.subr.mxu0 0.0
    %v1028 = vand.u32 %v76, 4294901760
    %v1029 = vsub.f32 %v76, %v1028
    %v1030 = vand.u32 %v1029, 4294901760
    %1031 = vmatpush1.msra.mxu0 %v1030
    %1032 = vmatprep.subr.mxu0 0.0
    %v1033 = vand.u32 %v77, 4294901760
    %v1034 = vsub.f32 %v77, %v1033
    %v1035 = vand.u32 %v1034, 4294901760
    %1036 = vmatpush1.msra.mxu0 %v1035
    %1037 = vmatprep.subr.mxu0 0.0
    %v1038 = vand.u32 %v78, 4294901760
    %v1039 = vsub.f32 %v78, %v1038
    %v1040 = vand.u32 %v1039, 4294901760
    %1041 = vmatpush1.msra.mxu0 %v1040
    %1042 = vmatprep.subr.mxu0 0.0
    %1043 = vmatpush1.msra.mxu0 0.0
    %1044 = vmatprep.subr.mxu0 0.0
    %1045 = vmatpush1.msra.mxu0 0.0
    %1046 = vmatprep.subr.mxu0 0.0
    %1047 = vmatpush1.msra.mxu0 0.0
    %1048 = vmatprep.subr.mxu0 0.0
    %1049 = vmatpush1.msra.mxu0 0.0
    %1050 = vmatprep.subr.mxu0 0.0
    %1051 = vmatpush1.msra.mxu0 0.0
    %1052 = vmatprep.subr.mxu0 0.0
    %1053 = vmatpush1.msra.mxu0 0.0
    %1054 = vmatprep.subr.mxu0 0.0
    %1055 = vmatpush1.msra.mxu0 0.0
    %1056 = vmatprep.subr.mxu0 0.0
    %1057 = vmatpush1.msra.mxu0 0.0
    %1058 = vmatprep.subr.mxu0 0.0
    %1059 = vmatpush1.msra.mxu0 0.0
    %1060 = vmatprep.subr.mxu0 0.0
    %1061 = vmatpush1.msra.mxu0 0.0
    %1062 = vmatprep.subr.mxu0 0.0
    %1063 = vmatpush1.msra.mxu0 0.0
    %1064 = vmatprep.subr.mxu0 0.0
    %1065 = vmatpush1.msra.mxu0 0.0
    %1066 = vmatprep.subr.mxu0 0.0
    %1067 = vmatpush1.msra.mxu0 0.0
    %1068 = vmatprep.subr.mxu0 0.0
    %1069 = vmatpush1.msra.mxu0 0.0
    %1070 = vmatprep.subr.mxu0 0.0
    %1071 = vmatpush1.msra.mxu0 0.0
    %1072 = vmatprep.subr.mxu0 0.0
    %1073 = vmatpush1.msra.mxu0 0.0
    %1074 = vmatprep.mubr.f32.mxu0 0.0
    %v1075 = vand.u32 %v494, 4294901760
    %1076 = vmatmul.mubr.f32.gmra.mrb[0].mxu0 %v1075
    %v1077 = vpop.f32.mrb[0].mxu0
    %v1078 = vadd.f32 %v951, %v1077
    %v1079 = vpop.f32.mrb[0].mxu0
    %1080 = vmatprep.mubr.f32.mxu0 0.0
    %v1081 = vand.u32 %v495, 4294901760
    %1082 = vmatmul.mubr.f32.gmra.mrb[0].mxu0 %v1081
    %v1083 = vpop.f32.mrb[0].mxu0
    %v1084 = vadd.f32 %v959, %v1083
    %v1085 = vpop.f32.mrb[0].mxu0
    %1086 = vdwg.mxu0
    %1087 = vmatprep.subr.mxu0 0.0
    %v1088 = vand.u32 %v63, 4294901760
    %1089 = vmatpush1.msra.mxu0 %v1088
    %1090 = vmatprep.subr.mxu0 0.0
    %v1091 = vand.u32 %v64, 4294901760
    %1092 = vmatpush1.msra.mxu0 %v1091
    %1093 = vmatprep.subr.mxu0 0.0
    %v1094 = vand.u32 %v65, 4294901760
    %1095 = vmatpush1.msra.mxu0 %v1094
    %1096 = vmatprep.subr.mxu0 0.0
    %v1097 = vand.u32 %v66, 4294901760
    %1098 = vmatpush1.msra.mxu0 %v1097
    %1099 = vmatprep.subr.mxu0 0.0
    %v1100 = vand.u32 %v67, 4294901760
    %1101 = vmatpush1.msra.mxu0 %v1100
    %1102 = vmatprep.subr.mxu0 0.0
    %v1103 = vand.u32 %v68, 4294901760
    %1104 = vmatpush1.msra.mxu0 %v1103
    %1105 = vmatprep.subr.mxu0 0.0
    %v1106 = vand.u32 %v69, 4294901760
    %1107 = vmatpush1.msra.mxu0 %v1106
    %1108 = vmatprep.subr.mxu0 0.0
    %v1109 = vand.u32 %v70, 4294901760
    %1110 = vmatpush1.msra.mxu0 %v1109
    %1111 = vmatprep.subr.mxu0 0.0
    %v1112 = vand.u32 %v71, 4294901760
    %1113 = vmatpush1.msra.mxu0 %v1112
    %1114 = vmatprep.subr.mxu0 0.0
    %v1115 = vand.u32 %v72, 4294901760
    %1116 = vmatpush1.msra.mxu0 %v1115
    %1117 = vmatprep.subr.mxu0 0.0
    %v1118 = vand.u32 %v73, 4294901760
    %1119 = vmatpush1.msra.mxu0 %v1118
    %1120 = vmatprep.subr.mxu0 0.0
    %v1121 = vand.u32 %v74, 4294901760
    %1122 = vmatpush1.msra.mxu0 %v1121
    %1123 = vmatprep.subr.mxu0 0.0
    %v1124 = vand.u32 %v75, 4294901760
    %1125 = vmatpush1.msra.mxu0 %v1124
    %1126 = vmatprep.subr.mxu0 0.0
    %v1127 = vand.u32 %v76, 4294901760
    %1128 = vmatpush1.msra.mxu0 %v1127
    %1129 = vmatprep.subr.mxu0 0.0
    %v1130 = vand.u32 %v77, 4294901760
    %1131 = vmatpush1.msra.mxu0 %v1130
    %1132 = vmatprep.subr.mxu0 0.0
    %v1133 = vand.u32 %v78, 4294901760
    %1134 = vmatpush1.msra.mxu0 %v1133
    %1135 = vmatprep.subr.mxu0 0.0
    %1136 = vmatpush1.msra.mxu0 0.0
    %1137 = vmatprep.subr.mxu0 0.0
    %1138 = vmatpush1.msra.mxu0 0.0
    %1139 = vmatprep.subr.mxu0 0.0
    %1140 = vmatpush1.msra.mxu0 0.0
    %1141 = vmatprep.subr.mxu0 0.0
    %1142 = vmatpush1.msra.mxu0 0.0
    %1143 = vmatprep.subr.mxu0 0.0
    %1144 = vmatpush1.msra.mxu0 0.0
    %1145 = vmatprep.subr.mxu0 0.0
    %1146 = vmatpush1.msra.mxu0 0.0
    %1147 = vmatprep.subr.mxu0 0.0
    %1148 = vmatpush1.msra.mxu0 0.0
    %1149 = vmatprep.subr.mxu0 0.0
    %1150 = vmatpush1.msra.mxu0 0.0
    %1151 = vmatprep.subr.mxu0 0.0
    %1152 = vmatpush1.msra.mxu0 0.0
    %1153 = vmatprep.subr.mxu0 0.0
    %1154 = vmatpush1.msra.mxu0 0.0
    %1155 = vmatprep.subr.mxu0 0.0
    %1156 = vmatpush1.msra.mxu0 0.0
    %1157 = vmatprep.subr.mxu0 0.0
    %1158 = vmatpush1.msra.mxu0 0.0
    %1159 = vmatprep.subr.mxu0 0.0
    %1160 = vmatpush1.msra.mxu0 0.0
    %1161 = vmatprep.subr.mxu0 0.0
    %1162 = vmatpush1.msra.mxu0 0.0
    %1163 = vmatprep.subr.mxu0 0.0
    %1164 = vmatpush1.msra.mxu0 0.0
    %1165 = vmatprep.subr.mxu0 0.0
    %1166 = vmatpush1.msra.mxu0 0.0
    %1167 = vmatprep.mubr.f32.mxu0 0.0
    %v1168 = vand.u32 %v494, 4294901760
    %1169 = vmatmul.mubr.f32.gmra.mrb[0].mxu0 %v1168
    %v1170 = vpop.f32.mrb[0].mxu0
    %v1171 = vadd.f32 %v1078, %v1170
    %v1172 = vpop.f32.mrb[0].mxu0
    %1173 = vmatprep.mubr.f32.mxu0 0.0
    %v1174 = vand.u32 %v495, 4294901760
    %1175 = vmatmul.mubr.f32.gmra.mrb[0].mxu0 %v1174
    %v1176 = vpop.f32.mrb[0].mxu0
    %v1177 = vadd.f32 %v1084, %v1176
    %v1178 = vpop.f32.mrb[0].mxu0
    %1179 = vdwg.mxu0
    %vm1180 = vcmask 64512
    %v1181 = vsel %vm1180, %v1171, 0.0
    %v1182 = vsel %vm1180, %v1177, 0.0
    %v1183 = vadd.f32 %v1181, %v1182
    %v1184 = vrot.slane %v1183, 4
    %v1185 = vadd.f32 %v1183, %v1184
    %v1186 = vrot.slane %v1185, 2
    %v1187 = vadd.f32 %v1185, %v1186
    %v1188 = vrot.slane %v1187, 1
    %v1189 = vadd.f32 %v1187, %v1188
    %v1191 = vsel %vm1180, %v1189, 0
    %1193 = vmatprep.subr.mxu0 0.0
    %v1194 = vand.u32 %v79, 4294901760
    %1195 = vmatpush1.msra.mxu0 %v1194
    %1196 = vmatprep.subr.mxu0 0.0
    %1197 = vmatpush1.msra.mxu0 0.0
    %1198 = vmatprep.subr.mxu0 0.0
    %1199 = vmatpush1.msra.mxu0 0.0
    %1200 = vmatprep.subr.mxu0 0.0
    %1201 = vmatpush1.msra.mxu0 0.0
    %1202 = vmatprep.subr.mxu0 0.0
    %1203 = vmatpush1.msra.mxu0 0.0
    %1204 = vmatprep.subr.mxu0 0.0
    %1205 = vmatpush1.msra.mxu0 0.0
    %1206 = vmatprep.subr.mxu0 0.0
    %1207 = vmatpush1.msra.mxu0 0.0
    %1208 = vmatprep.subr.mxu0 0.0
    %1209 = vmatpush1.msra.mxu0 0.0
    %1210 = vmatprep.subr.mxu0 0.0
    %1211 = vmatpush1.msra.mxu0 0.0
    %1212 = vmatprep.subr.mxu0 0.0
    %1213 = vmatpush1.msra.mxu0 0.0
    %1214 = vmatprep.subr.mxu0 0.0
    %1215 = vmatpush1.msra.mxu0 0.0
    %1216 = vmatprep.subr.mxu0 0.0
    %1217 = vmatpush1.msra.mxu0 0.0
    %1218 = vmatprep.subr.mxu0 0.0
    %1219 = vmatpush1.msra.mxu0 0.0
    %1220 = vmatprep.subr.mxu0 0.0
    %1221 = vmatpush1.msra.mxu0 0.0
    %1222 = vmatprep.subr.mxu0 0.0
    %1223 = vmatpush1.msra.mxu0 0.0
    %1224 = vmatprep.subr.mxu0 0.0
    %1225 = vmatpush1.msra.mxu0 0.0
    %1226 = vmatprep.subr.mxu0 0.0
    %1227 = vmatpush1.msra.mxu0 0.0
    %1228 = vmatprep.subr.mxu0 0.0
    %1229 = vmatpush1.msra.mxu0 0.0
    %1230 = vmatprep.subr.mxu0 0.0
    %1231 = vmatpush1.msra.mxu0 0.0
    %1232 = vmatprep.subr.mxu0 0.0
    %1233 = vmatpush1.msra.mxu0 0.0
    %1234 = vmatprep.subr.mxu0 0.0
    %1235 = vmatpush1.msra.mxu0 0.0
    %1236 = vmatprep.subr.mxu0 0.0
    %1237 = vmatpush1.msra.mxu0 0.0
    %1238 = vmatprep.subr.mxu0 0.0
    %1239 = vmatpush1.msra.mxu0 0.0
    %1240 = vmatprep.subr.mxu0 0.0
    %1241 = vmatpush1.msra.mxu0 0.0
    %1242 = vmatprep.subr.mxu0 0.0
    %1243 = vmatpush1.msra.mxu0 0.0
    %1244 = vmatprep.subr.mxu0 0.0
    %1245 = vmatpush1.msra.mxu0 0.0
    %1246 = vmatprep.subr.mxu0 0.0
    %1247 = vmatpush1.msra.mxu0 0.0
    %1248 = vmatprep.subr.mxu0 0.0
    %1249 = vmatpush1.msra.mxu0 0.0
    %1250 = vmatprep.subr.mxu0 0.0
    %1251 = vmatpush1.msra.mxu0 0.0
    %1252 = vmatprep.subr.mxu0 0.0
    %1253 = vmatpush1.msra.mxu0 0.0
    %1254 = vmatprep.subr.mxu0 0.0
    %1255 = vmatpush1.msra.mxu0 0.0
    %1256 = vmatprep.subr.mxu0 0.0
    %1257 = vmatpush1.msra.mxu0 0.0
    %1258 = vmatprep.mubr.f32.mxu0 0.0
    %v1259 = vand.u32 %v1191, 4294901760
    %v1260 = vsub.f32 %v1191, %v1259
    %v1261 = vand.u32 %v1260, 4294901760
    %v1262 = vsub.f32 %v1260, %v1261
    %v1263 = vand.u32 %v1262, 4294901760
    %1264 = vmatmul.mubr.f32.gmra.mrb[0].mxu0 %v1263
    %v1265 = vpop.f32.mrb[0].mxu0
    %v1266 = vadd.f32 0.0, %v1265
    %v1267 = vpop.f32.mrb[0].mxu0
    %1268 = vmatprep.mubr.f32.mxu0 0.0
    %v1269 = vand.u32 %v1191, 4294901760
    %v1270 = vsub.f32 %v1191, %v1269
    %v1271 = vand.u32 %v1270, 4294901760
    %v1272 = vsub.f32 %v1270, %v1271
    %v1273 = vand.u32 %v1272, 4294901760
    %1274 = vmatmul.mubr.f32.gmra.mrb[0].mxu0 %v1273
    %v1275 = vpop.f32.mrb[0].mxu0
    %v1276 = vadd.f32 0.0, %v1275
    %v1277 = vpop.f32.mrb[0].mxu0
    %1278 = vdwg.mxu0
    %1279 = vmatprep.subr.mxu0 0.0
    %v1280 = vand.u32 %v79, 4294901760
    %v1281 = vsub.f32 %v79, %v1280
    %v1282 = vand.u32 %v1281, 4294901760
    %v1283 = vsub.f32 %v1281, %v1282
    %v1284 = vand.u32 %v1283, 4294901760
    %1285 = vmatpush1.msra.mxu0 %v1284
    %1286 = vmatprep.subr.mxu0 0.0
    %1287 = vmatpush1.msra.mxu0 0.0
    %1288 = vmatprep.subr.mxu0 0.0
    %1289 = vmatpush1.msra.mxu0 0.0
    %1290 = vmatprep.subr.mxu0 0.0
    %1291 = vmatpush1.msra.mxu0 0.0
    %1292 = vmatprep.subr.mxu0 0.0
    %1293 = vmatpush1.msra.mxu0 0.0
    %1294 = vmatprep.subr.mxu0 0.0
    %1295 = vmatpush1.msra.mxu0 0.0
    %1296 = vmatprep.subr.mxu0 0.0
    %1297 = vmatpush1.msra.mxu0 0.0
    %1298 = vmatprep.subr.mxu0 0.0
    %1299 = vmatpush1.msra.mxu0 0.0
    %1300 = vmatprep.subr.mxu0 0.0
    %1301 = vmatpush1.msra.mxu0 0.0
    %1302 = vmatprep.subr.mxu0 0.0
    %1303 = vmatpush1.msra.mxu0 0.0
    %1304 = vmatprep.subr.mxu0 0.0
    %1305 = vmatpush1.msra.mxu0 0.0
    %1306 = vmatprep.subr.mxu0 0.0
    %1307 = vmatpush1.msra.mxu0 0.0
    %1308 = vmatprep.subr.mxu0 0.0
    %1309 = vmatpush1.msra.mxu0 0.0
    %1310 = vmatprep.subr.mxu0 0.0
    %1311 = vmatpush1.msra.mxu0 0.0
    %1312 = vmatprep.subr.mxu0 0.0
    %1313 = vmatpush1.msra.mxu0 0.0
    %1314 = vmatprep.subr.mxu0 0.0
    %1315 = vmatpush1.msra.mxu0 0.0
    %1316 = vmatprep.subr.mxu0 0.0
    %1317 = vmatpush1.msra.mxu0 0.0
    %1318 = vmatprep.subr.mxu0 0.0
    %1319 = vmatpush1.msra.mxu0 0.0
    %1320 = vmatprep.subr.mxu0 0.0
    %1321 = vmatpush1.msra.mxu0 0.0
    %1322 = vmatprep.subr.mxu0 0.0
    %1323 = vmatpush1.msra.mxu0 0.0
    %1324 = vmatprep.subr.mxu0 0.0
    %1325 = vmatpush1.msra.mxu0 0.0
    %1326 = vmatprep.subr.mxu0 0.0
    %1327 = vmatpush1.msra.mxu0 0.0
    %1328 = vmatprep.subr.mxu0 0.0
    %1329 = vmatpush1.msra.mxu0 0.0
    %1330 = vmatprep.subr.mxu0 0.0
    %1331 = vmatpush1.msra.mxu0 0.0
    %1332 = vmatprep.subr.mxu0 0.0
    %1333 = vmatpush1.msra.mxu0 0.0
    %1334 = vmatprep.subr.mxu0 0.0
    %1335 = vmatpush1.msra.mxu0 0.0
    %1336 = vmatprep.subr.mxu0 0.0
    %1337 = vmatpush1.msra.mxu0 0.0
    %1338 = vmatprep.subr.mxu0 0.0
    %1339 = vmatpush1.msra.mxu0 0.0
    %1340 = vmatprep.subr.mxu0 0.0
    %1341 = vmatpush1.msra.mxu0 0.0
    %1342 = vmatprep.subr.mxu0 0.0
    %1343 = vmatpush1.msra.mxu0 0.0
    %1344 = vmatprep.subr.mxu0 0.0
    %1345 = vmatpush1.msra.mxu0 0.0
    %1346 = vmatprep.subr.mxu0 0.0
    %1347 = vmatpush1.msra.mxu0 0.0
    %1348 = vmatprep.mubr.f32.mxu0 0.0
    %v1349 = vand.u32 %v1191, 4294901760
    %1350 = vmatmul.mubr.f32.gmra.mrb[0].mxu0 %v1349
    %v1351 = vpop.f32.mrb[0].mxu0
    %v1352 = vadd.f32 %v1266, %v1351
    %v1353 = vpop.f32.mrb[0].mxu0
    %1354 = vmatprep.mubr.f32.mxu0 0.0
    %v1355 = vand.u32 %v1191, 4294901760
    %1356 = vmatmul.mubr.f32.gmra.mrb[0].mxu0 %v1355
    %v1357 = vpop.f32.mrb[0].mxu0
    %v1358 = vadd.f32 %v1276, %v1357
    %v1359 = vpop.f32.mrb[0].mxu0
    %1360 = vdwg.mxu0
    %1361 = vmatprep.subr.mxu0 0.0
    %v1362 = vand.u32 %v79, 4294901760
    %v1363 = vsub.f32 %v79, %v1362
    %1364 = vmatpush1.msra.mxu0 %v1363
    %1365 = vmatprep.subr.mxu0 0.0
    %1366 = vmatpush1.msra.mxu0 0.0
    %1367 = vmatprep.subr.mxu0 0.0
    %1368 = vmatpush1.msra.mxu0 0.0
    %1369 = vmatprep.subr.mxu0 0.0
    %1370 = vmatpush1.msra.mxu0 0.0
    %1371 = vmatprep.subr.mxu0 0.0
    %1372 = vmatpush1.msra.mxu0 0.0
    %1373 = vmatprep.subr.mxu0 0.0
    %1374 = vmatpush1.msra.mxu0 0.0
    %1375 = vmatprep.subr.mxu0 0.0
    %1376 = vmatpush1.msra.mxu0 0.0
    %1377 = vmatprep.subr.mxu0 0.0
    %1378 = vmatpush1.msra.mxu0 0.0
    %1379 = vmatprep.subr.mxu0 0.0
    %1380 = vmatpush1.msra.mxu0 0.0
    %1381 = vmatprep.subr.mxu0 0.0
    %1382 = vmatpush1.msra.mxu0 0.0
    %1383 = vmatprep.subr.mxu0 0.0
    %1384 = vmatpush1.msra.mxu0 0.0
    %1385 = vmatprep.subr.mxu0 0.0
    %1386 = vmatpush1.msra.mxu0 0.0
    %1387 = vmatprep.subr.mxu0 0.0
    %1388 = vmatpush1.msra.mxu0 0.0
    %1389 = vmatprep.subr.mxu0 0.0
    %1390 = vmatpush1.msra.mxu0 0.0
    %1391 = vmatprep.subr.mxu0 0.0
    %1392 = vmatpush1.msra.mxu0 0.0
    %1393 = vmatprep.subr.mxu0 0.0
    %1394 = vmatpush1.msra.mxu0 0.0
    %1395 = vmatprep.subr.mxu0 0.0
    %1396 = vmatpush1.msra.mxu0 0.0
    %1397 = vmatprep.subr.mxu0 0.0
    %1398 = vmatpush1.msra.mxu0 0.0
    %1399 = vmatprep.subr.mxu0 0.0
    %1400 = vmatpush1.msra.mxu0 0.0
    %1401 = vmatprep.subr.mxu0 0.0
    %1402 = vmatpush1.msra.mxu0 0.0
    %1403 = vmatprep.subr.mxu0 0.0
    %1404 = vmatpush1.msra.mxu0 0.0
    %1405 = vmatprep.subr.mxu0 0.0
    %1406 = vmatpush1.msra.mxu0 0.0
    %1407 = vmatprep.subr.mxu0 0.0
    %1408 = vmatpush1.msra.mxu0 0.0
    %1409 = vmatprep.subr.mxu0 0.0
    %1410 = vmatpush1.msra.mxu0 0.0
    %1411 = vmatprep.subr.mxu0 0.0
    %1412 = vmatpush1.msra.mxu0 0.0
    %1413 = vmatprep.subr.mxu0 0.0
    %1414 = vmatpush1.msra.mxu0 0.0
    %1415 = vmatprep.subr.mxu0 0.0
    %1416 = vmatpush1.msra.mxu0 0.0
    %1417 = vmatprep.subr.mxu0 0.0
    %1418 = vmatpush1.msra.mxu0 0.0
    %1419 = vmatprep.subr.mxu0 0.0
    %1420 = vmatpush1.msra.mxu0 0.0
    %1421 = vmatprep.subr.mxu0 0.0
    %1422 = vmatpush1.msra.mxu0 0.0
    %1423 = vmatprep.subr.mxu0 0.0
    %1424 = vmatpush1.msra.mxu0 0.0
    %1425 = vmatprep.subr.mxu0 0.0
    %1426 = vmatpush1.msra.mxu0 0.0
    %1427 = vmatprep.mubr.f32.mxu0 0.0
    %v1428 = vand.u32 %v1191, 4294901760
    %v1429 = vsub.f32 %v1191, %v1428
    %1430 = vmatmul.mubr.f32.gmra.mrb[0].mxu0 %v1429
    %v1431 = vpop.f32.mrb[0].mxu0
    %v1432 = vadd.f32 %v1352, %v1431
    %v1433 = vpop.f32.mrb[0].mxu0
    %1434 = vmatprep.mubr.f32.mxu0 0.0
    %v1435 = vand.u32 %v1191, 4294901760
    %v1436 = vsub.f32 %v1191, %v1435
    %1437 = vmatmul.mubr.f32.gmra.mrb[0].mxu0 %v1436
    %v1438 = vpop.f32.mrb[0].mxu0
    %v1439 = vadd.f32 %v1358, %v1438
    %v1440 = vpop.f32.mrb[0].mxu0
    %1441 = vdwg.mxu0
    %1442 = vmatprep.subr.mxu0 0.0
    %v1443 = vand.u32 %v79, 4294901760
    %1444 = vmatpush1.msra.mxu0 %v1443
    %1445 = vmatprep.subr.mxu0 0.0
    %1446 = vmatpush1.msra.mxu0 0.0
    %1447 = vmatprep.subr.mxu0 0.0
    %1448 = vmatpush1.msra.mxu0 0.0
    %1449 = vmatprep.subr.mxu0 0.0
    %1450 = vmatpush1.msra.mxu0 0.0
    %1451 = vmatprep.subr.mxu0 0.0
    %1452 = vmatpush1.msra.mxu0 0.0
    %1453 = vmatprep.subr.mxu0 0.0
    %1454 = vmatpush1.msra.mxu0 0.0
    %1455 = vmatprep.subr.mxu0 0.0
    %1456 = vmatpush1.msra.mxu0 0.0
    %1457 = vmatprep.subr.mxu0 0.0
    %1458 = vmatpush1.msra.mxu0 0.0
    %1459 = vmatprep.subr.mxu0 0.0
    %1460 = vmatpush1.msra.mxu0 0.0
    %1461 = vmatprep.subr.mxu0 0.0
    %1462 = vmatpush1.msra.mxu0 0.0
    %1463 = vmatprep.subr.mxu0 0.0
    %1464 = vmatpush1.msra.mxu0 0.0
    %1465 = vmatprep.subr.mxu0 0.0
    %1466 = vmatpush1.msra.mxu0 0.0
    %1467 = vmatprep.subr.mxu0 0.0
    %1468 = vmatpush1.msra.mxu0 0.0
    %1469 = vmatprep.subr.mxu0 0.0
    %1470 = vmatpush1.msra.mxu0 0.0
    %1471 = vmatprep.subr.mxu0 0.0
    %1472 = vmatpush1.msra.mxu0 0.0
    %1473 = vmatprep.subr.mxu0 0.0
    %1474 = vmatpush1.msra.mxu0 0.0
    %1475 = vmatprep.subr.mxu0 0.0
    %1476 = vmatpush1.msra.mxu0 0.0
    %1477 = vmatprep.subr.mxu0 0.0
    %1478 = vmatpush1.msra.mxu0 0.0
    %1479 = vmatprep.subr.mxu0 0.0
    %1480 = vmatpush1.msra.mxu0 0.0
    %1481 = vmatprep.subr.mxu0 0.0
    %1482 = vmatpush1.msra.mxu0 0.0
    %1483 = vmatprep.subr.mxu0 0.0
    %1484 = vmatpush1.msra.mxu0 0.0
    %1485 = vmatprep.subr.mxu0 0.0
    %1486 = vmatpush1.msra.mxu0 0.0
    %1487 = vmatprep.subr.mxu0 0.0
    %1488 = vmatpush1.msra.mxu0 0.0
    %1489 = vmatprep.subr.mxu0 0.0
    %1490 = vmatpush1.msra.mxu0 0.0
    %1491 = vmatprep.subr.mxu0 0.0
    %1492 = vmatpush1.msra.mxu0 0.0
    %1493 = vmatprep.subr.mxu0 0.0
    %1494 = vmatpush1.msra.mxu0 0.0
    %1495 = vmatprep.subr.mxu0 0.0
    %1496 = vmatpush1.msra.mxu0 0.0
    %1497 = vmatprep.subr.mxu0 0.0
    %1498 = vmatpush1.msra.mxu0 0.0
    %1499 = vmatprep.subr.mxu0 0.0
    %1500 = vmatpush1.msra.mxu0 0.0
    %1501 = vmatprep.subr.mxu0 0.0
    %1502 = vmatpush1.msra.mxu0 0.0
    %1503 = vmatprep.subr.mxu0 0.0
    %1504 = vmatpush1.msra.mxu0 0.0
    %1505 = vmatprep.subr.mxu0 0.0
    %1506 = vmatpush1.msra.mxu0 0.0
    %1507 = vmatprep.mubr.f32.mxu0 0.0
    %v1508 = vand.u32 %v1191, 4294901760
    %v1509 = vsub.f32 %v1191, %v1508
    %v1510 = vand.u32 %v1509, 4294901760
    %1511 = vmatmul.mubr.f32.gmra.mrb[0].mxu0 %v1510
    %v1512 = vpop.f32.mrb[0].mxu0
    %v1513 = vadd.f32 %v1432, %v1512
    %v1514 = vpop.f32.mrb[0].mxu0
    %1515 = vmatprep.mubr.f32.mxu0 0.0
    %v1516 = vand.u32 %v1191, 4294901760
    %v1517 = vsub.f32 %v1191, %v1516
    %v1518 = vand.u32 %v1517, 4294901760
    %1519 = vmatmul.mubr.f32.gmra.mrb[0].mxu0 %v1518
    %v1520 = vpop.f32.mrb[0].mxu0
    %v1521 = vadd.f32 %v1439, %v1520
    %v1522 = vpop.f32.mrb[0].mxu0
    %1523 = vdwg.mxu0
    %1524 = vmatprep.subr.mxu0 0.0
    %v1525 = vand.u32 %v79, 4294901760
    %v1526 = vsub.f32 %v79, %v1525
    %v1527 = vand.u32 %v1526, 4294901760
    %1528 = vmatpush1.msra.mxu0 %v1527
    %1529 = vmatprep.subr.mxu0 0.0
    %1530 = vmatpush1.msra.mxu0 0.0
    %1531 = vmatprep.subr.mxu0 0.0
    %1532 = vmatpush1.msra.mxu0 0.0
    %1533 = vmatprep.subr.mxu0 0.0
    %1534 = vmatpush1.msra.mxu0 0.0
    %1535 = vmatprep.subr.mxu0 0.0
    %1536 = vmatpush1.msra.mxu0 0.0
    %1537 = vmatprep.subr.mxu0 0.0
    %1538 = vmatpush1.msra.mxu0 0.0
    %1539 = vmatprep.subr.mxu0 0.0
    %1540 = vmatpush1.msra.mxu0 0.0
    %1541 = vmatprep.subr.mxu0 0.0
    %1542 = vmatpush1.msra.mxu0 0.0
    %1543 = vmatprep.subr.mxu0 0.0
    %1544 = vmatpush1.msra.mxu0 0.0
    %1545 = vmatprep.subr.mxu0 0.0
    %1546 = vmatpush1.msra.mxu0 0.0
    %1547 = vmatprep.subr.mxu0 0.0
    %1548 = vmatpush1.msra.mxu0 0.0
    %1549 = vmatprep.subr.mxu0 0.0
    %1550 = vmatpush1.msra.mxu0 0.0
    %1551 = vmatprep.subr.mxu0 0.0
    %1552 = vmatpush1.msra.mxu0 0.0
    %1553 = vmatprep.subr.mxu0 0.0
    %1554 = vmatpush1.msra.mxu0 0.0
    %1555 = vmatprep.subr.mxu0 0.0
    %1556 = vmatpush1.msra.mxu0 0.0
    %1557 = vmatprep.subr.mxu0 0.0
    %1558 = vmatpush1.msra.mxu0 0.0
    %1559 = vmatprep.subr.mxu0 0.0
    %1560 = vmatpush1.msra.mxu0 0.0
    %1561 = vmatprep.subr.mxu0 0.0
    %1562 = vmatpush1.msra.mxu0 0.0
    %1563 = vmatprep.subr.mxu0 0.0
    %1564 = vmatpush1.msra.mxu0 0.0
    %1565 = vmatprep.subr.mxu0 0.0
    %1566 = vmatpush1.msra.mxu0 0.0
    %1567 = vmatprep.subr.mxu0 0.0
    %1568 = vmatpush1.msra.mxu0 0.0
    %1569 = vmatprep.subr.mxu0 0.0
    %1570 = vmatpush1.msra.mxu0 0.0
    %1571 = vmatprep.subr.mxu0 0.0
    %1572 = vmatpush1.msra.mxu0 0.0
    %1573 = vmatprep.subr.mxu0 0.0
    %1574 = vmatpush1.msra.mxu0 0.0
    %1575 = vmatprep.subr.mxu0 0.0
    %1576 = vmatpush1.msra.mxu0 0.0
    %1577 = vmatprep.subr.mxu0 0.0
    %1578 = vmatpush1.msra.mxu0 0.0
    %1579 = vmatprep.subr.mxu0 0.0
    %1580 = vmatpush1.msra.mxu0 0.0
    %1581 = vmatprep.subr.mxu0 0.0
    %1582 = vmatpush1.msra.mxu0 0.0
    %1583 = vmatprep.subr.mxu0 0.0
    %1584 = vmatpush1.msra.mxu0 0.0
    %1585 = vmatprep.subr.mxu0 0.0
    %1586 = vmatpush1.msra.mxu0 0.0
    %1587 = vmatprep.subr.mxu0 0.0
    %1588 = vmatpush1.msra.mxu0 0.0
    %1589 = vmatprep.subr.mxu0 0.0
    %1590 = vmatpush1.msra.mxu0 0.0
    %1591 = vmatprep.mubr.f32.mxu0 0.0
    %v1592 = vand.u32 %v1191, 4294901760
    %1593 = vmatmul.mubr.f32.gmra.mrb[0].mxu0 %v1592
    %v1594 = vpop.f32.mrb[0].mxu0
    %v1595 = vadd.f32 %v1513, %v1594
    %v1596 = vpop.f32.mrb[0].mxu0
    %1597 = vmatprep.mubr.f32.mxu0 0.0
    %v1598 = vand.u32 %v1191, 4294901760
    %1599 = vmatmul.mubr.f32.gmra.mrb[0].mxu0 %v1598
    %v1600 = vpop.f32.mrb[0].mxu0
    %v1601 = vadd.f32 %v1521, %v1600
    %v1602 = vpop.f32.mrb[0].mxu0
    %1603 = vdwg.mxu0
    %1604 = vmatprep.subr.mxu0 0.0
    %v1605 = vand.u32 %v79, 4294901760
    %1606 = vmatpush1.msra.mxu0 %v1605
    %1607 = vmatprep.subr.mxu0 0.0
    %1608 = vmatpush1.msra.mxu0 0.0
    %1609 = vmatprep.subr.mxu0 0.0
    %1610 = vmatpush1.msra.mxu0 0.0
    %1611 = vmatprep.subr.mxu0 0.0
    %1612 = vmatpush1.msra.mxu0 0.0
    %1613 = vmatprep.subr.mxu0 0.0
    %1614 = vmatpush1.msra.mxu0 0.0
    %1615 = vmatprep.subr.mxu0 0.0
    %1616 = vmatpush1.msra.mxu0 0.0
    %1617 = vmatprep.subr.mxu0 0.0
    %1618 = vmatpush1.msra.mxu0 0.0
    %1619 = vmatprep.subr.mxu0 0.0
    %1620 = vmatpush1.msra.mxu0 0.0
    %1621 = vmatprep.subr.mxu0 0.0
    %1622 = vmatpush1.msra.mxu0 0.0
    %1623 = vmatprep.subr.mxu0 0.0
    %1624 = vmatpush1.msra.mxu0 0.0
    %1625 = vmatprep.subr.mxu0 0.0
    %1626 = vmatpush1.msra.mxu0 0.0
    %1627 = vmatprep.subr.mxu0 0.0
    %1628 = vmatpush1.msra.mxu0 0.0
    %1629 = vmatprep.subr.mxu0 0.0
    %1630 = vmatpush1.msra.mxu0 0.0
    %1631 = vmatprep.subr.mxu0 0.0
    %1632 = vmatpush1.msra.mxu0 0.0
    %1633 = vmatprep.subr.mxu0 0.0
    %1634 = vmatpush1.msra.mxu0 0.0
    %1635 = vmatprep.subr.mxu0 0.0
    %1636 = vmatpush1.msra.mxu0 0.0
    %1637 = vmatprep.subr.mxu0 0.0
    %1638 = vmatpush1.msra.mxu0 0.0
    %1639 = vmatprep.subr.mxu0 0.0
    %1640 = vmatpush1.msra.mxu0 0.0
    %1641 = vmatprep.subr.mxu0 0.0
    %1642 = vmatpush1.msra.mxu0 0.0
    %1643 = vmatprep.subr.mxu0 0.0
    %1644 = vmatpush1.msra.mxu0 0.0
    %1645 = vmatprep.subr.mxu0 0.0
    %1646 = vmatpush1.msra.mxu0 0.0
    %1647 = vmatprep.subr.mxu0 0.0
    %1648 = vmatpush1.msra.mxu0 0.0
    %1649 = vmatprep.subr.mxu0 0.0
    %1650 = vmatpush1.msra.mxu0 0.0
    %1651 = vmatprep.subr.mxu0 0.0
    %1652 = vmatpush1.msra.mxu0 0.0
    %1653 = vmatprep.subr.mxu0 0.0
    %1654 = vmatpush1.msra.mxu0 0.0
    %1655 = vmatprep.subr.mxu0 0.0
    %1656 = vmatpush1.msra.mxu0 0.0
    %1657 = vmatprep.subr.mxu0 0.0
    %1658 = vmatpush1.msra.mxu0 0.0
    %1659 = vmatprep.subr.mxu0 0.0
    %1660 = vmatpush1.msra.mxu0 0.0
    %1661 = vmatprep.subr.mxu0 0.0
    %1662 = vmatpush1.msra.mxu0 0.0
    %1663 = vmatprep.subr.mxu0 0.0
    %1664 = vmatpush1.msra.mxu0 0.0
    %1665 = vmatprep.subr.mxu0 0.0
    %1666 = vmatpush1.msra.mxu0 0.0
    %1667 = vmatprep.subr.mxu0 0.0
    %1668 = vmatpush1.msra.mxu0 0.0
    %1669 = vmatprep.mubr.f32.mxu0 0.0
    %v1670 = vand.u32 %v1191, 4294901760
    %1671 = vmatmul.mubr.f32.gmra.mrb[0].mxu0 %v1670
    %v1672 = vpop.f32.mrb[0].mxu0
    %v1673 = vadd.f32 %v1595, %v1672
    %v1674 = vpop.f32.mrb[0].mxu0
    %1675 = vmatprep.mubr.f32.mxu0 0.0
    %v1676 = vand.u32 %v1191, 4294901760
    %1677 = vmatmul.mubr.f32.gmra.mrb[0].mxu0 %v1676
    %v1678 = vpop.f32.mrb[0].mxu0
    %v1679 = vadd.f32 %v1601, %v1678
    %v1680 = vpop.f32.mrb[0].mxu0
    %1681 = vdwg.mxu0
    %v1682 = vsub.f32 %v494, %v1673
    %v1683 = vsub.f32 %v495, %v1679
    %v1684 = vmul.f32 %v1682, %v1682
    %v1685 = vmul.f32 %v1683, %v1683
    %1686 = vmatprep.subr.mxu0 0.0
    %v1687 = vand.u32 %v63, 4294901760
    %1688 = vmatpush1.msra.mxu0 %v1687
    %1689 = vmatprep.subr.mxu0 0.0
    %v1690 = vand.u32 %v64, 4294901760
    %1691 = vmatpush1.msra.mxu0 %v1690
    %1692 = vmatprep.subr.mxu0 0.0
    %v1693 = vand.u32 %v65, 4294901760
    %1694 = vmatpush1.msra.mxu0 %v1693
    %1695 = vmatprep.subr.mxu0 0.0
    %v1696 = vand.u32 %v66, 4294901760
    %1697 = vmatpush1.msra.mxu0 %v1696
    %1698 = vmatprep.subr.mxu0 0.0
    %v1699 = vand.u32 %v67, 4294901760
    %1700 = vmatpush1.msra.mxu0 %v1699
    %1701 = vmatprep.subr.mxu0 0.0
    %v1702 = vand.u32 %v68, 4294901760
    %1703 = vmatpush1.msra.mxu0 %v1702
    %1704 = vmatprep.subr.mxu0 0.0
    %v1705 = vand.u32 %v69, 4294901760
    %1706 = vmatpush1.msra.mxu0 %v1705
    %1707 = vmatprep.subr.mxu0 0.0
    %v1708 = vand.u32 %v70, 4294901760
    %1709 = vmatpush1.msra.mxu0 %v1708
    %1710 = vmatprep.subr.mxu0 0.0
    %v1711 = vand.u32 %v71, 4294901760
    %1712 = vmatpush1.msra.mxu0 %v1711
    %1713 = vmatprep.subr.mxu0 0.0
    %v1714 = vand.u32 %v72, 4294901760
    %1715 = vmatpush1.msra.mxu0 %v1714
    %1716 = vmatprep.subr.mxu0 0.0
    %v1717 = vand.u32 %v73, 4294901760
    %1718 = vmatpush1.msra.mxu0 %v1717
    %1719 = vmatprep.subr.mxu0 0.0
    %v1720 = vand.u32 %v74, 4294901760
    %1721 = vmatpush1.msra.mxu0 %v1720
    %1722 = vmatprep.subr.mxu0 0.0
    %v1723 = vand.u32 %v75, 4294901760
    %1724 = vmatpush1.msra.mxu0 %v1723
    %1725 = vmatprep.subr.mxu0 0.0
    %v1726 = vand.u32 %v76, 4294901760
    %1727 = vmatpush1.msra.mxu0 %v1726
    %1728 = vmatprep.subr.mxu0 0.0
    %v1729 = vand.u32 %v77, 4294901760
    %1730 = vmatpush1.msra.mxu0 %v1729
    %1731 = vmatprep.subr.mxu0 0.0
    %v1732 = vand.u32 %v78, 4294901760
    %1733 = vmatpush1.msra.mxu0 %v1732
    %1734 = vmatprep.subr.mxu0 0.0
    %1735 = vmatpush1.msra.mxu0 0.0
    %1736 = vmatprep.subr.mxu0 0.0
    %1737 = vmatpush1.msra.mxu0 0.0
    %1738 = vmatprep.subr.mxu0 0.0
    %1739 = vmatpush1.msra.mxu0 0.0
    %1740 = vmatprep.subr.mxu0 0.0
    %1741 = vmatpush1.msra.mxu0 0.0
    %1742 = vmatprep.subr.mxu0 0.0
    %1743 = vmatpush1.msra.mxu0 0.0
    %1744 = vmatprep.subr.mxu0 0.0
    %1745 = vmatpush1.msra.mxu0 0.0
    %1746 = vmatprep.subr.mxu0 0.0
    %1747 = vmatpush1.msra.mxu0 0.0
    %1748 = vmatprep.subr.mxu0 0.0
    %1749 = vmatpush1.msra.mxu0 0.0
    %1750 = vmatprep.subr.mxu0 0.0
    %1751 = vmatpush1.msra.mxu0 0.0
    %1752 = vmatprep.subr.mxu0 0.0
    %1753 = vmatpush1.msra.mxu0 0.0
    %1754 = vmatprep.subr.mxu0 0.0
    %1755 = vmatpush1.msra.mxu0 0.0
    %1756 = vmatprep.subr.mxu0 0.0
    %1757 = vmatpush1.msra.mxu0 0.0
    %1758 = vmatprep.subr.mxu0 0.0
    %1759 = vmatpush1.msra.mxu0 0.0
    %1760 = vmatprep.subr.mxu0 0.0
    %1761 = vmatpush1.msra.mxu0 0.0
    %1762 = vmatprep.subr.mxu0 0.0
    %1763 = vmatpush1.msra.mxu0 0.0
    %1764 = vmatprep.subr.mxu0 0.0
    %1765 = vmatpush1.msra.mxu0 0.0
    %1766 = vmatprep.mubr.f32.mxu0 0.0
    %v1767 = vand.u32 %v1684, 4294901760
    %v1768 = vsub.f32 %v1684, %v1767
    %v1769 = vand.u32 %v1768, 4294901760
    %v1770 = vsub.f32 %v1768, %v1769
    %v1771 = vand.u32 %v1770, 4294901760
    %1772 = vmatmul.mubr.f32.gmra.mrb[0].mxu0 %v1771
    %v1773 = vpop.f32.mrb[0].mxu0
    %v1774 = vadd.f32 0.0, %v1773
    %v1775 = vpop.f32.mrb[0].mxu0
    %1776 = vmatprep.mubr.f32.mxu0 0.0
    %v1777 = vand.u32 %v1685, 4294901760
    %v1778 = vsub.f32 %v1685, %v1777
    %v1779 = vand.u32 %v1778, 4294901760
    %v1780 = vsub.f32 %v1778, %v1779
    %v1781 = vand.u32 %v1780, 4294901760
    %1782 = vmatmul.mubr.f32.gmra.mrb[0].mxu0 %v1781
    %v1783 = vpop.f32.mrb[0].mxu0
    %v1784 = vadd.f32 0.0, %v1783
    %v1785 = vpop.f32.mrb[0].mxu0
    %1786 = vdwg.mxu0
    %1787 = vmatprep.subr.mxu0 0.0
    %v1788 = vand.u32 %v63, 4294901760
    %v1789 = vsub.f32 %v63, %v1788
    %v1790 = vand.u32 %v1789, 4294901760
    %v1791 = vsub.f32 %v1789, %v1790
    %v1792 = vand.u32 %v1791, 4294901760
    %1793 = vmatpush1.msra.mxu0 %v1792
    %1794 = vmatprep.subr.mxu0 0.0
    %v1795 = vand.u32 %v64, 4294901760
    %v1796 = vsub.f32 %v64, %v1795
    %v1797 = vand.u32 %v1796, 4294901760
    %v1798 = vsub.f32 %v1796, %v1797
    %v1799 = vand.u32 %v1798, 4294901760
    %1800 = vmatpush1.msra.mxu0 %v1799
    %1801 = vmatprep.subr.mxu0 0.0
    %v1802 = vand.u32 %v65, 4294901760
    %v1803 = vsub.f32 %v65, %v1802
    %v1804 = vand.u32 %v1803, 4294901760
    %v1805 = vsub.f32 %v1803, %v1804
    %v1806 = vand.u32 %v1805, 4294901760
    %1807 = vmatpush1.msra.mxu0 %v1806
    %1808 = vmatprep.subr.mxu0 0.0
    %v1809 = vand.u32 %v66, 4294901760
    %v1810 = vsub.f32 %v66, %v1809
    %v1811 = vand.u32 %v1810, 4294901760
    %v1812 = vsub.f32 %v1810, %v1811
    %v1813 = vand.u32 %v1812, 4294901760
    %1814 = vmatpush1.msra.mxu0 %v1813
    %1815 = vmatprep.subr.mxu0 0.0
    %v1816 = vand.u32 %v67, 4294901760
    %v1817 = vsub.f32 %v67, %v1816
    %v1818 = vand.u32 %v1817, 4294901760
    %v1819 = vsub.f32 %v1817, %v1818
    %v1820 = vand.u32 %v1819, 4294901760
    %1821 = vmatpush1.msra.mxu0 %v1820
    %1822 = vmatprep.subr.mxu0 0.0
    %v1823 = vand.u32 %v68, 4294901760
    %v1824 = vsub.f32 %v68, %v1823
    %v1825 = vand.u32 %v1824, 4294901760
    %v1826 = vsub.f32 %v1824, %v1825
    %v1827 = vand.u32 %v1826, 4294901760
    %1828 = vmatpush1.msra.mxu0 %v1827
    %1829 = vmatprep.subr.mxu0 0.0
    %v1830 = vand.u32 %v69, 4294901760
    %v1831 = vsub.f32 %v69, %v1830
    %v1832 = vand.u32 %v1831, 4294901760
    %v1833 = vsub.f32 %v1831, %v1832
    %v1834 = vand.u32 %v1833, 4294901760
    %1835 = vmatpush1.msra.mxu0 %v1834
    %1836 = vmatprep.subr.mxu0 0.0
    %v1837 = vand.u32 %v70, 4294901760
    %v1838 = vsub.f32 %v70, %v1837
    %v1839 = vand.u32 %v1838, 4294901760
    %v1840 = vsub.f32 %v1838, %v1839
    %v1841 = vand.u32 %v1840, 4294901760
    %1842 = vmatpush1.msra.mxu0 %v1841
    %1843 = vmatprep.subr.mxu0 0.0
    %v1844 = vand.u32 %v71, 4294901760
    %v1845 = vsub.f32 %v71, %v1844
    %v1846 = vand.u32 %v1845, 4294901760
    %v1847 = vsub.f32 %v1845, %v1846
    %v1848 = vand.u32 %v1847, 4294901760
    %1849 = vmatpush1.msra.mxu0 %v1848
    %1850 = vmatprep.subr.mxu0 0.0
    %v1851 = vand.u32 %v72, 4294901760
    %v1852 = vsub.f32 %v72, %v1851
    %v1853 = vand.u32 %v1852, 4294901760
    %v1854 = vsub.f32 %v1852, %v1853
    %v1855 = vand.u32 %v1854, 4294901760
    %1856 = vmatpush1.msra.mxu0 %v1855
    %1857 = vmatprep.subr.mxu0 0.0
    %v1858 = vand.u32 %v73, 4294901760
    %v1859 = vsub.f32 %v73, %v1858
    %v1860 = vand.u32 %v1859, 4294901760
    %v1861 = vsub.f32 %v1859, %v1860
    %v1862 = vand.u32 %v1861, 4294901760
    %1863 = vmatpush1.msra.mxu0 %v1862
    %1864 = vmatprep.subr.mxu0 0.0
    %v1865 = vand.u32 %v74, 4294901760
    %v1866 = vsub.f32 %v74, %v1865
    %v1867 = vand.u32 %v1866, 4294901760
    %v1868 = vsub.f32 %v1866, %v1867
    %v1869 = vand.u32 %v1868, 4294901760
    %1870 = vmatpush1.msra.mxu0 %v1869
    %1871 = vmatprep.subr.mxu0 0.0
    %v1872 = vand.u32 %v75, 4294901760
    %v1873 = vsub.f32 %v75, %v1872
    %v1874 = vand.u32 %v1873, 4294901760
    %v1875 = vsub.f32 %v1873, %v1874
    %v1876 = vand.u32 %v1875, 4294901760
    %1877 = vmatpush1.msra.mxu0 %v1876
    %1878 = vmatprep.subr.mxu0 0.0
    %v1879 = vand.u32 %v76, 4294901760
    %v1880 = vsub.f32 %v76, %v1879
    %v1881 = vand.u32 %v1880, 4294901760
    %v1882 = vsub.f32 %v1880, %v1881
    %v1883 = vand.u32 %v1882, 4294901760
    %1884 = vmatpush1.msra.mxu0 %v1883
    %1885 = vmatprep.subr.mxu0 0.0
    %v1886 = vand.u32 %v77, 4294901760
    %v1887 = vsub.f32 %v77, %v1886
    %v1888 = vand.u32 %v1887, 4294901760
    %v1889 = vsub.f32 %v1887, %v1888
    %v1890 = vand.u32 %v1889, 4294901760
    %1891 = vmatpush1.msra.mxu0 %v1890
    %1892 = vmatprep.subr.mxu0 0.0
    %v1893 = vand.u32 %v78, 4294901760
    %v1894 = vsub.f32 %v78, %v1893
    %v1895 = vand.u32 %v1894, 4294901760
    %v1896 = vsub.f32 %v1894, %v1895
    %v1897 = vand.u32 %v1896, 4294901760
    %1898 = vmatpush1.msra.mxu0 %v1897
    %1899 = vmatprep.subr.mxu0 0.0
    %1900 = vmatpush1.msra.mxu0 0.0
    %1901 = vmatprep.subr.mxu0 0.0
    %1902 = vmatpush1.msra.mxu0 0.0
    %1903 = vmatprep.subr.mxu0 0.0
    %1904 = vmatpush1.msra.mxu0 0.0
    %1905 = vmatprep.subr.mxu0 0.0
    %1906 = vmatpush1.msra.mxu0 0.0
    %1907 = vmatprep.subr.mxu0 0.0
    %1908 = vmatpush1.msra.mxu0 0.0
    %1909 = vmatprep.subr.mxu0 0.0
    %1910 = vmatpush1.msra.mxu0 0.0
    %1911 = vmatprep.subr.mxu0 0.0
    %1912 = vmatpush1.msra.mxu0 0.0
    %1913 = vmatprep.subr.mxu0 0.0
    %1914 = vmatpush1.msra.mxu0 0.0
    %1915 = vmatprep.subr.mxu0 0.0
    %1916 = vmatpush1.msra.mxu0 0.0
    %1917 = vmatprep.subr.mxu0 0.0
    %1918 = vmatpush1.msra.mxu0 0.0
    %1919 = vmatprep.subr.mxu0 0.0
    %1920 = vmatpush1.msra.mxu0 0.0
    %1921 = vmatprep.subr.mxu0 0.0
    %1922 = vmatpush1.msra.mxu0 0.0
    %1923 = vmatprep.subr.mxu0 0.0
    %1924 = vmatpush1.msra.mxu0 0.0
    %1925 = vmatprep.subr.mxu0 0.0
    %1926 = vmatpush1.msra.mxu0 0.0
    %1927 = vmatprep.subr.mxu0 0.0
    %1928 = vmatpush1.msra.mxu0 0.0
    %1929 = vmatprep.subr.mxu0 0.0
    %1930 = vmatpush1.msra.mxu0 0.0
    %1931 = vmatprep.mubr.f32.mxu0 0.0
    %v1932 = vand.u32 %v1684, 4294901760
    %1933 = vmatmul.mubr.f32.gmra.mrb[0].mxu0 %v1932
    %v1934 = vpop.f32.mrb[0].mxu0
    %v1935 = vadd.f32 %v1774, %v1934
    %v1936 = vpop.f32.mrb[0].mxu0
    %1937 = vmatprep.mubr.f32.mxu0 0.0
    %v1938 = vand.u32 %v1685, 4294901760
    %1939 = vmatmul.mubr.f32.gmra.mrb[0].mxu0 %v1938
    %v1940 = vpop.f32.mrb[0].mxu0
    %v1941 = vadd.f32 %v1784, %v1940
    %v1942 = vpop.f32.mrb[0].mxu0
    %1943 = vdwg.mxu0
    %1944 = vmatprep.subr.mxu0 0.0
    %v1945 = vand.u32 %v63, 4294901760
    %v1946 = vsub.f32 %v63, %v1945
    %1947 = vmatpush1.msra.mxu0 %v1946
    %1948 = vmatprep.subr.mxu0 0.0
    %v1949 = vand.u32 %v64, 4294901760
    %v1950 = vsub.f32 %v64, %v1949
    %1951 = vmatpush1.msra.mxu0 %v1950
    %1952 = vmatprep.subr.mxu0 0.0
    %v1953 = vand.u32 %v65, 4294901760
    %v1954 = vsub.f32 %v65, %v1953
    %1955 = vmatpush1.msra.mxu0 %v1954
    %1956 = vmatprep.subr.mxu0 0.0
    %v1957 = vand.u32 %v66, 4294901760
    %v1958 = vsub.f32 %v66, %v1957
    %1959 = vmatpush1.msra.mxu0 %v1958
    %1960 = vmatprep.subr.mxu0 0.0
    %v1961 = vand.u32 %v67, 4294901760
    %v1962 = vsub.f32 %v67, %v1961
    %1963 = vmatpush1.msra.mxu0 %v1962
    %1964 = vmatprep.subr.mxu0 0.0
    %v1965 = vand.u32 %v68, 4294901760
    %v1966 = vsub.f32 %v68, %v1965
    %1967 = vmatpush1.msra.mxu0 %v1966
    %1968 = vmatprep.subr.mxu0 0.0
    %v1969 = vand.u32 %v69, 4294901760
    %v1970 = vsub.f32 %v69, %v1969
    %1971 = vmatpush1.msra.mxu0 %v1970
    %1972 = vmatprep.subr.mxu0 0.0
    %v1973 = vand.u32 %v70, 4294901760
    %v1974 = vsub.f32 %v70, %v1973
    %1975 = vmatpush1.msra.mxu0 %v1974
    %1976 = vmatprep.subr.mxu0 0.0
    %v1977 = vand.u32 %v71, 4294901760
    %v1978 = vsub.f32 %v71, %v1977
    %1979 = vmatpush1.msra.mxu0 %v1978
    %1980 = vmatprep.subr.mxu0 0.0
    %v1981 = vand.u32 %v72, 4294901760
    %v1982 = vsub.f32 %v72, %v1981
    %1983 = vmatpush1.msra.mxu0 %v1982
    %1984 = vmatprep.subr.mxu0 0.0
    %v1985 = vand.u32 %v73, 4294901760
    %v1986 = vsub.f32 %v73, %v1985
    %1987 = vmatpush1.msra.mxu0 %v1986
    %1988 = vmatprep.subr.mxu0 0.0
    %v1989 = vand.u32 %v74, 4294901760
    %v1990 = vsub.f32 %v74, %v1989
    %1991 = vmatpush1.msra.mxu0 %v1990
    %1992 = vmatprep.subr.mxu0 0.0
    %v1993 = vand.u32 %v75, 4294901760
    %v1994 = vsub.f32 %v75, %v1993
    %1995 = vmatpush1.msra.mxu0 %v1994
    %1996 = vmatprep.subr.mxu0 0.0
    %v1997 = vand.u32 %v76, 4294901760
    %v1998 = vsub.f32 %v76, %v1997
    %1999 = vmatpush1.msra.mxu0 %v1998
    %2000 = vmatprep.subr.mxu0 0.0
    %v2001 = vand.u32 %v77, 4294901760
    %v2002 = vsub.f32 %v77, %v2001
    %2003 = vmatpush1.msra.mxu0 %v2002
    %2004 = vmatprep.subr.mxu0 0.0
    %v2005 = vand.u32 %v78, 4294901760
    %v2006 = vsub.f32 %v78, %v2005
    %2007 = vmatpush1.msra.mxu0 %v2006
    %2008 = vmatprep.subr.mxu0 0.0
    %2009 = vmatpush1.msra.mxu0 0.0
    %2010 = vmatprep.subr.mxu0 0.0
    %2011 = vmatpush1.msra.mxu0 0.0
    %2012 = vmatprep.subr.mxu0 0.0
    %2013 = vmatpush1.msra.mxu0 0.0
    %2014 = vmatprep.subr.mxu0 0.0
    %2015 = vmatpush1.msra.mxu0 0.0
    %2016 = vmatprep.subr.mxu0 0.0
    %2017 = vmatpush1.msra.mxu0 0.0
    %2018 = vmatprep.subr.mxu0 0.0
    %2019 = vmatpush1.msra.mxu0 0.0
    %2020 = vmatprep.subr.mxu0 0.0
    %2021 = vmatpush1.msra.mxu0 0.0
    %2022 = vmatprep.subr.mxu0 0.0
    %2023 = vmatpush1.msra.mxu0 0.0
    %2024 = vmatprep.subr.mxu0 0.0
    %2025 = vmatpush1.msra.mxu0 0.0
    %2026 = vmatprep.subr.mxu0 0.0
    %2027 = vmatpush1.msra.mxu0 0.0
    %2028 = vmatprep.subr.mxu0 0.0
    %2029 = vmatpush1.msra.mxu0 0.0
    %2030 = vmatprep.subr.mxu0 0.0
    %2031 = vmatpush1.msra.mxu0 0.0
    %2032 = vmatprep.subr.mxu0 0.0
    %2033 = vmatpush1.msra.mxu0 0.0
    %2034 = vmatprep.subr.mxu0 0.0
    %2035 = vmatpush1.msra.mxu0 0.0
    %2036 = vmatprep.subr.mxu0 0.0
    %2037 = vmatpush1.msra.mxu0 0.0
    %2038 = vmatprep.subr.mxu0 0.0
    %2039 = vmatpush1.msra.mxu0 0.0
    %2040 = vmatprep.mubr.f32.mxu0 0.0
    %v2041 = vand.u32 %v1684, 4294901760
    %v2042 = vsub.f32 %v1684, %v2041
    %2043 = vmatmul.mubr.f32.gmra.mrb[0].mxu0 %v2042
    %v2044 = vpop.f32.mrb[0].mxu0
    %v2045 = vadd.f32 %v1935, %v2044
    %v2046 = vpop.f32.mrb[0].mxu0
    %2047 = vmatprep.mubr.f32.mxu0 0.0
    %v2048 = vand.u32 %v1685, 4294901760
    %v2049 = vsub.f32 %v1685, %v2048
    %2050 = vmatmul.mubr.f32.gmra.mrb[0].mxu0 %v2049
    %v2051 = vpop.f32.mrb[0].mxu0
    %v2052 = vadd.f32 %v1941, %v2051
    %v2053 = vpop.f32.mrb[0].mxu0
    %2054 = vdwg.mxu0
    %2055 = vmatprep.subr.mxu0 0.0
    %v2056 = vand.u32 %v63, 4294901760
    %2057 = vmatpush1.msra.mxu0 %v2056
    %2058 = vmatprep.subr.mxu0 0.0
    %v2059 = vand.u32 %v64, 4294901760
    %2060 = vmatpush1.msra.mxu0 %v2059
    %2061 = vmatprep.subr.mxu0 0.0
    %v2062 = vand.u32 %v65, 4294901760
    %2063 = vmatpush1.msra.mxu0 %v2062
    %2064 = vmatprep.subr.mxu0 0.0
    %v2065 = vand.u32 %v66, 4294901760
    %2066 = vmatpush1.msra.mxu0 %v2065
    %2067 = vmatprep.subr.mxu0 0.0
    %v2068 = vand.u32 %v67, 4294901760
    %2069 = vmatpush1.msra.mxu0 %v2068
    %2070 = vmatprep.subr.mxu0 0.0
    %v2071 = vand.u32 %v68, 4294901760
    %2072 = vmatpush1.msra.mxu0 %v2071
    %2073 = vmatprep.subr.mxu0 0.0
    %v2074 = vand.u32 %v69, 4294901760
    %2075 = vmatpush1.msra.mxu0 %v2074
    %2076 = vmatprep.subr.mxu0 0.0
    %v2077 = vand.u32 %v70, 4294901760
    %2078 = vmatpush1.msra.mxu0 %v2077
    %2079 = vmatprep.subr.mxu0 0.0
    %v2080 = vand.u32 %v71, 4294901760
    %2081 = vmatpush1.msra.mxu0 %v2080
    %2082 = vmatprep.subr.mxu0 0.0
    %v2083 = vand.u32 %v72, 4294901760
    %2084 = vmatpush1.msra.mxu0 %v2083
    %2085 = vmatprep.subr.mxu0 0.0
    %v2086 = vand.u32 %v73, 4294901760
    %2087 = vmatpush1.msra.mxu0 %v2086
    %2088 = vmatprep.subr.mxu0 0.0
    %v2089 = vand.u32 %v74, 4294901760
    %2090 = vmatpush1.msra.mxu0 %v2089
    %2091 = vmatprep.subr.mxu0 0.0
    %v2092 = vand.u32 %v75, 4294901760
    %2093 = vmatpush1.msra.mxu0 %v2092
    %2094 = vmatprep.subr.mxu0 0.0
    %v2095 = vand.u32 %v76, 4294901760
    %2096 = vmatpush1.msra.mxu0 %v2095
    %2097 = vmatprep.subr.mxu0 0.0
    %v2098 = vand.u32 %v77, 4294901760
    %2099 = vmatpush1.msra.mxu0 %v2098
    %2100 = vmatprep.subr.mxu0 0.0
    %v2101 = vand.u32 %v78, 4294901760
    %2102 = vmatpush1.msra.mxu0 %v2101
    %2103 = vmatprep.subr.mxu0 0.0
    %2104 = vmatpush1.msra.mxu0 0.0
    %2105 = vmatprep.subr.mxu0 0.0
    %2106 = vmatpush1.msra.mxu0 0.0
    %2107 = vmatprep.subr.mxu0 0.0
    %2108 = vmatpush1.msra.mxu0 0.0
    %2109 = vmatprep.subr.mxu0 0.0
    %2110 = vmatpush1.msra.mxu0 0.0
    %2111 = vmatprep.subr.mxu0 0.0
    %2112 = vmatpush1.msra.mxu0 0.0
    %2113 = vmatprep.subr.mxu0 0.0
    %2114 = vmatpush1.msra.mxu0 0.0
    %2115 = vmatprep.subr.mxu0 0.0
    %2116 = vmatpush1.msra.mxu0 0.0
    %2117 = vmatprep.subr.mxu0 0.0
    %2118 = vmatpush1.msra.mxu0 0.0
    %2119 = vmatprep.subr.mxu0 0.0
    %2120 = vmatpush1.msra.mxu0 0.0
    %2121 = vmatprep.subr.mxu0 0.0
    %2122 = vmatpush1.msra.mxu0 0.0
    %2123 = vmatprep.subr.mxu0 0.0
    %2124 = vmatpush1.msra.mxu0 0.0
    %2125 = vmatprep.subr.mxu0 0.0
    %2126 = vmatpush1.msra.mxu0 0.0
    %2127 = vmatprep.subr.mxu0 0.0
    %2128 = vmatpush1.msra.mxu0 0.0
    %2129 = vmatprep.subr.mxu0 0.0
    %2130 = vmatpush1.msra.mxu0 0.0
    %2131 = vmatprep.subr.mxu0 0.0
    %2132 = vmatpush1.msra.mxu0 0.0
    %2133 = vmatprep.subr.mxu0 0.0
    %2134 = vmatpush1.msra.mxu0 0.0
    %2135 = vmatprep.mubr.f32.mxu0 0.0
    %v2136 = vand.u32 %v1684, 4294901760
    %v2137 = vsub.f32 %v1684, %v2136
    %v2138 = vand.u32 %v2137, 4294901760
    %2139 = vmatmul.mubr.f32.gmra.mrb[0].mxu0 %v2138
    %v2140 = vpop.f32.mrb[0].mxu0
    %v2141 = vadd.f32 %v2045, %v2140
    %v2142 = vpop.f32.mrb[0].mxu0
    %2143 = vmatprep.mubr.f32.mxu0 0.0
    %v2144 = vand.u32 %v1685, 4294901760
    %v2145 = vsub.f32 %v1685, %v2144
    %v2146 = vand.u32 %v2145, 4294901760
    %2147 = vmatmul.mubr.f32.gmra.mrb[0].mxu0 %v2146
    %v2148 = vpop.f32.mrb[0].mxu0
    %v2149 = vadd.f32 %v2052, %v2148
    %v2150 = vpop.f32.mrb[0].mxu0
    %2151 = vdwg.mxu0
    %2152 = vmatprep.subr.mxu0 0.0
    %v2153 = vand.u32 %v63, 4294901760
    %v2154 = vsub.f32 %v63, %v2153
    %v2155 = vand.u32 %v2154, 4294901760
    %2156 = vmatpush1.msra.mxu0 %v2155
    %2157 = vmatprep.subr.mxu0 0.0
    %v2158 = vand.u32 %v64, 4294901760
    %v2159 = vsub.f32 %v64, %v2158
    %v2160 = vand.u32 %v2159, 4294901760
    %2161 = vmatpush1.msra.mxu0 %v2160
    %2162 = vmatprep.subr.mxu0 0.0
    %v2163 = vand.u32 %v65, 4294901760
    %v2164 = vsub.f32 %v65, %v2163
    %v2165 = vand.u32 %v2164, 4294901760
    %2166 = vmatpush1.msra.mxu0 %v2165
    %2167 = vmatprep.subr.mxu0 0.0
    %v2168 = vand.u32 %v66, 4294901760
    %v2169 = vsub.f32 %v66, %v2168
    %v2170 = vand.u32 %v2169, 4294901760
    %2171 = vmatpush1.msra.mxu0 %v2170
    %2172 = vmatprep.subr.mxu0 0.0
    %v2173 = vand.u32 %v67, 4294901760
    %v2174 = vsub.f32 %v67, %v2173
    %v2175 = vand.u32 %v2174, 4294901760
    %2176 = vmatpush1.msra.mxu0 %v2175
    %2177 = vmatprep.subr.mxu0 0.0
    %v2178 = vand.u32 %v68, 4294901760
    %v2179 = vsub.f32 %v68, %v2178
    %v2180 = vand.u32 %v2179, 4294901760
    %2181 = vmatpush1.msra.mxu0 %v2180
    %2182 = vmatprep.subr.mxu0 0.0
    %v2183 = vand.u32 %v69, 4294901760
    %v2184 = vsub.f32 %v69, %v2183
    %v2185 = vand.u32 %v2184, 4294901760
    %2186 = vmatpush1.msra.mxu0 %v2185
    %2187 = vmatprep.subr.mxu0 0.0
    %v2188 = vand.u32 %v70, 4294901760
    %v2189 = vsub.f32 %v70, %v2188
    %v2190 = vand.u32 %v2189, 4294901760
    %2191 = vmatpush1.msra.mxu0 %v2190
    %2192 = vmatprep.subr.mxu0 0.0
    %v2193 = vand.u32 %v71, 4294901760
    %v2194 = vsub.f32 %v71, %v2193
    %v2195 = vand.u32 %v2194, 4294901760
    %2196 = vmatpush1.msra.mxu0 %v2195
    %2197 = vmatprep.subr.mxu0 0.0
    %v2198 = vand.u32 %v72, 4294901760
    %v2199 = vsub.f32 %v72, %v2198
    %v2200 = vand.u32 %v2199, 4294901760
    %2201 = vmatpush1.msra.mxu0 %v2200
    %2202 = vmatprep.subr.mxu0 0.0
    %v2203 = vand.u32 %v73, 4294901760
    %v2204 = vsub.f32 %v73, %v2203
    %v2205 = vand.u32 %v2204, 4294901760
    %2206 = vmatpush1.msra.mxu0 %v2205
    %2207 = vmatprep.subr.mxu0 0.0
    %v2208 = vand.u32 %v74, 4294901760
    %v2209 = vsub.f32 %v74, %v2208
    %v2210 = vand.u32 %v2209, 4294901760
    %2211 = vmatpush1.msra.mxu0 %v2210
    %2212 = vmatprep.subr.mxu0 0.0
    %v2213 = vand.u32 %v75, 4294901760
    %v2214 = vsub.f32 %v75, %v2213
    %v2215 = vand.u32 %v2214, 4294901760
    %2216 = vmatpush1.msra.mxu0 %v2215
    %2217 = vmatprep.subr.mxu0 0.0
    %v2218 = vand.u32 %v76, 4294901760
    %v2219 = vsub.f32 %v76, %v2218
    %v2220 = vand.u32 %v2219, 4294901760
    %2221 = vmatpush1.msra.mxu0 %v2220
    %2222 = vmatprep.subr.mxu0 0.0
    %v2223 = vand.u32 %v77, 4294901760
    %v2224 = vsub.f32 %v77, %v2223
    %v2225 = vand.u32 %v2224, 4294901760
    %2226 = vmatpush1.msra.mxu0 %v2225
    %2227 = vmatprep.subr.mxu0 0.0
    %v2228 = vand.u32 %v78, 4294901760
    %v2229 = vsub.f32 %v78, %v2228
    %v2230 = vand.u32 %v2229, 4294901760
    %2231 = vmatpush1.msra.mxu0 %v2230
    %2232 = vmatprep.subr.mxu0 0.0
    %2233 = vmatpush1.msra.mxu0 0.0
    %2234 = vmatprep.subr.mxu0 0.0
    %2235 = vmatpush1.msra.mxu0 0.0
    %2236 = vmatprep.subr.mxu0 0.0
    %2237 = vmatpush1.msra.mxu0 0.0
    %2238 = vmatprep.subr.mxu0 0.0
    %2239 = vmatpush1.msra.mxu0 0.0
    %2240 = vmatprep.subr.mxu0 0.0
    %2241 = vmatpush1.msra.mxu0 0.0
    %2242 = vmatprep.subr.mxu0 0.0
    %2243 = vmatpush1.msra.mxu0 0.0
    %2244 = vmatprep.subr.mxu0 0.0
    %2245 = vmatpush1.msra.mxu0 0.0
    %2246 = vmatprep.subr.mxu0 0.0
    %2247 = vmatpush1.msra.mxu0 0.0
    %2248 = vmatprep.subr.mxu0 0.0
    %2249 = vmatpush1.msra.mxu0 0.0
    %2250 = vmatprep.subr.mxu0 0.0
    %2251 = vmatpush1.msra.mxu0 0.0
    %2252 = vmatprep.subr.mxu0 0.0
    %2253 = vmatpush1.msra.mxu0 0.0
    %2254 = vmatprep.subr.mxu0 0.0
    %2255 = vmatpush1.msra.mxu0 0.0
    %2256 = vmatprep.subr.mxu0 0.0
    %2257 = vmatpush1.msra.mxu0 0.0
    %2258 = vmatprep.subr.mxu0 0.0
    %2259 = vmatpush1.msra.mxu0 0.0
    %2260 = vmatprep.subr.mxu0 0.0
    %2261 = vmatpush1.msra.mxu0 0.0
    %2262 = vmatprep.subr.mxu0 0.0
    %2263 = vmatpush1.msra.mxu0 0.0
    %2264 = vmatprep.mubr.f32.mxu0 0.0
    %v2265 = vand.u32 %v1684, 4294901760
    %2266 = vmatmul.mubr.f32.gmra.mrb[0].mxu0 %v2265
    %v2267 = vpop.f32.mrb[0].mxu0
    %v2268 = vadd.f32 %v2141, %v2267
    %v2269 = vpop.f32.mrb[0].mxu0
    %2270 = vmatprep.mubr.f32.mxu0 0.0
    %v2271 = vand.u32 %v1685, 4294901760
    %2272 = vmatmul.mubr.f32.gmra.mrb[0].mxu0 %v2271
    %v2273 = vpop.f32.mrb[0].mxu0
    %v2274 = vadd.f32 %v2149, %v2273
    %v2275 = vpop.f32.mrb[0].mxu0
    %2276 = vdwg.mxu0
    %2277 = vmatprep.subr.mxu0 0.0
    %v2278 = vand.u32 %v63, 4294901760
    %2279 = vmatpush1.msra.mxu0 %v2278
    %2280 = vmatprep.subr.mxu0 0.0
    %v2281 = vand.u32 %v64, 4294901760
    %2282 = vmatpush1.msra.mxu0 %v2281
    %2283 = vmatprep.subr.mxu0 0.0
    %v2284 = vand.u32 %v65, 4294901760
    %2285 = vmatpush1.msra.mxu0 %v2284
    %2286 = vmatprep.subr.mxu0 0.0
    %v2287 = vand.u32 %v66, 4294901760
    %2288 = vmatpush1.msra.mxu0 %v2287
    %2289 = vmatprep.subr.mxu0 0.0
    %v2290 = vand.u32 %v67, 4294901760
    %2291 = vmatpush1.msra.mxu0 %v2290
    %2292 = vmatprep.subr.mxu0 0.0
    %v2293 = vand.u32 %v68, 4294901760
    %2294 = vmatpush1.msra.mxu0 %v2293
    %2295 = vmatprep.subr.mxu0 0.0
    %v2296 = vand.u32 %v69, 4294901760
    %2297 = vmatpush1.msra.mxu0 %v2296
    %2298 = vmatprep.subr.mxu0 0.0
    %v2299 = vand.u32 %v70, 4294901760
    %2300 = vmatpush1.msra.mxu0 %v2299
    %2301 = vmatprep.subr.mxu0 0.0
    %v2302 = vand.u32 %v71, 4294901760
    %2303 = vmatpush1.msra.mxu0 %v2302
    %2304 = vmatprep.subr.mxu0 0.0
    %v2305 = vand.u32 %v72, 4294901760
    %2306 = vmatpush1.msra.mxu0 %v2305
    %2307 = vmatprep.subr.mxu0 0.0
    %v2308 = vand.u32 %v73, 4294901760
    %2309 = vmatpush1.msra.mxu0 %v2308
    %2310 = vmatprep.subr.mxu0 0.0
    %v2311 = vand.u32 %v74, 4294901760
    %2312 = vmatpush1.msra.mxu0 %v2311
    %2313 = vmatprep.subr.mxu0 0.0
    %v2314 = vand.u32 %v75, 4294901760
    %2315 = vmatpush1.msra.mxu0 %v2314
    %2316 = vmatprep.subr.mxu0 0.0
    %v2317 = vand.u32 %v76, 4294901760
    %2318 = vmatpush1.msra.mxu0 %v2317
    %2319 = vmatprep.subr.mxu0 0.0
    %v2320 = vand.u32 %v77, 4294901760
    %2321 = vmatpush1.msra.mxu0 %v2320
    %2322 = vmatprep.subr.mxu0 0.0
    %v2323 = vand.u32 %v78, 4294901760
    %2324 = vmatpush1.msra.mxu0 %v2323
    %2325 = vmatprep.subr.mxu0 0.0
    %2326 = vmatpush1.msra.mxu0 0.0
    %2327 = vmatprep.subr.mxu0 0.0
    %2328 = vmatpush1.msra.mxu0 0.0
    %2329 = vmatprep.subr.mxu0 0.0
    %2330 = vmatpush1.msra.mxu0 0.0
    %2331 = vmatprep.subr.mxu0 0.0
    %2332 = vmatpush1.msra.mxu0 0.0
    %2333 = vmatprep.subr.mxu0 0.0
    %2334 = vmatpush1.msra.mxu0 0.0
    %2335 = vmatprep.subr.mxu0 0.0
    %2336 = vmatpush1.msra.mxu0 0.0
    %2337 = vmatprep.subr.mxu0 0.0
    %2338 = vmatpush1.msra.mxu0 0.0
    %2339 = vmatprep.subr.mxu0 0.0
    %2340 = vmatpush1.msra.mxu0 0.0
    %2341 = vmatprep.subr.mxu0 0.0
    %2342 = vmatpush1.msra.mxu0 0.0
    %2343 = vmatprep.subr.mxu0 0.0
    %2344 = vmatpush1.msra.mxu0 0.0
    %2345 = vmatprep.subr.mxu0 0.0
    %2346 = vmatpush1.msra.mxu0 0.0
    %2347 = vmatprep.subr.mxu0 0.0
    %2348 = vmatpush1.msra.mxu0 0.0
    %2349 = vmatprep.subr.mxu0 0.0
    %2350 = vmatpush1.msra.mxu0 0.0
    %2351 = vmatprep.subr.mxu0 0.0
    %2352 = vmatpush1.msra.mxu0 0.0
    %2353 = vmatprep.subr.mxu0 0.0
    %2354 = vmatpush1.msra.mxu0 0.0
    %2355 = vmatprep.subr.mxu0 0.0
    %2356 = vmatpush1.msra.mxu0 0.0
    %2357 = vmatprep.mubr.f32.mxu0 0.0
    %v2358 = vand.u32 %v1684, 4294901760
    %2359 = vmatmul.mubr.f32.gmra.mrb[0].mxu0 %v2358
    %v2360 = vpop.f32.mrb[0].mxu0
    %v2361 = vadd.f32 %v2268, %v2360
    %v2362 = vpop.f32.mrb[0].mxu0
    %2363 = vmatprep.mubr.f32.mxu0 0.0
    %v2364 = vand.u32 %v1685, 4294901760
    %2365 = vmatmul.mubr.f32.gmra.mrb[0].mxu0 %v2364
    %v2366 = vpop.f32.mrb[0].mxu0
    %v2367 = vadd.f32 %v2274, %v2366
    %v2368 = vpop.f32.mrb[0].mxu0
    %2369 = vdwg.mxu0
    %v2370 = vsel %vm1180, %v2361, 0.0
    %v2371 = vsel %vm1180, %v2367, 0.0
    %v2372 = vadd.f32 %v2370, %v2371
    %v2373 = vrot.slane %v2372, 4
    %v2374 = vadd.f32 %v2372, %v2373
    %v2375 = vrot.slane %v2374, 2
    %v2376 = vadd.f32 %v2374, %v2375
    %v2377 = vrot.slane %v2376, 1
    %v2378 = vadd.f32 %v2376, %v2377
    %v2380 = vsel %vm1180, %v2378, 0
    %2382 = vmatprep.subr.mxu0 0.0
    %v2383 = vand.u32 %v79, 4294901760
    %2384 = vmatpush1.msra.mxu0 %v2383
    %2385 = vmatprep.subr.mxu0 0.0
    %2386 = vmatpush1.msra.mxu0 0.0
    %2387 = vmatprep.subr.mxu0 0.0
    %2388 = vmatpush1.msra.mxu0 0.0
    %2389 = vmatprep.subr.mxu0 0.0
    %2390 = vmatpush1.msra.mxu0 0.0
    %2391 = vmatprep.subr.mxu0 0.0
    %2392 = vmatpush1.msra.mxu0 0.0
    %2393 = vmatprep.subr.mxu0 0.0
    %2394 = vmatpush1.msra.mxu0 0.0
    %2395 = vmatprep.subr.mxu0 0.0
    %2396 = vmatpush1.msra.mxu0 0.0
    %2397 = vmatprep.subr.mxu0 0.0
    %2398 = vmatpush1.msra.mxu0 0.0
    %2399 = vmatprep.subr.mxu0 0.0
    %2400 = vmatpush1.msra.mxu0 0.0
    %2401 = vmatprep.subr.mxu0 0.0
    %2402 = vmatpush1.msra.mxu0 0.0
    %2403 = vmatprep.subr.mxu0 0.0
    %2404 = vmatpush1.msra.mxu0 0.0
    %2405 = vmatprep.subr.mxu0 0.0
    %2406 = vmatpush1.msra.mxu0 0.0
    %2407 = vmatprep.subr.mxu0 0.0
    %2408 = vmatpush1.msra.mxu0 0.0
    %2409 = vmatprep.subr.mxu0 0.0
    %2410 = vmatpush1.msra.mxu0 0.0
    %2411 = vmatprep.subr.mxu0 0.0
    %2412 = vmatpush1.msra.mxu0 0.0
    %2413 = vmatprep.subr.mxu0 0.0
    %2414 = vmatpush1.msra.mxu0 0.0
    %2415 = vmatprep.subr.mxu0 0.0
    %2416 = vmatpush1.msra.mxu0 0.0
    %2417 = vmatprep.subr.mxu0 0.0
    %2418 = vmatpush1.msra.mxu0 0.0
    %2419 = vmatprep.subr.mxu0 0.0
    %2420 = vmatpush1.msra.mxu0 0.0
    %2421 = vmatprep.subr.mxu0 0.0
    %2422 = vmatpush1.msra.mxu0 0.0
    %2423 = vmatprep.subr.mxu0 0.0
    %2424 = vmatpush1.msra.mxu0 0.0
    %2425 = vmatprep.subr.mxu0 0.0
    %2426 = vmatpush1.msra.mxu0 0.0
    %2427 = vmatprep.subr.mxu0 0.0
    %2428 = vmatpush1.msra.mxu0 0.0
    %2429 = vmatprep.subr.mxu0 0.0
    %2430 = vmatpush1.msra.mxu0 0.0
    %2431 = vmatprep.subr.mxu0 0.0
    %2432 = vmatpush1.msra.mxu0 0.0
    %2433 = vmatprep.subr.mxu0 0.0
    %2434 = vmatpush1.msra.mxu0 0.0
    %2435 = vmatprep.subr.mxu0 0.0
    %2436 = vmatpush1.msra.mxu0 0.0
    %2437 = vmatprep.subr.mxu0 0.0
    %2438 = vmatpush1.msra.mxu0 0.0
    %2439 = vmatprep.subr.mxu0 0.0
    %2440 = vmatpush1.msra.mxu0 0.0
    %2441 = vmatprep.subr.mxu0 0.0
    %2442 = vmatpush1.msra.mxu0 0.0
    %2443 = vmatprep.subr.mxu0 0.0
    %2444 = vmatpush1.msra.mxu0 0.0
    %2445 = vmatprep.subr.mxu0 0.0
    %2446 = vmatpush1.msra.mxu0 0.0
    %2447 = vmatprep.mubr.f32.mxu0 0.0
    %v2448 = vand.u32 %v2380, 4294901760
    %v2449 = vsub.f32 %v2380, %v2448
    %v2450 = vand.u32 %v2449, 4294901760
    %v2451 = vsub.f32 %v2449, %v2450
    %v2452 = vand.u32 %v2451, 4294901760
    %2453 = vmatmul.mubr.f32.gmra.mrb[0].mxu0 %v2452
    %v2454 = vpop.f32.mrb[0].mxu0
    %v2455 = vadd.f32 1e-05, %v2454
    %v2456 = vpop.f32.mrb[0].mxu0
    %2457 = vmatprep.mubr.f32.mxu0 0.0
    %v2458 = vand.u32 %v2380, 4294901760
    %v2459 = vsub.f32 %v2380, %v2458
    %v2460 = vand.u32 %v2459, 4294901760
    %v2461 = vsub.f32 %v2459, %v2460
    %v2462 = vand.u32 %v2461, 4294901760
    %2463 = vmatmul.mubr.f32.gmra.mrb[0].mxu0 %v2462
    %v2464 = vpop.f32.mrb[0].mxu0
    %v2465 = vadd.f32 1e-05, %v2464
    %v2466 = vpop.f32.mrb[0].mxu0
    %2467 = vdwg.mxu0
    %2468 = vmatprep.subr.mxu0 0.0
    %v2469 = vand.u32 %v79, 4294901760
    %v2470 = vsub.f32 %v79, %v2469
    %v2471 = vand.u32 %v2470, 4294901760
    %v2472 = vsub.f32 %v2470, %v2471
    %v2473 = vand.u32 %v2472, 4294901760
    %2474 = vmatpush1.msra.mxu0 %v2473
    %2475 = vmatprep.subr.mxu0 0.0
    %2476 = vmatpush1.msra.mxu0 0.0
    %2477 = vmatprep.subr.mxu0 0.0
    %2478 = vmatpush1.msra.mxu0 0.0
    %2479 = vmatprep.subr.mxu0 0.0
    %2480 = vmatpush1.msra.mxu0 0.0
    %2481 = vmatprep.subr.mxu0 0.0
    %2482 = vmatpush1.msra.mxu0 0.0
    %2483 = vmatprep.subr.mxu0 0.0
    %2484 = vmatpush1.msra.mxu0 0.0
    %2485 = vmatprep.subr.mxu0 0.0
    %2486 = vmatpush1.msra.mxu0 0.0
    %2487 = vmatprep.subr.mxu0 0.0
    %2488 = vmatpush1.msra.mxu0 0.0
    %2489 = vmatprep.subr.mxu0 0.0
    %2490 = vmatpush1.msra.mxu0 0.0
    %2491 = vmatprep.subr.mxu0 0.0
    %2492 = vmatpush1.msra.mxu0 0.0
    %2493 = vmatprep.subr.mxu0 0.0
    %2494 = vmatpush1.msra.mxu0 0.0
    %2495 = vmatprep.subr.mxu0 0.0
    %2496 = vmatpush1.msra.mxu0 0.0
    %2497 = vmatprep.subr.mxu0 0.0
    %2498 = vmatpush1.msra.mxu0 0.0
    %2499 = vmatprep.subr.mxu0 0.0
    %2500 = vmatpush1.msra.mxu0 0.0
    %2501 = vmatprep.subr.mxu0 0.0
    %2502 = vmatpush1.msra.mxu0 0.0
    %2503 = vmatprep.subr.mxu0 0.0
    %2504 = vmatpush1.msra.mxu0 0.0
    %2505 = vmatprep.subr.mxu0 0.0
    %2506 = vmatpush1.msra.mxu0 0.0
    %2507 = vmatprep.subr.mxu0 0.0
    %2508 = vmatpush1.msra.mxu0 0.0
    %2509 = vmatprep.subr.mxu0 0.0
    %2510 = vmatpush1.msra.mxu0 0.0
    %2511 = vmatprep.subr.mxu0 0.0
    %2512 = vmatpush1.msra.mxu0 0.0
    %2513 = vmatprep.subr.mxu0 0.0
    %2514 = vmatpush1.msra.mxu0 0.0
    %2515 = vmatprep.subr.mxu0 0.0
    %2516 = vmatpush1.msra.mxu0 0.0
    %2517 = vmatprep.subr.mxu0 0.0
    %2518 = vmatpush1.msra.mxu0 0.0
    %2519 = vmatprep.subr.mxu0 0.0
    %2520 = vmatpush1.msra.mxu0 0.0
    %2521 = vmatprep.subr.mxu0 0.0
    %2522 = vmatpush1.msra.mxu0 0.0
    %2523 = vmatprep.subr.mxu0 0.0
    %2524 = vmatpush1.msra.mxu0 0.0
    %2525 = vmatprep.subr.mxu0 0.0
    %2526 = vmatpush1.msra.mxu0 0.0
    %2527 = vmatprep.subr.mxu0 0.0
    %2528 = vmatpush1.msra.mxu0 0.0
    %2529 = vmatprep.subr.mxu0 0.0
    %2530 = vmatpush1.msra.mxu0 0.0
    %2531 = vmatprep.subr.mxu0 0.0
    %2532 = vmatpush1.msra.mxu0 0.0
    %2533 = vmatprep.subr.mxu0 0.0
    %2534 = vmatpush1.msra.mxu0 0.0
    %2535 = vmatprep.subr.mxu0 0.0
    %2536 = vmatpush1.msra.mxu0 0.0
    %2537 = vmatprep.mubr.f32.mxu0 0.0
    %v2538 = vand.u32 %v2380, 4294901760
    %2539 = vmatmul.mubr.f32.gmra.mrb[0].mxu0 %v2538
    %v2540 = vpop.f32.mrb[0].mxu0
    %v2541 = vadd.f32 %v2455, %v2540
    %v2542 = vpop.f32.mrb[0].mxu0
    %2543 = vmatprep.mubr.f32.mxu0 0.0
    %v2544 = vand.u32 %v2380, 4294901760
    %2545 = vmatmul.mubr.f32.gmra.mrb[0].mxu0 %v2544
    %v2546 = vpop.f32.mrb[0].mxu0
    %v2547 = vadd.f32 %v2465, %v2546
    %v2548 = vpop.f32.mrb[0].mxu0
    %2549 = vdwg.mxu0
    %2550 = vmatprep.subr.mxu0 0.0
    %v2551 = vand.u32 %v79, 4294901760
    %v2552 = vsub.f32 %v79, %v2551
    %2553 = vmatpush1.msra.mxu0 %v2552
    %2554 = vmatprep.subr.mxu0 0.0
    %2555 = vmatpush1.msra.mxu0 0.0
    %2556 = vmatprep.subr.mxu0 0.0
    %2557 = vmatpush1.msra.mxu0 0.0
    %2558 = vmatprep.subr.mxu0 0.0
    %2559 = vmatpush1.msra.mxu0 0.0
    %2560 = vmatprep.subr.mxu0 0.0
    %2561 = vmatpush1.msra.mxu0 0.0
    %2562 = vmatprep.subr.mxu0 0.0
    %2563 = vmatpush1.msra.mxu0 0.0
    %2564 = vmatprep.subr.mxu0 0.0
    %2565 = vmatpush1.msra.mxu0 0.0
    %2566 = vmatprep.subr.mxu0 0.0
    %2567 = vmatpush1.msra.mxu0 0.0
    %2568 = vmatprep.subr.mxu0 0.0
    %2569 = vmatpush1.msra.mxu0 0.0
    %2570 = vmatprep.subr.mxu0 0.0
    %2571 = vmatpush1.msra.mxu0 0.0
    %2572 = vmatprep.subr.mxu0 0.0
    %2573 = vmatpush1.msra.mxu0 0.0
    %2574 = vmatprep.subr.mxu0 0.0
    %2575 = vmatpush1.msra.mxu0 0.0
    %2576 = vmatprep.subr.mxu0 0.0
    %2577 = vmatpush1.msra.mxu0 0.0
    %2578 = vmatprep.subr.mxu0 0.0
    %2579 = vmatpush1.msra.mxu0 0.0
    %2580 = vmatprep.subr.mxu0 0.0
    %2581 = vmatpush1.msra.mxu0 0.0
    %2582 = vmatprep.subr.mxu0 0.0
    %2583 = vmatpush1.msra.mxu0 0.0
    %2584 = vmatprep.subr.mxu0 0.0
    %2585 = vmatpush1.msra.mxu0 0.0
    %2586 = vmatprep.subr.mxu0 0.0
    %2587 = vmatpush1.msra.mxu0 0.0
    %2588 = vmatprep.subr.mxu0 0.0
    %2589 = vmatpush1.msra.mxu0 0.0
    %2590 = vmatprep.subr.mxu0 0.0
    %2591 = vmatpush1.msra.mxu0 0.0
    %2592 = vmatprep.subr.mxu0 0.0
    %2593 = vmatpush1.msra.mxu0 0.0
    %2594 = vmatprep.subr.mxu0 0.0
    %2595 = vmatpush1.msra.mxu0 0.0
    %2596 = vmatprep.subr.mxu0 0.0
    %2597 = vmatpush1.msra.mxu0 0.0
    %2598 = vmatprep.subr.mxu0 0.0
    %2599 = vmatpush1.msra.mxu0 0.0
    %2600 = vmatprep.subr.mxu0 0.0
    %2601 = vmatpush1.msra.mxu0 0.0
    %2602 = vmatprep.subr.mxu0 0.0
    %2603 = vmatpush1.msra.mxu0 0.0
    %2604 = vmatprep.subr.mxu0 0.0
    %2605 = vmatpush1.msra.mxu0 0.0
    %2606 = vmatprep.subr.mxu0 0.0
    %2607 = vmatpush1.msra.mxu0 0.0
    %2608 = vmatprep.subr.mxu0 0.0
    %2609 = vmatpush1.msra.mxu0 0.0
    %2610 = vmatprep.subr.mxu0 0.0
    %2611 = vmatpush1.msra.mxu0 0.0
    %2612 = vmatprep.subr.mxu0 0.0
    %2613 = vmatpush1.msra.mxu0 0.0
    %2614 = vmatprep.subr.mxu0 0.0
    %2615 = vmatpush1.msra.mxu0 0.0
    %2616 = vmatprep.mubr.f32.mxu0 0.0
    %v2617 = vand.u32 %v2380, 4294901760
    %v2618 = vsub.f32 %v2380, %v2617
    %2619 = vmatmul.mubr.f32.gmra.mrb[0].mxu0 %v2618
    %v2620 = vpop.f32.mrb[0].mxu0
    %v2621 = vadd.f32 %v2541, %v2620
    %v2622 = vpop.f32.mrb[0].mxu0
    %2623 = vmatprep.mubr.f32.mxu0 0.0
    %v2624 = vand.u32 %v2380, 4294901760
    %v2625 = vsub.f32 %v2380, %v2624
    %2626 = vmatmul.mubr.f32.gmra.mrb[0].mxu0 %v2625
    %v2627 = vpop.f32.mrb[0].mxu0
    %v2628 = vadd.f32 %v2547, %v2627
    %v2629 = vpop.f32.mrb[0].mxu0
    %2630 = vdwg.mxu0
    %2631 = vmatprep.subr.mxu0 0.0
    %v2632 = vand.u32 %v79, 4294901760
    %2633 = vmatpush1.msra.mxu0 %v2632
    %2634 = vmatprep.subr.mxu0 0.0
    %2635 = vmatpush1.msra.mxu0 0.0
    %2636 = vmatprep.subr.mxu0 0.0
    %2637 = vmatpush1.msra.mxu0 0.0
    %2638 = vmatprep.subr.mxu0 0.0
    %2639 = vmatpush1.msra.mxu0 0.0
    %2640 = vmatprep.subr.mxu0 0.0
    %2641 = vmatpush1.msra.mxu0 0.0
    %2642 = vmatprep.subr.mxu0 0.0
    %2643 = vmatpush1.msra.mxu0 0.0
    %2644 = vmatprep.subr.mxu0 0.0
    %2645 = vmatpush1.msra.mxu0 0.0
    %2646 = vmatprep.subr.mxu0 0.0
    %2647 = vmatpush1.msra.mxu0 0.0
    %2648 = vmatprep.subr.mxu0 0.0
    %2649 = vmatpush1.msra.mxu0 0.0
    %2650 = vmatprep.subr.mxu0 0.0
    %2651 = vmatpush1.msra.mxu0 0.0
    %2652 = vmatprep.subr.mxu0 0.0
    %2653 = vmatpush1.msra.mxu0 0.0
    %2654 = vmatprep.subr.mxu0 0.0
    %2655 = vmatpush1.msra.mxu0 0.0
    %2656 = vmatprep.subr.mxu0 0.0
    %2657 = vmatpush1.msra.mxu0 0.0
    %2658 = vmatprep.subr.mxu0 0.0
    %2659 = vmatpush1.msra.mxu0 0.0
    %2660 = vmatprep.subr.mxu0 0.0
    %2661 = vmatpush1.msra.mxu0 0.0
    %2662 = vmatprep.subr.mxu0 0.0
    %2663 = vmatpush1.msra.mxu0 0.0
    %2664 = vmatprep.subr.mxu0 0.0
    %2665 = vmatpush1.msra.mxu0 0.0
    %2666 = vmatprep.subr.mxu0 0.0
    %2667 = vmatpush1.msra.mxu0 0.0
    %2668 = vmatprep.subr.mxu0 0.0
    %2669 = vmatpush1.msra.mxu0 0.0
    %2670 = vmatprep.subr.mxu0 0.0
    %2671 = vmatpush1.msra.mxu0 0.0
    %2672 = vmatprep.subr.mxu0 0.0
    %2673 = vmatpush1.msra.mxu0 0.0
    %2674 = vmatprep.subr.mxu0 0.0
    %2675 = vmatpush1.msra.mxu0 0.0
    %2676 = vmatprep.subr.mxu0 0.0
    %2677 = vmatpush1.msra.mxu0 0.0
    %2678 = vmatprep.subr.mxu0 0.0
    %2679 = vmatpush1.msra.mxu0 0.0
    %2680 = vmatprep.subr.mxu0 0.0
    %2681 = vmatpush1.msra.mxu0 0.0
    %2682 = vmatprep.subr.mxu0 0.0
    %2683 = vmatpush1.msra.mxu0 0.0
    %2684 = vmatprep.subr.mxu0 0.0
    %2685 = vmatpush1.msra.mxu0 0.0
    %2686 = vmatprep.subr.mxu0 0.0
    %2687 = vmatpush1.msra.mxu0 0.0
    %2688 = vmatprep.subr.mxu0 0.0
    %2689 = vmatpush1.msra.mxu0 0.0
    %2690 = vmatprep.subr.mxu0 0.0
    %2691 = vmatpush1.msra.mxu0 0.0
    %2692 = vmatprep.subr.mxu0 0.0
    %2693 = vmatpush1.msra.mxu0 0.0
    %2694 = vmatprep.subr.mxu0 0.0
    %2695 = vmatpush1.msra.mxu0 0.0
    %2696 = vmatprep.mubr.f32.mxu0 0.0
    %v2697 = vand.u32 %v2380, 4294901760
    %v2698 = vsub.f32 %v2380, %v2697
    %v2699 = vand.u32 %v2698, 4294901760
    %2700 = vmatmul.mubr.f32.gmra.mrb[0].mxu0 %v2699
    %v2701 = vpop.f32.mrb[0].mxu0
    %v2702 = vadd.f32 %v2621, %v2701
    %v2703 = vpop.f32.mrb[0].mxu0
    %2704 = vmatprep.mubr.f32.mxu0 0.0
    %v2705 = vand.u32 %v2380, 4294901760
    %v2706 = vsub.f32 %v2380, %v2705
    %v2707 = vand.u32 %v2706, 4294901760
    %2708 = vmatmul.mubr.f32.gmra.mrb[0].mxu0 %v2707
    %v2709 = vpop.f32.mrb[0].mxu0
    %v2710 = vadd.f32 %v2628, %v2709
    %v2711 = vpop.f32.mrb[0].mxu0
    %2712 = vdwg.mxu0
    %2713 = vmatprep.subr.mxu0 0.0
    %v2714 = vand.u32 %v79, 4294901760
    %v2715 = vsub.f32 %v79, %v2714
    %v2716 = vand.u32 %v2715, 4294901760
    %2717 = vmatpush1.msra.mxu0 %v2716
    %2718 = vmatprep.subr.mxu0 0.0
    %2719 = vmatpush1.msra.mxu0 0.0
    %2720 = vmatprep.subr.mxu0 0.0
    %2721 = vmatpush1.msra.mxu0 0.0
    %2722 = vmatprep.subr.mxu0 0.0
    %2723 = vmatpush1.msra.mxu0 0.0
    %2724 = vmatprep.subr.mxu0 0.0
    %2725 = vmatpush1.msra.mxu0 0.0
    %2726 = vmatprep.subr.mxu0 0.0
    %2727 = vmatpush1.msra.mxu0 0.0
    %2728 = vmatprep.subr.mxu0 0.0
    %2729 = vmatpush1.msra.mxu0 0.0
    %2730 = vmatprep.subr.mxu0 0.0
    %2731 = vmatpush1.msra.mxu0 0.0
    %2732 = vmatprep.subr.mxu0 0.0
    %2733 = vmatpush1.msra.mxu0 0.0
    %2734 = vmatprep.subr.mxu0 0.0
    %2735 = vmatpush1.msra.mxu0 0.0
    %2736 = vmatprep.subr.mxu0 0.0
    %2737 = vmatpush1.msra.mxu0 0.0
    %2738 = vmatprep.subr.mxu0 0.0
    %2739 = vmatpush1.msra.mxu0 0.0
    %2740 = vmatprep.subr.mxu0 0.0
    %2741 = vmatpush1.msra.mxu0 0.0
    %2742 = vmatprep.subr.mxu0 0.0
    %2743 = vmatpush1.msra.mxu0 0.0
    %2744 = vmatprep.subr.mxu0 0.0
    %2745 = vmatpush1.msra.mxu0 0.0
    %2746 = vmatprep.subr.mxu0 0.0
    %2747 = vmatpush1.msra.mxu0 0.0
    %2748 = vmatprep.subr.mxu0 0.0
    %2749 = vmatpush1.msra.mxu0 0.0
    %2750 = vmatprep.subr.mxu0 0.0
    %2751 = vmatpush1.msra.mxu0 0.0
    %2752 = vmatprep.subr.mxu0 0.0
    %2753 = vmatpush1.msra.mxu0 0.0
    %2754 = vmatprep.subr.mxu0 0.0
    %2755 = vmatpush1.msra.mxu0 0.0
    %2756 = vmatprep.subr.mxu0 0.0
    %2757 = vmatpush1.msra.mxu0 0.0
    %2758 = vmatprep.subr.mxu0 0.0
    %2759 = vmatpush1.msra.mxu0 0.0
    %2760 = vmatprep.subr.mxu0 0.0
    %2761 = vmatpush1.msra.mxu0 0.0
    %2762 = vmatprep.subr.mxu0 0.0
    %2763 = vmatpush1.msra.mxu0 0.0
    %2764 = vmatprep.subr.mxu0 0.0
    %2765 = vmatpush1.msra.mxu0 0.0
    %2766 = vmatprep.subr.mxu0 0.0
    %2767 = vmatpush1.msra.mxu0 0.0
    %2768 = vmatprep.subr.mxu0 0.0
    %2769 = vmatpush1.msra.mxu0 0.0
    %2770 = vmatprep.subr.mxu0 0.0
    %2771 = vmatpush1.msra.mxu0 0.0
    %2772 = vmatprep.subr.mxu0 0.0
    %2773 = vmatpush1.msra.mxu0 0.0
    %2774 = vmatprep.subr.mxu0 0.0
    %2775 = vmatpush1.msra.mxu0 0.0
    %2776 = vmatprep.subr.mxu0 0.0
    %2777 = vmatpush1.msra.mxu0 0.0
    %2778 = vmatprep.subr.mxu0 0.0
    %2779 = vmatpush1.msra.mxu0 0.0
    %2780 = vmatprep.mubr.f32.mxu0 0.0
    %v2781 = vand.u32 %v2380, 4294901760
    %2782 = vmatmul.mubr.f32.gmra.mrb[0].mxu0 %v2781
    %v2783 = vpop.f32.mrb[0].mxu0
    %v2784 = vadd.f32 %v2702, %v2783
    %v2785 = vpop.f32.mrb[0].mxu0
    %2786 = vmatprep.mubr.f32.mxu0 0.0
    %v2787 = vand.u32 %v2380, 4294901760
    %2788 = vmatmul.mubr.f32.gmra.mrb[0].mxu0 %v2787
    %v2789 = vpop.f32.mrb[0].mxu0
    %v2790 = vadd.f32 %v2710, %v2789
    %v2791 = vpop.f32.mrb[0].mxu0
    %2792 = vdwg.mxu0
    %2793 = vmatprep.subr.mxu0 0.0
    %v2794 = vand.u32 %v79, 4294901760
    %2795 = vmatpush1.msra.mxu0 %v2794
    %2796 = vmatprep.subr.mxu0 0.0
    %2797 = vmatpush1.msra.mxu0 0.0
    %2798 = vmatprep.subr.mxu0 0.0
    %2799 = vmatpush1.msra.mxu0 0.0
    %2800 = vmatprep.subr.mxu0 0.0
    %2801 = vmatpush1.msra.mxu0 0.0
    %2802 = vmatprep.subr.mxu0 0.0
    %2803 = vmatpush1.msra.mxu0 0.0
    %2804 = vmatprep.subr.mxu0 0.0
    %2805 = vmatpush1.msra.mxu0 0.0
    %2806 = vmatprep.subr.mxu0 0.0
    %2807 = vmatpush1.msra.mxu0 0.0
    %2808 = vmatprep.subr.mxu0 0.0
    %2809 = vmatpush1.msra.mxu0 0.0
    %2810 = vmatprep.subr.mxu0 0.0
    %2811 = vmatpush1.msra.mxu0 0.0
    %2812 = vmatprep.subr.mxu0 0.0
    %2813 = vmatpush1.msra.mxu0 0.0
    %2814 = vmatprep.subr.mxu0 0.0
    %2815 = vmatpush1.msra.mxu0 0.0
    %2816 = vmatprep.subr.mxu0 0.0
    %2817 = vmatpush1.msra.mxu0 0.0
    %2818 = vmatprep.subr.mxu0 0.0
    %2819 = vmatpush1.msra.mxu0 0.0
    %2820 = vmatprep.subr.mxu0 0.0
    %2821 = vmatpush1.msra.mxu0 0.0
    %2822 = vmatprep.subr.mxu0 0.0
    %2823 = vmatpush1.msra.mxu0 0.0
    %2824 = vmatprep.subr.mxu0 0.0
    %2825 = vmatpush1.msra.mxu0 0.0
    %2826 = vmatprep.subr.mxu0 0.0
    %2827 = vmatpush1.msra.mxu0 0.0
    %2828 = vmatprep.subr.mxu0 0.0
    %2829 = vmatpush1.msra.mxu0 0.0
    %2830 = vmatprep.subr.mxu0 0.0
    %2831 = vmatpush1.msra.mxu0 0.0
    %2832 = vmatprep.subr.mxu0 0.0
    %2833 = vmatpush1.msra.mxu0 0.0
    %2834 = vmatprep.subr.mxu0 0.0
    %2835 = vmatpush1.msra.mxu0 0.0
    %2836 = vmatprep.subr.mxu0 0.0
    %2837 = vmatpush1.msra.mxu0 0.0
    %2838 = vmatprep.subr.mxu0 0.0
    %2839 = vmatpush1.msra.mxu0 0.0
    %2840 = vmatprep.subr.mxu0 0.0
    %2841 = vmatpush1.msra.mxu0 0.0
    %2842 = vmatprep.subr.mxu0 0.0
    %2843 = vmatpush1.msra.mxu0 0.0
    %2844 = vmatprep.subr.mxu0 0.0
    %2845 = vmatpush1.msra.mxu0 0.0
    %2846 = vmatprep.subr.mxu0 0.0
    %2847 = vmatpush1.msra.mxu0 0.0
    %2848 = vmatprep.subr.mxu0 0.0
    %2849 = vmatpush1.msra.mxu0 0.0
    %2850 = vmatprep.subr.mxu0 0.0
    %2851 = vmatpush1.msra.mxu0 0.0
    %2852 = vmatprep.subr.mxu0 0.0
    %2853 = vmatpush1.msra.mxu0 0.0
    %2854 = vmatprep.subr.mxu0 0.0
    %2855 = vmatpush1.msra.mxu0 0.0
    %2856 = vmatprep.subr.mxu0 0.0
    %2857 = vmatpush1.msra.mxu0 0.0
    %2858 = vmatprep.mubr.f32.mxu0 0.0
    %v2859 = vand.u32 %v2380, 4294901760
    %2860 = vmatmul.mubr.f32.gmra.mrb[0].mxu0 %v2859
    %v2861 = vpop.f32.mrb[0].mxu0
    %v2862 = vadd.f32 %v2784, %v2861
    %v2863 = vpop.f32.mrb[0].mxu0
    %2864 = vmatprep.mubr.f32.mxu0 0.0
    %v2865 = vand.u32 %v2380, 4294901760
    %2866 = vmatmul.mubr.f32.gmra.mrb[0].mxu0 %v2865
    %v2867 = vpop.f32.mrb[0].mxu0
    %v2868 = vadd.f32 %v2790, %v2867
    %v2869 = vpop.f32.mrb[0].mxu0
    %2870 = vdwg.mxu0
    %v2871 = vrsqrt.pop %v2862
    %v2872 = vrsqrt.pop %v2868
    %v2873 = vmul.f32 %v1682, %v2871
    %v2874 = vmul.f32 %v1683, %v2872
    %vm2875 = vcmp.ge.f32.partialorder %v2873, 0.0
    %vm2876 = vcmp.ge.f32.partialorder %v2874, 0.0
    %v2877 = vstv %s62
    %v2878 = vmul.f32 %v2877, %v2873
    %v2879 = vmul.f32 %v2877, %v2874
    %v2880 = vsel %vm2875, %v2873, %v2878
    %v2881 = vsel %vm2876, %v2874, %v2879
    %v2882 = vpack.c.bf16 %v2881, %v2880
    %v2884 = vshrl.u32 %v2882, 16
    %v2886 = vrot.slane %v2884, 7
    %v2888 = vshll.u32 %v2882, 16
    %v2890 = vor.u32 %v2886, %v2888
    %v2892 = vsel %vm134, %v2886, %v2890
    %v2893 = vrot.slane %v2888, 1
    %v2894 = vor.u32 %v2884, %v2893
    %v2897 = vsel %vm147, %v2894, %v2893
    %v2898 = vsel %vm156, %v2897, %v2892
    %v2899 = vsel %vm165, %v2892, %v2897
    %v2900 = vld [vmem:[#allocation6] sm:$0xf]
    %v2901 = vld [vmem:[#allocation6 + $0x4] sm:$0xf]
    %v2902 = vld [vmem:[#allocation6 + $0x8] sm:$0xf]
    %v2903 = vld [vmem:[#allocation6 + $0xc] sm:$0xf]
    %v2904 = vld [vmem:[#allocation6 + $0x10] sm:$0xf]
    %v2905 = vld [vmem:[#allocation6 + $0x14] sm:$0xf]
    %v2906 = vld [vmem:[#allocation6 + $0x18] sm:$0xf]
    %v2907 = vld [vmem:[#allocation6 + $0x1c] sm:$0xf]
    %v2908 = vld [vmem:[#allocation6 + $0x20] sm:$0xf]
    %v2909 = vld [vmem:[#allocation6 + $0x24] sm:$0xf]
    %v2910 = vld [vmem:[#allocation6 + $0x28] sm:$0xf]
    %v2911 = vld [vmem:[#allocation6 + $0x2c] sm:$0xf]
    %v2912 = vld [vmem:[#allocation6 + $0x30] sm:$0xf]
    %v2913 = vld [vmem:[#allocation6 + $0x34] sm:$0xf]
    %v2914 = vld [vmem:[#allocation6 + $0x38] sm:$0xf]
    %v2915 = vld [vmem:[#allocation6 + $0x3c] sm:$0xf]
    %s2916 = scalar_lea.vmem [#allocation6], 64
    %v2917 = vld [vmem:[%s2916] sm:$0xf]
    %v2918 = vld [vmem:[%s2916 + $0x4] sm:$0xf]
    %v2919 = vld [vmem:[%s2916 + $0x8] sm:$0xf]
    %v2920 = vld [vmem:[%s2916 + $0xc] sm:$0xf]
    %v2921 = vld [vmem:[%s2916 + $0x10] sm:$0xf]
    %v2922 = vld [vmem:[%s2916 + $0x14] sm:$0xf]
    %v2923 = vld [vmem:[%s2916 + $0x18] sm:$0xf]
    %v2924 = vld [vmem:[%s2916 + $0x1c] sm:$0xf]
    %v2925 = vld [vmem:[%s2916 + $0x20] sm:$0xf]
    %v2926 = vld [vmem:[%s2916 + $0x24] sm:$0xf]
    %v2927 = vld [vmem:[%s2916 + $0x28] sm:$0xf]
    %v2928 = vld [vmem:[%s2916 + $0x2c] sm:$0xf]
    %v2929 = vld [vmem:[%s2916 + $0x30] sm:$0xf]
    %v2930 = vld [vmem:[%s2916 + $0x34] sm:$0xf]
    %v2931 = vld [vmem:[%s2916 + $0x38] sm:$0xf]
    %v2932 = vld [vmem:[%s2916 + $0x3c] sm:$0xf]
    %v2949 = vunpack.c.l.b16 %v2917
    %v2950 = vunpack.c.l.b16 %v2918
    %v2951 = vunpack.c.l.b16 %v2919
    %v2952 = vunpack.c.l.b16 %v2920
    %v2953 = vunpack.c.l.b16 %v2921
    %v2954 = vunpack.c.l.b16 %v2922
    %v2955 = vunpack.c.l.b16 %v2923
    %v2956 = vunpack.c.l.b16 %v2924
    %v2957 = vunpack.c.l.b16 %v2925
    %v2958 = vunpack.c.l.b16 %v2926
    %v2959 = vunpack.c.l.b16 %v2927
    %v2960 = vunpack.c.l.b16 %v2928
    %v2961 = vunpack.c.l.b16 %v2929
    %v2962 = vunpack.c.l.b16 %v2930
    %v2963 = vunpack.c.l.b16 %v2931
    %v2964 = vunpack.c.l.b16 %v2932
    %v2965 = vpack.c.b16 %v2950, %v2949
    %v2966 = vpack.c.b16 %v2952, %v2951
    %v2967 = vpack.c.b16 %v2954, %v2953
    %v2968 = vpack.c.b16 %v2956, %v2955
    %v2969 = vpack.c.b16 %v2958, %v2957
    %v2970 = vpack.c.b16 %v2960, %v2959
    %v2971 = vpack.c.b16 %v2962, %v2961
    %v2972 = vpack.c.b16 %v2964, %v2963
    %2981 = vmatprep.subr.bf16.mxu0 0
    %2982 = vmatpush1.bf16.msra.mxu0 %v2965
    %2983 = vmatprep.subr.bf16.mxu0 0
    %2984 = vmatpush1.bf16.msra.mxu0 %v2966
    %2985 = vmatprep.subr.bf16.mxu0 0
    %2986 = vmatpush1.bf16.msra.mxu0 %v2967
    %2987 = vmatprep.subr.bf16.mxu0 0
    %2988 = vmatpush1.bf16.msra.mxu0 %v2968
    %2989 = vmatprep.subr.bf16.mxu0 0
    %2990 = vmatpush1.bf16.msra.mxu0 %v2969
    %2991 = vmatprep.subr.bf16.mxu0 0
    %2992 = vmatpush1.bf16.msra.mxu0 %v2970
    %2993 = vmatprep.subr.bf16.mxu0 0
    %2994 = vmatpush1.bf16.msra.mxu0 %v2971
    %2995 = vmatprep.subr.bf16.mxu0 0
    %2996 = vmatpush1.bf16.msra.mxu0 %v2972
    %2997 = vmatprep.subr.bf16.mxu0 0
    %2998 = vmatpush1.bf16.msra.mxu0 0
    %2999 = vmatprep.subr.bf16.mxu0 0
    %3000 = vmatpush1.bf16.msra.mxu0 0
    %3001 = vmatprep.subr.bf16.mxu0 0
    %3002 = vmatpush1.bf16.msra.mxu0 0
    %3003 = vmatprep.subr.bf16.mxu0 0
    %3004 = vmatpush1.bf16.msra.mxu0 0
    %3005 = vmatprep.subr.bf16.mxu0 0
    %3006 = vmatpush1.bf16.msra.mxu0 0
    %3007 = vmatprep.subr.bf16.mxu0 0
    %3008 = vmatpush1.bf16.msra.mxu0 0
    %3009 = vmatprep.subr.bf16.mxu0 0
    %3010 = vmatpush1.bf16.msra.mxu0 0
    %3011 = vmatprep.subr.bf16.mxu0 0
    %3012 = vmatpush1.bf16.msra.mxu0 0
    %3013 = vmatprep.mubr.bf16.mxu0 0
    %3014 = vmatmul.mubr.bf16.gmra.mrb[0].mxu0 %v2882
    %v3015 = vpop.f32.mrb[0].mxu0
    %v3016 = vadd.f32 0.0, %v3015
    %v3017 = vpop.f32.mrb[0].mxu0
    %v3018 = vpop.f32.mrb[0].mxu0
    %v3019 = vadd.f32 0.0, %v3018
    %v3020 = vpop.f32.mrb[0].mxu0
    %3021 = vdwg.mxu0
    %v3038 = vunpack.c.l.b16 %v2900
    %v3039 = vunpack.c.l.b16 %v2901
    %v3040 = vunpack.c.l.b16 %v2902
    %v3041 = vunpack.c.l.b16 %v2903
    %v3042 = vunpack.c.l.b16 %v2904
    %v3043 = vunpack.c.l.b16 %v2905
    %v3044 = vunpack.c.l.b16 %v2906
    %v3045 = vunpack.c.l.b16 %v2907
    %v3046 = vunpack.c.l.b16 %v2908
    %v3047 = vunpack.c.l.b16 %v2909
    %v3048 = vunpack.c.l.b16 %v2910
    %v3049 = vunpack.c.l.b16 %v2911
    %v3050 = vunpack.c.l.b16 %v2912
    %v3051 = vunpack.c.l.b16 %v2913
    %v3052 = vunpack.c.l.b16 %v2914
    %v3053 = vunpack.c.l.b16 %v2915
    %v3054 = vpack.c.b16 %v3039, %v3038
    %v3055 = vpack.c.b16 %v3041, %v3040
    %v3056 = vpack.c.b16 %v3043, %v3042
    %v3057 = vpack.c.b16 %v3045, %v3044
    %v3058 = vpack.c.b16 %v3047, %v3046
    %v3059 = vpack.c.b16 %v3049, %v3048
    %v3060 = vpack.c.b16 %v3051, %v3050
    %v3061 = vpack.c.b16 %v3053, %v3052
    %3070 = vmatprep.subr.bf16.mxu0 0
    %3071 = vmatpush1.bf16.msra.mxu0 %v3054
    %3072 = vmatprep.subr.bf16.mxu0 0
    %3073 = vmatpush1.bf16.msra.mxu0 %v3055
    %3074 = vmatprep.subr.bf16.mxu0 0
    %3075 = vmatpush1.bf16.msra.mxu0 %v3056
    %3076 = vmatprep.subr.bf16.mxu0 0
    %3077 = vmatpush1.bf16.msra.mxu0 %v3057
    %3078 = vmatprep.subr.bf16.mxu0 0
    %3079 = vmatpush1.bf16.msra.mxu0 %v3058
    %3080 = vmatprep.subr.bf16.mxu0 0
    %3081 = vmatpush1.bf16.msra.mxu0 %v3059
    %3082 = vmatprep.subr.bf16.mxu0 0
    %3083 = vmatpush1.bf16.msra.mxu0 %v3060
    %3084 = vmatprep.subr.bf16.mxu0 0
    %3085 = vmatpush1.bf16.msra.mxu0 %v3061
    %3086 = vmatprep.subr.bf16.mxu0 0
    %3087 = vmatpush1.bf16.msra.mxu0 0
    %3088 = vmatprep.subr.bf16.mxu0 0
    %3089 = vmatpush1.bf16.msra.mxu0 0
    %3090 = vmatprep.subr.bf16.mxu0 0
    %3091 = vmatpush1.bf16.msra.mxu0 0
    %3092 = vmatprep.subr.bf16.mxu0 0
    %3093 = vmatpush1.bf16.msra.mxu0 0
    %3094 = vmatprep.subr.bf16.mxu0 0
    %3095 = vmatpush1.bf16.msra.mxu0 0
    %3096 = vmatprep.subr.bf16.mxu0 0
    %3097 = vmatpush1.bf16.msra.mxu0 0
    %3098 = vmatprep.subr.bf16.mxu0 0
    %3099 = vmatpush1.bf16.msra.mxu0 0
    %3100 = vmatprep.subr.bf16.mxu0 0
    %3101 = vmatpush1.bf16.msra.mxu0 0
    %3102 = vmatprep.mubr.bf16.mxu0 0
    %3103 = vmatmul.mubr.bf16.gmra.mrb[0].mxu0 %v2898
    %v3104 = vpop.f32.mrb[0].mxu0
    %v3105 = vadd.f32 %v3016, %v3104
    %v3106 = vpop.f32.mrb[0].mxu0
    %v3107 = vpop.f32.mrb[0].mxu0
    %v3108 = vadd.f32 %v3019, %v3107
    %v3109 = vpop.f32.mrb[0].mxu0
    %3110 = vdwg.mxu0
    %s3111 = scalar_lea.vmem [#allocation6], 128
    %v3112 = vld [vmem:[%s3111] sm:$0xf]
    %v3113 = vld [vmem:[%s3111 + $0x4] sm:$0xf]
    %v3114 = vld [vmem:[%s3111 + $0x8] sm:$0xf]
    %v3115 = vld [vmem:[%s3111 + $0xc] sm:$0xf]
    %v3116 = vld [vmem:[%s3111 + $0x10] sm:$0xf]
    %v3117 = vld [vmem:[%s3111 + $0x14] sm:$0xf]
    %v3118 = vld [vmem:[%s3111 + $0x18] sm:$0xf]
    %v3119 = vld [vmem:[%s3111 + $0x1c] sm:$0xf]
    %v3120 = vld [vmem:[%s3111 + $0x20] sm:$0xf]
    %v3121 = vld [vmem:[%s3111 + $0x24] sm:$0xf]
    %v3122 = vld [vmem:[%s3111 + $0x28] sm:$0xf]
    %v3123 = vld [vmem:[%s3111 + $0x2c] sm:$0xf]
    %v3124 = vld [vmem:[%s3111 + $0x30] sm:$0xf]
    %v3125 = vld [vmem:[%s3111 + $0x34] sm:$0xf]
    %v3126 = vld [vmem:[%s3111 + $0x38] sm:$0xf]
    %v3127 = vld [vmem:[%s3111 + $0x3c] sm:$0xf]
    %v3144 = vunpack.c.l.b16 %v3112
    %v3145 = vunpack.c.l.b16 %v3113
    %v3146 = vunpack.c.l.b16 %v3114
    %v3147 = vunpack.c.l.b16 %v3115
    %v3148 = vunpack.c.l.b16 %v3116
    %v3149 = vunpack.c.l.b16 %v3117
    %v3150 = vunpack.c.l.b16 %v3118
    %v3151 = vunpack.c.l.b16 %v3119
    %v3152 = vunpack.c.l.b16 %v3120
    %v3153 = vunpack.c.l.b16 %v3121
    %v3154 = vunpack.c.l.b16 %v3122
    %v3155 = vunpack.c.l.b16 %v3123
    %v3156 = vunpack.c.l.b16 %v3124
    %v3157 = vunpack.c.l.b16 %v3125
    %v3158 = vunpack.c.l.b16 %v3126
    %v3159 = vunpack.c.l.b16 %v3127
    %v3160 = vpack.c.b16 %v3145, %v3144
    %v3161 = vpack.c.b16 %v3147, %v3146
    %v3162 = vpack.c.b16 %v3149, %v3148
    %v3163 = vpack.c.b16 %v3151, %v3150
    %v3164 = vpack.c.b16 %v3153, %v3152
    %v3165 = vpack.c.b16 %v3155, %v3154
    %v3166 = vpack.c.b16 %v3157, %v3156
    %v3167 = vpack.c.b16 %v3159, %v3158
    %3176 = vmatprep.subr.bf16.mxu0 0
    %3177 = vmatpush1.bf16.msra.mxu0 %v3160
    %3178 = vmatprep.subr.bf16.mxu0 0
    %3179 = vmatpush1.bf16.msra.mxu0 %v3161
    %3180 = vmatprep.subr.bf16.mxu0 0
    %3181 = vmatpush1.bf16.msra.mxu0 %v3162
    %3182 = vmatprep.subr.bf16.mxu0 0
    %3183 = vmatpush1.bf16.msra.mxu0 %v3163
    %3184 = vmatprep.subr.bf16.mxu0 0
    %3185 = vmatpush1.bf16.msra.mxu0 %v3164
    %3186 = vmatprep.subr.bf16.mxu0 0
    %3187 = vmatpush1.bf16.msra.mxu0 %v3165
    %3188 = vmatprep.subr.bf16.mxu0 0
    %3189 = vmatpush1.bf16.msra.mxu0 %v3166
    %3190 = vmatprep.subr.bf16.mxu0 0
    %3191 = vmatpush1.bf16.msra.mxu0 %v3167
    %3192 = vmatprep.subr.bf16.mxu0 0
    %3193 = vmatpush1.bf16.msra.mxu0 0
    %3194 = vmatprep.subr.bf16.mxu0 0
    %3195 = vmatpush1.bf16.msra.mxu0 0
    %3196 = vmatprep.subr.bf16.mxu0 0
    %3197 = vmatpush1.bf16.msra.mxu0 0
    %3198 = vmatprep.subr.bf16.mxu0 0
    %3199 = vmatpush1.bf16.msra.mxu0 0
    %3200 = vmatprep.subr.bf16.mxu0 0
    %3201 = vmatpush1.bf16.msra.mxu0 0
    %3202 = vmatprep.subr.bf16.mxu0 0
    %3203 = vmatpush1.bf16.msra.mxu0 0
    %3204 = vmatprep.subr.bf16.mxu0 0
    %3205 = vmatpush1.bf16.msra.mxu0 0
    %3206 = vmatprep.subr.bf16.mxu0 0
    %3207 = vmatpush1.bf16.msra.mxu0 0
    %3208 = vmatprep.mubr.bf16.mxu0 0
    %3209 = vmatmul.mubr.bf16.gmra.mrb[0].mxu0 %v2899
    %v3210 = vpop.f32.mrb[0].mxu0
    %v3211 = vadd.f32 0.0, %v3210
    %v3212 = vpop.f32.mrb[0].mxu0
    %v3213 = vpop.f32.mrb[0].mxu0
    %v3214 = vadd.f32 0.0, %v3213
    %v3215 = vpop.f32.mrb[0].mxu0
    %3216 = vdwg.mxu0
    %v3217 = vadd.f32 %v3105, %v3211
    %v3218 = vadd.f32 %v3108, %v3214
    %v3219 = vld [vmem:[%s4] sm:$0x1]
    %v3221 = vlaneseq
    %v3222 = vshrl.u32 %v3221, 7
    %v3223 = vsub.s32 0, %v3222
    %v3224 = vrot.slane %v3219, %v3223
    %v3226 = vadd.f32 %v3217, %v3224
    %v3227 = vadd.f32 %v3218, %v3224
    %3228 = vmatprep.subr.mxu0 0.0
    %v3229 = vand.u32 %v63, 4294901760
    %3230 = vmatpush1.msra.mxu0 %v3229
    %3231 = vmatprep.subr.mxu0 0.0
    %v3232 = vand.u32 %v64, 4294901760
    %3233 = vmatpush1.msra.mxu0 %v3232
    %3234 = vmatprep.subr.mxu0 0.0
    %v3235 = vand.u32 %v65, 4294901760
    %3236 = vmatpush1.msra.mxu0 %v3235
    %3237 = vmatprep.subr.mxu0 0.0
    %v3238 = vand.u32 %v66, 4294901760
    %3239 = vmatpush1.msra.mxu0 %v3238
    %3240 = vmatprep.subr.mxu0 0.0
    %v3241 = vand.u32 %v67, 4294901760
    %3242 = vmatpush1.msra.mxu0 %v3241
    %3243 = vmatprep.subr.mxu0 0.0
    %v3244 = vand.u32 %v68, 4294901760
    %3245 = vmatpush1.msra.mxu0 %v3244
    %3246 = vmatprep.subr.mxu0 0.0
    %v3247 = vand.u32 %v69, 4294901760
    %3248 = vmatpush1.msra.mxu0 %v3247
    %3249 = vmatprep.subr.mxu0 0.0
    %v3250 = vand.u32 %v70, 4294901760
    %3251 = vmatpush1.msra.mxu0 %v3250
    %3252 = vmatprep.subr.mxu0 0.0
    %v3253 = vand.u32 %v71, 4294901760
    %3254 = vmatpush1.msra.mxu0 %v3253
    %3255 = vmatprep.subr.mxu0 0.0
    %v3256 = vand.u32 %v72, 4294901760
    %3257 = vmatpush1.msra.mxu0 %v3256
    %3258 = vmatprep.subr.mxu0 0.0
    %v3259 = vand.u32 %v73, 4294901760
    %3260 = vmatpush1.msra.mxu0 %v3259
    %3261 = vmatprep.subr.mxu0 0.0
    %v3262 = vand.u32 %v74, 4294901760
    %3263 = vmatpush1.msra.mxu0 %v3262
    %3264 = vmatprep.subr.mxu0 0.0
    %v3265 = vand.u32 %v75, 4294901760
    %3266 = vmatpush1.msra.mxu0 %v3265
    %3267 = vmatprep.subr.mxu0 0.0
    %v3268 = vand.u32 %v76, 4294901760
    %3269 = vmatpush1.msra.mxu0 %v3268
    %3270 = vmatprep.subr.mxu0 0.0
    %v3271 = vand.u32 %v77, 4294901760
    %3272 = vmatpush1.msra.mxu0 %v3271
    %3273 = vmatprep.subr.mxu0 0.0
    %v3274 = vand.u32 %v78, 4294901760
    %3275 = vmatpush1.msra.mxu0 %v3274
    %3276 = vmatprep.subr.mxu0 0.0
    %3277 = vmatpush1.msra.mxu0 0.0
    %3278 = vmatprep.subr.mxu0 0.0
    %3279 = vmatpush1.msra.mxu0 0.0
    %3280 = vmatprep.subr.mxu0 0.0
    %3281 = vmatpush1.msra.mxu0 0.0
    %3282 = vmatprep.subr.mxu0 0.0
    %3283 = vmatpush1.msra.mxu0 0.0
    %3284 = vmatprep.subr.mxu0 0.0
    %3285 = vmatpush1.msra.mxu0 0.0
    %3286 = vmatprep.subr.mxu0 0.0
    %3287 = vmatpush1.msra.mxu0 0.0
    %3288 = vmatprep.subr.mxu0 0.0
    %3289 = vmatpush1.msra.mxu0 0.0
    %3290 = vmatprep.subr.mxu0 0.0
    %3291 = vmatpush1.msra.mxu0 0.0
    %3292 = vmatprep.subr.mxu0 0.0
    %3293 = vmatpush1.msra.mxu0 0.0
    %3294 = vmatprep.subr.mxu0 0.0
    %3295 = vmatpush1.msra.mxu0 0.0
    %3296 = vmatprep.subr.mxu0 0.0
    %3297 = vmatpush1.msra.mxu0 0.0
    %3298 = vmatprep.subr.mxu0 0.0
    %3299 = vmatpush1.msra.mxu0 0.0
    %3300 = vmatprep.subr.mxu0 0.0
    %3301 = vmatpush1.msra.mxu0 0.0
    %3302 = vmatprep.subr.mxu0 0.0
    %3303 = vmatpush1.msra.mxu0 0.0
    %3304 = vmatprep.subr.mxu0 0.0
    %3305 = vmatpush1.msra.mxu0 0.0
    %3306 = vmatprep.subr.mxu0 0.0
    %3307 = vmatpush1.msra.mxu0 0.0
    %3308 = vmatprep.mubr.f32.mxu0 0.0
    %v3309 = vand.u32 %v3226, 4294901760
    %v3310 = vsub.f32 %v3226, %v3309
    %v3311 = vand.u32 %v3310, 4294901760
    %v3312 = vsub.f32 %v3310, %v3311
    %v3313 = vand.u32 %v3312, 4294901760
    %3314 = vmatmul.mubr.f32.gmra.mrb[0].mxu0 %v3313
    %v3315 = vpop.f32.mrb[0].mxu0
    %v3316 = vadd.f32 0.0, %v3315
    %v3317 = vpop.f32.mrb[0].mxu0
    %3318 = vmatprep.mubr.f32.mxu0 0.0
    %v3319 = vand.u32 %v3227, 4294901760
    %v3320 = vsub.f32 %v3227, %v3319
    %v3321 = vand.u32 %v3320, 4294901760
    %v3322 = vsub.f32 %v3320, %v3321
    %v3323 = vand.u32 %v3322, 4294901760
    %3324 = vmatmul.mubr.f32.gmra.mrb[0].mxu0 %v3323
    %v3325 = vpop.f32.mrb[0].mxu0
    %v3326 = vadd.f32 0.0, %v3325
    %v3327 = vpop.f32.mrb[0].mxu0
    %3328 = vdwg.mxu0
    %3329 = vmatprep.subr.mxu0 0.0
    %v3330 = vand.u32 %v63, 4294901760
    %v3331 = vsub.f32 %v63, %v3330
    %v3332 = vand.u32 %v3331, 4294901760
    %v3333 = vsub.f32 %v3331, %v3332
    %v3334 = vand.u32 %v3333, 4294901760
    %3335 = vmatpush1.msra.mxu0 %v3334
    %3336 = vmatprep.subr.mxu0 0.0
    %v3337 = vand.u32 %v64, 4294901760
    %v3338 = vsub.f32 %v64, %v3337
    %v3339 = vand.u32 %v3338, 4294901760
    %v3340 = vsub.f32 %v3338, %v3339
    %v3341 = vand.u32 %v3340, 4294901760
    %3342 = vmatpush1.msra.mxu0 %v3341
    %3343 = vmatprep.subr.mxu0 0.0
    %v3344 = vand.u32 %v65, 4294901760
    %v3345 = vsub.f32 %v65, %v3344
    %v3346 = vand.u32 %v3345, 4294901760
    %v3347 = vsub.f32 %v3345, %v3346
    %v3348 = vand.u32 %v3347, 4294901760
    %3349 = vmatpush1.msra.mxu0 %v3348
    %3350 = vmatprep.subr.mxu0 0.0
    %v3351 = vand.u32 %v66, 4294901760
    %v3352 = vsub.f32 %v66, %v3351
    %v3353 = vand.u32 %v3352, 4294901760
    %v3354 = vsub.f32 %v3352, %v3353
    %v3355 = vand.u32 %v3354, 4294901760
    %3356 = vmatpush1.msra.mxu0 %v3355
    %3357 = vmatprep.subr.mxu0 0.0
    %v3358 = vand.u32 %v67, 4294901760
    %v3359 = vsub.f32 %v67, %v3358
    %v3360 = vand.u32 %v3359, 4294901760
    %v3361 = vsub.f32 %v3359, %v3360
    %v3362 = vand.u32 %v3361, 4294901760
    %3363 = vmatpush1.msra.mxu0 %v3362
    %3364 = vmatprep.subr.mxu0 0.0
    %v3365 = vand.u32 %v68, 4294901760
    %v3366 = vsub.f32 %v68, %v3365
    %v3367 = vand.u32 %v3366, 4294901760
    %v3368 = vsub.f32 %v3366, %v3367
    %v3369 = vand.u32 %v3368, 4294901760
    %3370 = vmatpush1.msra.mxu0 %v3369
    %3371 = vmatprep.subr.mxu0 0.0
    %v3372 = vand.u32 %v69, 4294901760
    %v3373 = vsub.f32 %v69, %v3372
    %v3374 = vand.u32 %v3373, 4294901760
    %v3375 = vsub.f32 %v3373, %v3374
    %v3376 = vand.u32 %v3375, 4294901760
    %3377 = vmatpush1.msra.mxu0 %v3376
    %3378 = vmatprep.subr.mxu0 0.0
    %v3379 = vand.u32 %v70, 4294901760
    %v3380 = vsub.f32 %v70, %v3379
    %v3381 = vand.u32 %v3380, 4294901760
    %v3382 = vsub.f32 %v3380, %v3381
    %v3383 = vand.u32 %v3382, 4294901760
    %3384 = vmatpush1.msra.mxu0 %v3383
    %3385 = vmatprep.subr.mxu0 0.0
    %v3386 = vand.u32 %v71, 4294901760
    %v3387 = vsub.f32 %v71, %v3386
    %v3388 = vand.u32 %v3387, 4294901760
    %v3389 = vsub.f32 %v3387, %v3388
    %v3390 = vand.u32 %v3389, 4294901760
    %3391 = vmatpush1.msra.mxu0 %v3390
    %3392 = vmatprep.subr.mxu0 0.0
    %v3393 = vand.u32 %v72, 4294901760
    %v3394 = vsub.f32 %v72, %v3393
    %v3395 = vand.u32 %v3394, 4294901760
    %v3396 = vsub.f32 %v3394, %v3395
    %v3397 = vand.u32 %v3396, 4294901760
    %3398 = vmatpush1.msra.mxu0 %v3397
    %3399 = vmatprep.subr.mxu0 0.0
    %v3400 = vand.u32 %v73, 4294901760
    %v3401 = vsub.f32 %v73, %v3400
    %v3402 = vand.u32 %v3401, 4294901760
    %v3403 = vsub.f32 %v3401, %v3402
    %v3404 = vand.u32 %v3403, 4294901760
    %3405 = vmatpush1.msra.mxu0 %v3404
    %3406 = vmatprep.subr.mxu0 0.0
    %v3407 = vand.u32 %v74, 4294901760
    %v3408 = vsub.f32 %v74, %v3407
    %v3409 = vand.u32 %v3408, 4294901760
    %v3410 = vsub.f32 %v3408, %v3409
    %v3411 = vand.u32 %v3410, 4294901760
    %3412 = vmatpush1.msra.mxu0 %v3411
    %3413 = vmatprep.subr.mxu0 0.0
    %v3414 = vand.u32 %v75, 4294901760
    %v3415 = vsub.f32 %v75, %v3414
    %v3416 = vand.u32 %v3415, 4294901760
    %v3417 = vsub.f32 %v3415, %v3416
    %v3418 = vand.u32 %v3417, 4294901760
    %3419 = vmatpush1.msra.mxu0 %v3418
    %3420 = vmatprep.subr.mxu0 0.0
    %v3421 = vand.u32 %v76, 4294901760
    %v3422 = vsub.f32 %v76, %v3421
    %v3423 = vand.u32 %v3422, 4294901760
    %v3424 = vsub.f32 %v3422, %v3423
    %v3425 = vand.u32 %v3424, 4294901760
    %3426 = vmatpush1.msra.mxu0 %v3425
    %3427 = vmatprep.subr.mxu0 0.0
    %v3428 = vand.u32 %v77, 4294901760
    %v3429 = vsub.f32 %v77, %v3428
    %v3430 = vand.u32 %v3429, 4294901760
    %v3431 = vsub.f32 %v3429, %v3430
    %v3432 = vand.u32 %v3431, 4294901760
    %3433 = vmatpush1.msra.mxu0 %v3432
    %3434 = vmatprep.subr.mxu0 0.0
    %v3435 = vand.u32 %v78, 4294901760
    %v3436 = vsub.f32 %v78, %v3435
    %v3437 = vand.u32 %v3436, 4294901760
    %v3438 = vsub.f32 %v3436, %v3437
    %v3439 = vand.u32 %v3438, 4294901760
    %3440 = vmatpush1.msra.mxu0 %v3439
    %3441 = vmatprep.subr.mxu0 0.0
    %3442 = vmatpush1.msra.mxu0 0.0
    %3443 = vmatprep.subr.mxu0 0.0
    %3444 = vmatpush1.msra.mxu0 0.0
    %3445 = vmatprep.subr.mxu0 0.0
    %3446 = vmatpush1.msra.mxu0 0.0
    %3447 = vmatprep.subr.mxu0 0.0
    %3448 = vmatpush1.msra.mxu0 0.0
    %3449 = vmatprep.subr.mxu0 0.0
    %3450 = vmatpush1.msra.mxu0 0.0
    %3451 = vmatprep.subr.mxu0 0.0
    %3452 = vmatpush1.msra.mxu0 0.0
    %3453 = vmatprep.subr.mxu0 0.0
    %3454 = vmatpush1.msra.mxu0 0.0
    %3455 = vmatprep.subr.mxu0 0.0
    %3456 = vmatpush1.msra.mxu0 0.0
    %3457 = vmatprep.subr.mxu0 0.0
    %3458 = vmatpush1.msra.mxu0 0.0
    %3459 = vmatprep.subr.mxu0 0.0
    %3460 = vmatpush1.msra.mxu0 0.0
    %3461 = vmatprep.subr.mxu0 0.0
    %3462 = vmatpush1.msra.mxu0 0.0
    %3463 = vmatprep.subr.mxu0 0.0
    %3464 = vmatpush1.msra.mxu0 0.0
    %3465 = vmatprep.subr.mxu0 0.0
    %3466 = vmatpush1.msra.mxu0 0.0
    %3467 = vmatprep.subr.mxu0 0.0
    %3468 = vmatpush1.msra.mxu0 0.0
    %3469 = vmatprep.subr.mxu0 0.0
    %3470 = vmatpush1.msra.mxu0 0.0
    %3471 = vmatprep.subr.mxu0 0.0
    %3472 = vmatpush1.msra.mxu0 0.0
    %3473 = vmatprep.mubr.f32.mxu0 0.0
    %v3474 = vand.u32 %v3226, 4294901760
    %3475 = vmatmul.mubr.f32.gmra.mrb[0].mxu0 %v3474
    %v3476 = vpop.f32.mrb[0].mxu0
    %v3477 = vadd.f32 %v3316, %v3476
    %v3478 = vpop.f32.mrb[0].mxu0
    %3479 = vmatprep.mubr.f32.mxu0 0.0
    %v3480 = vand.u32 %v3227, 4294901760
    %3481 = vmatmul.mubr.f32.gmra.mrb[0].mxu0 %v3480
    %v3482 = vpop.f32.mrb[0].mxu0
    %v3483 = vadd.f32 %v3326, %v3482
    %v3484 = vpop.f32.mrb[0].mxu0
    %3485 = vdwg.mxu0
    %3486 = vmatprep.subr.mxu0 0.0
    %v3487 = vand.u32 %v63, 4294901760
    %v3488 = vsub.f32 %v63, %v3487
    %3489 = vmatpush1.msra.mxu0 %v3488
    %3490 = vmatprep.subr.mxu0 0.0
    %v3491 = vand.u32 %v64, 4294901760
    %v3492 = vsub.f32 %v64, %v3491
    %3493 = vmatpush1.msra.mxu0 %v3492
    %3494 = vmatprep.subr.mxu0 0.0
    %v3495 = vand.u32 %v65, 4294901760
    %v3496 = vsub.f32 %v65, %v3495
    %3497 = vmatpush1.msra.mxu0 %v3496
    %3498 = vmatprep.subr.mxu0 0.0
    %v3499 = vand.u32 %v66, 4294901760
    %v3500 = vsub.f32 %v66, %v3499
    %3501 = vmatpush1.msra.mxu0 %v3500
    %3502 = vmatprep.subr.mxu0 0.0
    %v3503 = vand.u32 %v67, 4294901760
    %v3504 = vsub.f32 %v67, %v3503
    %3505 = vmatpush1.msra.mxu0 %v3504
    %3506 = vmatprep.subr.mxu0 0.0
    %v3507 = vand.u32 %v68, 4294901760
    %v3508 = vsub.f32 %v68, %v3507
    %3509 = vmatpush1.msra.mxu0 %v3508
    %3510 = vmatprep.subr.mxu0 0.0
    %v3511 = vand.u32 %v69, 4294901760
    %v3512 = vsub.f32 %v69, %v3511
    %3513 = vmatpush1.msra.mxu0 %v3512
    %3514 = vmatprep.subr.mxu0 0.0
    %v3515 = vand.u32 %v70, 4294901760
    %v3516 = vsub.f32 %v70, %v3515
    %3517 = vmatpush1.msra.mxu0 %v3516
    %3518 = vmatprep.subr.mxu0 0.0
    %v3519 = vand.u32 %v71, 4294901760
    %v3520 = vsub.f32 %v71, %v3519
    %3521 = vmatpush1.msra.mxu0 %v3520
    %3522 = vmatprep.subr.mxu0 0.0
    %v3523 = vand.u32 %v72, 4294901760
    %v3524 = vsub.f32 %v72, %v3523
    %3525 = vmatpush1.msra.mxu0 %v3524
    %3526 = vmatprep.subr.mxu0 0.0
    %v3527 = vand.u32 %v73, 4294901760
    %v3528 = vsub.f32 %v73, %v3527
    %3529 = vmatpush1.msra.mxu0 %v3528
    %3530 = vmatprep.subr.mxu0 0.0
    %v3531 = vand.u32 %v74, 4294901760
    %v3532 = vsub.f32 %v74, %v3531
    %3533 = vmatpush1.msra.mxu0 %v3532
    %3534 = vmatprep.subr.mxu0 0.0
    %v3535 = vand.u32 %v75, 4294901760
    %v3536 = vsub.f32 %v75, %v3535
    %3537 = vmatpush1.msra.mxu0 %v3536
    %3538 = vmatprep.subr.mxu0 0.0
    %v3539 = vand.u32 %v76, 4294901760
    %v3540 = vsub.f32 %v76, %v3539
    %3541 = vmatpush1.msra.mxu0 %v3540
    %3542 = vmatprep.subr.mxu0 0.0
    %v3543 = vand.u32 %v77, 4294901760
    %v3544 = vsub.f32 %v77, %v3543
    %3545 = vmatpush1.msra.mxu0 %v3544
    %3546 = vmatprep.subr.mxu0 0.0
    %v3547 = vand.u32 %v78, 4294901760
    %v3548 = vsub.f32 %v78, %v3547
    %3549 = vmatpush1.msra.mxu0 %v3548
    %3550 = vmatprep.subr.mxu0 0.0
    %3551 = vmatpush1.msra.mxu0 0.0
    %3552 = vmatprep.subr.mxu0 0.0
    %3553 = vmatpush1.msra.mxu0 0.0
    %3554 = vmatprep.subr.mxu0 0.0
    %3555 = vmatpush1.msra.mxu0 0.0
    %3556 = vmatprep.subr.mxu0 0.0
    %3557 = vmatpush1.msra.mxu0 0.0
    %3558 = vmatprep.subr.mxu0 0.0
    %3559 = vmatpush1.msra.mxu0 0.0
    %3560 = vmatprep.subr.mxu0 0.0
    %3561 = vmatpush1.msra.mxu0 0.0
    %3562 = vmatprep.subr.mxu0 0.0
    %3563 = vmatpush1.msra.mxu0 0.0
    %3564 = vmatprep.subr.mxu0 0.0
    %3565 = vmatpush1.msra.mxu0 0.0
    %3566 = vmatprep.subr.mxu0 0.0
    %3567 = vmatpush1.msra.mxu0 0.0
    %3568 = vmatprep.subr.mxu0 0.0
    %3569 = vmatpush1.msra.mxu0 0.0
    %3570 = vmatprep.subr.mxu0 0.0
    %3571 = vmatpush1.msra.mxu0 0.0
    %3572 = vmatprep.subr.mxu0 0.0
    %3573 = vmatpush1.msra.mxu0 0.0
    %3574 = vmatprep.subr.mxu0 0.0
    %3575 = vmatpush1.msra.mxu0 0.0
    %3576 = vmatprep.subr.mxu0 0.0
    %3577 = vmatpush1.msra.mxu0 0.0
    %3578 = vmatprep.subr.mxu0 0.0
    %3579 = vmatpush1.msra.mxu0 0.0
    %3580 = vmatprep.subr.mxu0 0.0
    %3581 = vmatpush1.msra.mxu0 0.0
    %3582 = vmatprep.mubr.f32.mxu0 0.0
    %v3583 = vand.u32 %v3226, 4294901760
    %v3584 = vsub.f32 %v3226, %v3583
    %3585 = vmatmul.mubr.f32.gmra.mrb[0].mxu0 %v3584
    %v3586 = vpop.f32.mrb[0].mxu0
    %v3587 = vadd.f32 %v3477, %v3586
    %v3588 = vpop.f32.mrb[0].mxu0
    %3589 = vmatprep.mubr.f32.mxu0 0.0
    %v3590 = vand.u32 %v3227, 4294901760
    %v3591 = vsub.f32 %v3227, %v3590
    %3592 = vmatmul.mubr.f32.gmra.mrb[0].mxu0 %v3591
    %v3593 = vpop.f32.mrb[0].mxu0
    %v3594 = vadd.f32 %v3483, %v3593
    %v3595 = vpop.f32.mrb[0].mxu0
    %3596 = vdwg.mxu0
    %3597 = vmatprep.subr.mxu0 0.0
    %v3598 = vand.u32 %v63, 4294901760
    %3599 = vmatpush1.msra.mxu0 %v3598
    %3600 = vmatprep.subr.mxu0 0.0
    %v3601 = vand.u32 %v64, 4294901760
    %3602 = vmatpush1.msra.mxu0 %v3601
    %3603 = vmatprep.subr.mxu0 0.0
    %v3604 = vand.u32 %v65, 4294901760
    %3605 = vmatpush1.msra.mxu0 %v3604
    %3606 = vmatprep.subr.mxu0 0.0
    %v3607 = vand.u32 %v66, 4294901760
    %3608 = vmatpush1.msra.mxu0 %v3607
    %3609 = vmatprep.subr.mxu0 0.0
    %v3610 = vand.u32 %v67, 4294901760
    %3611 = vmatpush1.msra.mxu0 %v3610
    %3612 = vmatprep.subr.mxu0 0.0
    %v3613 = vand.u32 %v68, 4294901760
    %3614 = vmatpush1.msra.mxu0 %v3613
    %3615 = vmatprep.subr.mxu0 0.0
    %v3616 = vand.u32 %v69, 4294901760
    %3617 = vmatpush1.msra.mxu0 %v3616
    %3618 = vmatprep.subr.mxu0 0.0
    %v3619 = vand.u32 %v70, 4294901760
    %3620 = vmatpush1.msra.mxu0 %v3619
    %3621 = vmatprep.subr.mxu0 0.0
    %v3622 = vand.u32 %v71, 4294901760
    %3623 = vmatpush1.msra.mxu0 %v3622
    %3624 = vmatprep.subr.mxu0 0.0
    %v3625 = vand.u32 %v72, 4294901760
    %3626 = vmatpush1.msra.mxu0 %v3625
    %3627 = vmatprep.subr.mxu0 0.0
    %v3628 = vand.u32 %v73, 4294901760
    %3629 = vmatpush1.msra.mxu0 %v3628
    %3630 = vmatprep.subr.mxu0 0.0
    %v3631 = vand.u32 %v74, 4294901760
    %3632 = vmatpush1.msra.mxu0 %v3631
    %3633 = vmatprep.subr.mxu0 0.0
    %v3634 = vand.u32 %v75, 4294901760
    %3635 = vmatpush1.msra.mxu0 %v3634
    %3636 = vmatprep.subr.mxu0 0.0
    %v3637 = vand.u32 %v76, 4294901760
    %3638 = vmatpush1.msra.mxu0 %v3637
    %3639 = vmatprep.subr.mxu0 0.0
    %v3640 = vand.u32 %v77, 4294901760
    %3641 = vmatpush1.msra.mxu0 %v3640
    %3642 = vmatprep.subr.mxu0 0.0
    %v3643 = vand.u32 %v78, 4294901760
    %3644 = vmatpush1.msra.mxu0 %v3643
    %3645 = vmatprep.subr.mxu0 0.0
    %3646 = vmatpush1.msra.mxu0 0.0
    %3647 = vmatprep.subr.mxu0 0.0
    %3648 = vmatpush1.msra.mxu0 0.0
    %3649 = vmatprep.subr.mxu0 0.0
    %3650 = vmatpush1.msra.mxu0 0.0
    %3651 = vmatprep.subr.mxu0 0.0
    %3652 = vmatpush1.msra.mxu0 0.0
    %3653 = vmatprep.subr.mxu0 0.0
    %3654 = vmatpush1.msra.mxu0 0.0
    %3655 = vmatprep.subr.mxu0 0.0
    %3656 = vmatpush1.msra.mxu0 0.0
    %3657 = vmatprep.subr.mxu0 0.0
    %3658 = vmatpush1.msra.mxu0 0.0
    %3659 = vmatprep.subr.mxu0 0.0
    %3660 = vmatpush1.msra.mxu0 0.0
    %3661 = vmatprep.subr.mxu0 0.0
    %3662 = vmatpush1.msra.mxu0 0.0
    %3663 = vmatprep.subr.mxu0 0.0
    %3664 = vmatpush1.msra.mxu0 0.0
    %3665 = vmatprep.subr.mxu0 0.0
    %3666 = vmatpush1.msra.mxu0 0.0
    %3667 = vmatprep.subr.mxu0 0.0
    %3668 = vmatpush1.msra.mxu0 0.0
    %3669 = vmatprep.subr.mxu0 0.0
    %3670 = vmatpush1.msra.mxu0 0.0
    %3671 = vmatprep.subr.mxu0 0.0
    %3672 = vmatpush1.msra.mxu0 0.0
    %3673 = vmatprep.subr.mxu0 0.0
    %3674 = vmatpush1.msra.mxu0 0.0
    %3675 = vmatprep.subr.mxu0 0.0
    %3676 = vmatpush1.msra.mxu0 0.0
    %3677 = vmatprep.mubr.f32.mxu0 0.0
    %v3678 = vand.u32 %v3226, 4294901760
    %v3679 = vsub.f32 %v3226, %v3678
    %v3680 = vand.u32 %v3679, 4294901760
    %3681 = vmatmul.mubr.f32.gmra.mrb[0].mxu0 %v3680
    %v3682 = vpop.f32.mrb[0].mxu0
    %v3683 = vadd.f32 %v3587, %v3682
    %v3684 = vpop.f32.mrb[0].mxu0
    %3685 = vmatprep.mubr.f32.mxu0 0.0
    %v3686 = vand.u32 %v3227, 4294901760
    %v3687 = vsub.f32 %v3227, %v3686
    %v3688 = vand.u32 %v3687, 4294901760
    %3689 = vmatmul.mubr.f32.gmra.mrb[0].mxu0 %v3688
    %v3690 = vpop.f32.mrb[0].mxu0
    %v3691 = vadd.f32 %v3594, %v3690
    %v3692 = vpop.f32.mrb[0].mxu0
    %3693 = vdwg.mxu0
    %3694 = vmatprep.subr.mxu0 0.0
    %v3695 = vand.u32 %v63, 4294901760
    %v3696 = vsub.f32 %v63, %v3695
    %v3697 = vand.u32 %v3696, 4294901760
    %3698 = vmatpush1.msra.mxu0 %v3697
    %3699 = vmatprep.subr.mxu0 0.0
    %v3700 = vand.u32 %v64, 4294901760
    %v3701 = vsub.f32 %v64, %v3700
    %v3702 = vand.u32 %v3701, 4294901760
    %3703 = vmatpush1.msra.mxu0 %v3702
    %3704 = vmatprep.subr.mxu0 0.0
    %v3705 = vand.u32 %v65, 4294901760
    %v3706 = vsub.f32 %v65, %v3705
    %v3707 = vand.u32 %v3706, 4294901760
    %3708 = vmatpush1.msra.mxu0 %v3707
    %3709 = vmatprep.subr.mxu0 0.0
    %v3710 = vand.u32 %v66, 4294901760
    %v3711 = vsub.f32 %v66, %v3710
    %v3712 = vand.u32 %v3711, 4294901760
    %3713 = vmatpush1.msra.mxu0 %v3712
    %3714 = vmatprep.subr.mxu0 0.0
    %v3715 = vand.u32 %v67, 4294901760
    %v3716 = vsub.f32 %v67, %v3715
    %v3717 = vand.u32 %v3716, 4294901760
    %3718 = vmatpush1.msra.mxu0 %v3717
    %3719 = vmatprep.subr.mxu0 0.0
    %v3720 = vand.u32 %v68, 4294901760
    %v3721 = vsub.f32 %v68, %v3720
    %v3722 = vand.u32 %v3721, 4294901760
    %3723 = vmatpush1.msra.mxu0 %v3722
    %3724 = vmatprep.subr.mxu0 0.0
    %v3725 = vand.u32 %v69, 4294901760
    %v3726 = vsub.f32 %v69, %v3725
    %v3727 = vand.u32 %v3726, 4294901760
    %3728 = vmatpush1.msra.mxu0 %v3727
    %3729 = vmatprep.subr.mxu0 0.0
    %v3730 = vand.u32 %v70, 4294901760
    %v3731 = vsub.f32 %v70, %v3730
    %v3732 = vand.u32 %v3731, 4294901760
    %3733 = vmatpush1.msra.mxu0 %v3732
    %3734 = vmatprep.subr.mxu0 0.0
    %v3735 = vand.u32 %v71, 4294901760
    %v3736 = vsub.f32 %v71, %v3735
    %v3737 = vand.u32 %v3736, 4294901760
    %3738 = vmatpush1.msra.mxu0 %v3737
    %3739 = vmatprep.subr.mxu0 0.0
    %v3740 = vand.u32 %v72, 4294901760
    %v3741 = vsub.f32 %v72, %v3740
    %v3742 = vand.u32 %v3741, 4294901760
    %3743 = vmatpush1.msra.mxu0 %v3742
    %3744 = vmatprep.subr.mxu0 0.0
    %v3745 = vand.u32 %v73, 4294901760
    %v3746 = vsub.f32 %v73, %v3745
    %v3747 = vand.u32 %v3746, 4294901760
    %3748 = vmatpush1.msra.mxu0 %v3747
    %3749 = vmatprep.subr.mxu0 0.0
    %v3750 = vand.u32 %v74, 4294901760
    %v3751 = vsub.f32 %v74, %v3750
    %v3752 = vand.u32 %v3751, 4294901760
    %3753 = vmatpush1.msra.mxu0 %v3752
    %3754 = vmatprep.subr.mxu0 0.0
    %v3755 = vand.u32 %v75, 4294901760
    %v3756 = vsub.f32 %v75, %v3755
    %v3757 = vand.u32 %v3756, 4294901760
    %3758 = vmatpush1.msra.mxu0 %v3757
    %3759 = vmatprep.subr.mxu0 0.0
    %v3760 = vand.u32 %v76, 4294901760
    %v3761 = vsub.f32 %v76, %v3760
    %v3762 = vand.u32 %v3761, 4294901760
    %3763 = vmatpush1.msra.mxu0 %v3762
    %3764 = vmatprep.subr.mxu0 0.0
    %v3765 = vand.u32 %v77, 4294901760
    %v3766 = vsub.f32 %v77, %v3765
    %v3767 = vand.u32 %v3766, 4294901760
    %3768 = vmatpush1.msra.mxu0 %v3767
    %3769 = vmatprep.subr.mxu0 0.0
    %v3770 = vand.u32 %v78, 4294901760
    %v3771 = vsub.f32 %v78, %v3770
    %v3772 = vand.u32 %v3771, 4294901760
    %3773 = vmatpush1.msra.mxu0 %v3772
    %3774 = vmatprep.subr.mxu0 0.0
    %3775 = vmatpush1.msra.mxu0 0.0
    %3776 = vmatprep.subr.mxu0 0.0
    %3777 = vmatpush1.msra.mxu0 0.0
    %3778 = vmatprep.subr.mxu0 0.0
    %3779 = vmatpush1.msra.mxu0 0.0
    %3780 = vmatprep.subr.mxu0 0.0
    %3781 = vmatpush1.msra.mxu0 0.0
    %3782 = vmatprep.subr.mxu0 0.0
    %3783 = vmatpush1.msra.mxu0 0.0
    %3784 = vmatprep.subr.mxu0 0.0
    %3785 = vmatpush1.msra.mxu0 0.0
    %3786 = vmatprep.subr.mxu0 0.0
    %3787 = vmatpush1.msra.mxu0 0.0
    %3788 = vmatprep.subr.mxu0 0.0
    %3789 = vmatpush1.msra.mxu0 0.0
    %3790 = vmatprep.subr.mxu0 0.0
    %3791 = vmatpush1.msra.mxu0 0.0
    %3792 = vmatprep.subr.mxu0 0.0
    %3793 = vmatpush1.msra.mxu0 0.0
    %3794 = vmatprep.subr.mxu0 0.0
    %3795 = vmatpush1.msra.mxu0 0.0
    %3796 = vmatprep.subr.mxu0 0.0
    %3797 = vmatpush1.msra.mxu0 0.0
    %3798 = vmatprep.subr.mxu0 0.0
    %3799 = vmatpush1.msra.mxu0 0.0
    %3800 = vmatprep.subr.mxu0 0.0
    %3801 = vmatpush1.msra.mxu0 0.0
    %3802 = vmatprep.subr.mxu0 0.0
    %3803 = vmatpush1.msra.mxu0 0.0
    %3804 = vmatprep.subr.mxu0 0.0
    %3805 = vmatpush1.msra.mxu0 0.0
    %3806 = vmatprep.mubr.f32.mxu0 0.0
    %v3807 = vand.u32 %v3226, 4294901760
    %3808 = vmatmul.mubr.f32.gmra.mrb[0].mxu0 %v3807
    %v3809 = vpop.f32.mrb[0].mxu0
    %v3810 = vadd.f32 %v3683, %v3809
    %v3811 = vpop.f32.mrb[0].mxu0
    %3812 = vmatprep.mubr.f32.mxu0 0.0
    %v3813 = vand.u32 %v3227, 4294901760
    %3814 = vmatmul.mubr.f32.gmra.mrb[0].mxu0 %v3813
    %v3815 = vpop.f32.mrb[0].mxu0
    %v3816 = vadd.f32 %v3691, %v3815
    %v3817 = vpop.f32.mrb[0].mxu0
    %3818 = vdwg.mxu0
    %3819 = vmatprep.subr.mxu0 0.0
    %v3820 = vand.u32 %v63, 4294901760
    %3821 = vmatpush1.msra.mxu0 %v3820
    %3822 = vmatprep.subr.mxu0 0.0
    %v3823 = vand.u32 %v64, 4294901760
    %3824 = vmatpush1.msra.mxu0 %v3823
    %3825 = vmatprep.subr.mxu0 0.0
    %v3826 = vand.u32 %v65, 4294901760
    %3827 = vmatpush1.msra.mxu0 %v3826
    %3828 = vmatprep.subr.mxu0 0.0
    %v3829 = vand.u32 %v66, 4294901760
    %3830 = vmatpush1.msra.mxu0 %v3829
    %3831 = vmatprep.subr.mxu0 0.0
    %v3832 = vand.u32 %v67, 4294901760
    %3833 = vmatpush1.msra.mxu0 %v3832
    %3834 = vmatprep.subr.mxu0 0.0
    %v3835 = vand.u32 %v68, 4294901760
    %3836 = vmatpush1.msra.mxu0 %v3835
    %3837 = vmatprep.subr.mxu0 0.0
    %v3838 = vand.u32 %v69, 4294901760
    %3839 = vmatpush1.msra.mxu0 %v3838
    %3840 = vmatprep.subr.mxu0 0.0
    %v3841 = vand.u32 %v70, 4294901760
    %3842 = vmatpush1.msra.mxu0 %v3841
    %3843 = vmatprep.subr.mxu0 0.0
    %v3844 = vand.u32 %v71, 4294901760
    %3845 = vmatpush1.msra.mxu0 %v3844
    %3846 = vmatprep.subr.mxu0 0.0
    %v3847 = vand.u32 %v72, 4294901760
    %3848 = vmatpush1.msra.mxu0 %v3847
    %3849 = vmatprep.subr.mxu0 0.0
    %v3850 = vand.u32 %v73, 4294901760
    %3851 = vmatpush1.msra.mxu0 %v3850
    %3852 = vmatprep.subr.mxu0 0.0
    %v3853 = vand.u32 %v74, 4294901760
    %3854 = vmatpush1.msra.mxu0 %v3853
    %3855 = vmatprep.subr.mxu0 0.0
    %v3856 = vand.u32 %v75, 4294901760
    %3857 = vmatpush1.msra.mxu0 %v3856
    %3858 = vmatprep.subr.mxu0 0.0
    %v3859 = vand.u32 %v76, 4294901760
    %3860 = vmatpush1.msra.mxu0 %v3859
    %3861 = vmatprep.subr.mxu0 0.0
    %v3862 = vand.u32 %v77, 4294901760
    %3863 = vmatpush1.msra.mxu0 %v3862
    %3864 = vmatprep.subr.mxu0 0.0
    %v3865 = vand.u32 %v78, 4294901760
    %3866 = vmatpush1.msra.mxu0 %v3865
    %3867 = vmatprep.subr.mxu0 0.0
    %3868 = vmatpush1.msra.mxu0 0.0
    %3869 = vmatprep.subr.mxu0 0.0
    %3870 = vmatpush1.msra.mxu0 0.0
    %3871 = vmatprep.subr.mxu0 0.0
    %3872 = vmatpush1.msra.mxu0 0.0
    %3873 = vmatprep.subr.mxu0 0.0
    %3874 = vmatpush1.msra.mxu0 0.0
    %3875 = vmatprep.subr.mxu0 0.0
    %3876 = vmatpush1.msra.mxu0 0.0
    %3877 = vmatprep.subr.mxu0 0.0
    %3878 = vmatpush1.msra.mxu0 0.0
    %3879 = vmatprep.subr.mxu0 0.0
    %3880 = vmatpush1.msra.mxu0 0.0
    %3881 = vmatprep.subr.mxu0 0.0
    %3882 = vmatpush1.msra.mxu0 0.0
    %3883 = vmatprep.subr.mxu0 0.0
    %3884 = vmatpush1.msra.mxu0 0.0
    %3885 = vmatprep.subr.mxu0 0.0
    %3886 = vmatpush1.msra.mxu0 0.0
    %3887 = vmatprep.subr.mxu0 0.0
    %3888 = vmatpush1.msra.mxu0 0.0
    %3889 = vmatprep.subr.mxu0 0.0
    %3890 = vmatpush1.msra.mxu0 0.0
    %3891 = vmatprep.subr.mxu0 0.0
    %3892 = vmatpush1.msra.mxu0 0.0
    %3893 = vmatprep.subr.mxu0 0.0
    %3894 = vmatpush1.msra.mxu0 0.0
    %3895 = vmatprep.subr.mxu0 0.0
    %3896 = vmatpush1.msra.mxu0 0.0
    %3897 = vmatprep.subr.mxu0 0.0
    %3898 = vmatpush1.msra.mxu0 0.0
    %3899 = vmatprep.mubr.f32.mxu0 0.0
    %v3900 = vand.u32 %v3226, 4294901760
    %3901 = vmatmul.mubr.f32.gmra.mrb[0].mxu0 %v3900
    %v3902 = vpop.f32.mrb[0].mxu0
    %v3903 = vadd.f32 %v3810, %v3902
    %v3904 = vpop.f32.mrb[0].mxu0
    %3905 = vmatprep.mubr.f32.mxu0 0.0
    %v3906 = vand.u32 %v3227, 4294901760
    %3907 = vmatmul.mubr.f32.gmra.mrb[0].mxu0 %v3906
    %v3908 = vpop.f32.mrb[0].mxu0
    %v3909 = vadd.f32 %v3816, %v3908
    %v3910 = vpop.f32.mrb[0].mxu0
    %3911 = vdwg.mxu0
    %v3912 = vsel %vm1180, %v3903, 0.0
    %v3913 = vsel %vm1180, %v3909, 0.0
    %v3914 = vadd.f32 %v3912, %v3913
    %v3915 = vrot.slane %v3914, 4
    %v3916 = vadd.f32 %v3914, %v3915
    %v3917 = vrot.slane %v3916, 2
    %v3918 = vadd.f32 %v3916, %v3917
    %v3919 = vrot.slane %v3918, 1
    %v3920 = vadd.f32 %v3918, %v3919
    %v3922 = vsel %vm1180, %v3920, 0
    %3924 = vmatprep.subr.mxu0 0.0
    %v3925 = vand.u32 %v79, 4294901760
    %3926 = vmatpush1.msra.mxu0 %v3925
    %3927 = vmatprep.subr.mxu0 0.0
    %3928 = vmatpush1.msra.mxu0 0.0
    %3929 = vmatprep.subr.mxu0 0.0
    %3930 = vmatpush1.msra.mxu0 0.0
    %3931 = vmatprep.subr.mxu0 0.0
    %3932 = vmatpush1.msra.mxu0 0.0
    %3933 = vmatprep.subr.mxu0 0.0
    %3934 = vmatpush1.msra.mxu0 0.0
    %3935 = vmatprep.subr.mxu0 0.0
    %3936 = vmatpush1.msra.mxu0 0.0
    %3937 = vmatprep.subr.mxu0 0.0
    %3938 = vmatpush1.msra.mxu0 0.0
    %3939 = vmatprep.subr.mxu0 0.0
    %3940 = vmatpush1.msra.mxu0 0.0
    %3941 = vmatprep.subr.mxu0 0.0
    %3942 = vmatpush1.msra.mxu0 0.0
    %3943 = vmatprep.subr.mxu0 0.0
    %3944 = vmatpush1.msra.mxu0 0.0
    %3945 = vmatprep.subr.mxu0 0.0
    %3946 = vmatpush1.msra.mxu0 0.0
    %3947 = vmatprep.subr.mxu0 0.0
    %3948 = vmatpush1.msra.mxu0 0.0
    %3949 = vmatprep.subr.mxu0 0.0
    %3950 = vmatpush1.msra.mxu0 0.0
    %3951 = vmatprep.subr.mxu0 0.0
    %3952 = vmatpush1.msra.mxu0 0.0
    %3953 = vmatprep.subr.mxu0 0.0
    %3954 = vmatpush1.msra.mxu0 0.0
    %3955 = vmatprep.subr.mxu0 0.0
    %3956 = vmatpush1.msra.mxu0 0.0
    %3957 = vmatprep.subr.mxu0 0.0
    %3958 = vmatpush1.msra.mxu0 0.0
    %3959 = vmatprep.subr.mxu0 0.0
    %3960 = vmatpush1.msra.mxu0 0.0
    %3961 = vmatprep.subr.mxu0 0.0
    %3962 = vmatpush1.msra.mxu0 0.0
    %3963 = vmatprep.subr.mxu0 0.0
    %3964 = vmatpush1.msra.mxu0 0.0
    %3965 = vmatprep.subr.mxu0 0.0
    %3966 = vmatpush1.msra.mxu0 0.0
    %3967 = vmatprep.subr.mxu0 0.0
    %3968 = vmatpush1.msra.mxu0 0.0
    %3969 = vmatprep.subr.mxu0 0.0
    %3970 = vmatpush1.msra.mxu0 0.0
    %3971 = vmatprep.subr.mxu0 0.0
    %3972 = vmatpush1.msra.mxu0 0.0
    %3973 = vmatprep.subr.mxu0 0.0
    %3974 = vmatpush1.msra.mxu0 0.0
    %3975 = vmatprep.subr.mxu0 0.0
    %3976 = vmatpush1.msra.mxu0 0.0
    %3977 = vmatprep.subr.mxu0 0.0
    %3978 = vmatpush1.msra.mxu0 0.0
    %3979 = vmatprep.subr.mxu0 0.0
    %3980 = vmatpush1.msra.mxu0 0.0
    %3981 = vmatprep.subr.mxu0 0.0
    %3982 = vmatpush1.msra.mxu0 0.0
    %3983 = vmatprep.subr.mxu0 0.0
    %3984 = vmatpush1.msra.mxu0 0.0
    %3985 = vmatprep.subr.mxu0 0.0
    %3986 = vmatpush1.msra.mxu0 0.0
    %3987 = vmatprep.subr.mxu0 0.0
    %3988 = vmatpush1.msra.mxu0 0.0
    %3989 = vmatprep.mubr.f32.mxu0 0.0
    %v3990 = vand.u32 %v3922, 4294901760
    %v3991 = vsub.f32 %v3922, %v3990
    %v3992 = vand.u32 %v3991, 4294901760
    %v3993 = vsub.f32 %v3991, %v3992
    %v3994 = vand.u32 %v3993, 4294901760
    %3995 = vmatmul.mubr.f32.gmra.mrb[0].mxu0 %v3994
    %v3996 = vpop.f32.mrb[0].mxu0
    %v3997 = vadd.f32 0.0, %v3996
    %v3998 = vpop.f32.mrb[0].mxu0
    %3999 = vmatprep.mubr.f32.mxu0 0.0
    %v4000 = vand.u32 %v3922, 4294901760
    %v4001 = vsub.f32 %v3922, %v4000
    %v4002 = vand.u32 %v4001, 4294901760
    %v4003 = vsub.f32 %v4001, %v4002
    %v4004 = vand.u32 %v4003, 4294901760
    %4005 = vmatmul.mubr.f32.gmra.mrb[0].mxu0 %v4004
    %v4006 = vpop.f32.mrb[0].mxu0
    %v4007 = vadd.f32 0.0, %v4006
    %v4008 = vpop.f32.mrb[0].mxu0
    %4009 = vdwg.mxu0
    %4010 = vmatprep.subr.mxu0 0.0
    %v4011 = vand.u32 %v79, 4294901760
    %v4012 = vsub.f32 %v79, %v4011
    %v4013 = vand.u32 %v4012, 4294901760
    %v4014 = vsub.f32 %v4012, %v4013
    %v4015 = vand.u32 %v4014, 4294901760
    %4016 = vmatpush1.msra.mxu0 %v4015
    %4017 = vmatprep.subr.mxu0 0.0
    %4018 = vmatpush1.msra.mxu0 0.0
    %4019 = vmatprep.subr.mxu0 0.0
    %4020 = vmatpush1.msra.mxu0 0.0
    %4021 = vmatprep.subr.mxu0 0.0
    %4022 = vmatpush1.msra.mxu0 0.0
    %4023 = vmatprep.subr.mxu0 0.0
    %4024 = vmatpush1.msra.mxu0 0.0
    %4025 = vmatprep.subr.mxu0 0.0
    %4026 = vmatpush1.msra.mxu0 0.0
    %4027 = vmatprep.subr.mxu0 0.0
    %4028 = vmatpush1.msra.mxu0 0.0
    %4029 = vmatprep.subr.mxu0 0.0
    %4030 = vmatpush1.msra.mxu0 0.0
    %4031 = vmatprep.subr.mxu0 0.0
    %4032 = vmatpush1.msra.mxu0 0.0
    %4033 = vmatprep.subr.mxu0 0.0
    %4034 = vmatpush1.msra.mxu0 0.0
    %4035 = vmatprep.subr.mxu0 0.0
    %4036 = vmatpush1.msra.mxu0 0.0
    %4037 = vmatprep.subr.mxu0 0.0
    %4038 = vmatpush1.msra.mxu0 0.0
    %4039 = vmatprep.subr.mxu0 0.0
    %4040 = vmatpush1.msra.mxu0 0.0
    %4041 = vmatprep.subr.mxu0 0.0
    %4042 = vmatpush1.msra.mxu0 0.0
    %4043 = vmatprep.subr.mxu0 0.0
    %4044 = vmatpush1.msra.mxu0 0.0
    %4045 = vmatprep.subr.mxu0 0.0
    %4046 = vmatpush1.msra.mxu0 0.0
    %4047 = vmatprep.subr.mxu0 0.0
    %4048 = vmatpush1.msra.mxu0 0.0
    %4049 = vmatprep.subr.mxu0 0.0
    %4050 = vmatpush1.msra.mxu0 0.0
    %4051 = vmatprep.subr.mxu0 0.0
    %4052 = vmatpush1.msra.mxu0 0.0
    %4053 = vmatprep.subr.mxu0 0.0
    %4054 = vmatpush1.msra.mxu0 0.0
    %4055 = vmatprep.subr.mxu0 0.0
    %4056 = vmatpush1.msra.mxu0 0.0
    %4057 = vmatprep.subr.mxu0 0.0
    %4058 = vmatpush1.msra.mxu0 0.0
    %4059 = vmatprep.subr.mxu0 0.0
    %4060 = vmatpush1.msra.mxu0 0.0
    %4061 = vmatprep.subr.mxu0 0.0
    %4062 = vmatpush1.msra.mxu0 0.0
    %4063 = vmatprep.subr.mxu0 0.0
    %4064 = vmatpush1.msra.mxu0 0.0
    %4065 = vmatprep.subr.mxu0 0.0
    %4066 = vmatpush1.msra.mxu0 0.0
    %4067 = vmatprep.subr.mxu0 0.0
    %4068 = vmatpush1.msra.mxu0 0.0
    %4069 = vmatprep.subr.mxu0 0.0
    %4070 = vmatpush1.msra.mxu0 0.0
    %4071 = vmatprep.subr.mxu0 0.0
    %4072 = vmatpush1.msra.mxu0 0.0
    %4073 = vmatprep.subr.mxu0 0.0
    %4074 = vmatpush1.msra.mxu0 0.0
    %4075 = vmatprep.subr.mxu0 0.0
    %4076 = vmatpush1.msra.mxu0 0.0
    %4077 = vmatprep.subr.mxu0 0.0
    %4078 = vmatpush1.msra.mxu0 0.0
    %4079 = vmatprep.mubr.f32.mxu0 0.0
    %v4080 = vand.u32 %v3922, 4294901760
    %4081 = vmatmul.mubr.f32.gmra.mrb[0].mxu0 %v4080
    %v4082 = vpop.f32.mrb[0].mxu0
    %v4083 = vadd.f32 %v3997, %v4082
    %v4084 = vpop.f32.mrb[0].mxu0
    %4085 = vmatprep.mubr.f32.mxu0 0.0
    %v4086 = vand.u32 %v3922, 4294901760
    %4087 = vmatmul.mubr.f32.gmra.mrb[0].mxu0 %v4086
    %v4088 = vpop.f32.mrb[0].mxu0
    %v4089 = vadd.f32 %v4007, %v4088
    %v4090 = vpop.f32.mrb[0].mxu0
    %4091 = vdwg.mxu0
    %4092 = vmatprep.subr.mxu0 0.0
    %v4093 = vand.u32 %v79, 4294901760
    %v4094 = vsub.f32 %v79, %v4093
    %4095 = vmatpush1.msra.mxu0 %v4094
    %4096 = vmatprep.subr.mxu0 0.0
    %4097 = vmatpush1.msra.mxu0 0.0
    %4098 = vmatprep.subr.mxu0 0.0
    %4099 = vmatpush1.msra.mxu0 0.0
    %4100 = vmatprep.subr.mxu0 0.0
    %4101 = vmatpush1.msra.mxu0 0.0
    %4102 = vmatprep.subr.mxu0 0.0
    %4103 = vmatpush1.msra.mxu0 0.0
    %4104 = vmatprep.subr.mxu0 0.0
    %4105 = vmatpush1.msra.mxu0 0.0
    %4106 = vmatprep.subr.mxu0 0.0
    %4107 = vmatpush1.msra.mxu0 0.0
    %4108 = vmatprep.subr.mxu0 0.0
    %4109 = vmatpush1.msra.mxu0 0.0
    %4110 = vmatprep.subr.mxu0 0.0
    %4111 = vmatpush1.msra.mxu0 0.0
    %4112 = vmatprep.subr.mxu0 0.0
    %4113 = vmatpush1.msra.mxu0 0.0
    %4114 = vmatprep.subr.mxu0 0.0
    %4115 = vmatpush1.msra.mxu0 0.0
    %4116 = vmatprep.subr.mxu0 0.0
    %4117 = vmatpush1.msra.mxu0 0.0
    %4118 = vmatprep.subr.mxu0 0.0
    %4119 = vmatpush1.msra.mxu0 0.0
    %4120 = vmatprep.subr.mxu0 0.0
    %4121 = vmatpush1.msra.mxu0 0.0
    %4122 = vmatprep.subr.mxu0 0.0
    %4123 = vmatpush1.msra.mxu0 0.0
    %4124 = vmatprep.subr.mxu0 0.0
    %4125 = vmatpush1.msra.mxu0 0.0
    %4126 = vmatprep.subr.mxu0 0.0
    %4127 = vmatpush1.msra.mxu0 0.0
    %4128 = vmatprep.subr.mxu0 0.0
    %4129 = vmatpush1.msra.mxu0 0.0
    %4130 = vmatprep.subr.mxu0 0.0
    %4131 = vmatpush1.msra.mxu0 0.0
    %4132 = vmatprep.subr.mxu0 0.0
    %4133 = vmatpush1.msra.mxu0 0.0
    %4134 = vmatprep.subr.mxu0 0.0
    %4135 = vmatpush1.msra.mxu0 0.0
    %4136 = vmatprep.subr.mxu0 0.0
    %4137 = vmatpush1.msra.mxu0 0.0
    %4138 = vmatprep.subr.mxu0 0.0
    %4139 = vmatpush1.msra.mxu0 0.0
    %4140 = vmatprep.subr.mxu0 0.0
    %4141 = vmatpush1.msra.mxu0 0.0
    %4142 = vmatprep.subr.mxu0 0.0
    %4143 = vmatpush1.msra.mxu0 0.0
    %4144 = vmatprep.subr.mxu0 0.0
    %4145 = vmatpush1.msra.mxu0 0.0
    %4146 = vmatprep.subr.mxu0 0.0
    %4147 = vmatpush1.msra.mxu0 0.0
    %4148 = vmatprep.subr.mxu0 0.0
    %4149 = vmatpush1.msra.mxu0 0.0
    %4150 = vmatprep.subr.mxu0 0.0
    %4151 = vmatpush1.msra.mxu0 0.0
    %4152 = vmatprep.subr.mxu0 0.0
    %4153 = vmatpush1.msra.mxu0 0.0
    %4154 = vmatprep.subr.mxu0 0.0
    %4155 = vmatpush1.msra.mxu0 0.0
    %4156 = vmatprep.subr.mxu0 0.0
    %4157 = vmatpush1.msra.mxu0 0.0
    %4158 = vmatprep.mubr.f32.mxu0 0.0
    %v4159 = vand.u32 %v3922, 4294901760
    %v4160 = vsub.f32 %v3922, %v4159
    %4161 = vmatmul.mubr.f32.gmra.mrb[0].mxu0 %v4160
    %v4162 = vpop.f32.mrb[0].mxu0
    %v4163 = vadd.f32 %v4083, %v4162
    %v4164 = vpop.f32.mrb[0].mxu0
    %4165 = vmatprep.mubr.f32.mxu0 0.0
    %v4166 = vand.u32 %v3922, 4294901760
    %v4167 = vsub.f32 %v3922, %v4166
    %4168 = vmatmul.mubr.f32.gmra.mrb[0].mxu0 %v4167
    %v4169 = vpop.f32.mrb[0].mxu0
    %v4170 = vadd.f32 %v4089, %v4169
    %v4171 = vpop.f32.mrb[0].mxu0
    %4172 = vdwg.mxu0
    %4173 = vmatprep.subr.mxu0 0.0
    %v4174 = vand.u32 %v79, 4294901760
    %4175 = vmatpush1.msra.mxu0 %v4174
    %4176 = vmatprep.subr.mxu0 0.0
    %4177 = vmatpush1.msra.mxu0 0.0
    %4178 = vmatprep.subr.mxu0 0.0
    %4179 = vmatpush1.msra.mxu0 0.0
    %4180 = vmatprep.subr.mxu0 0.0
    %4181 = vmatpush1.msra.mxu0 0.0
    %4182 = vmatprep.subr.mxu0 0.0
    %4183 = vmatpush1.msra.mxu0 0.0
    %4184 = vmatprep.subr.mxu0 0.0
    %4185 = vmatpush1.msra.mxu0 0.0
    %4186 = vmatprep.subr.mxu0 0.0
    %4187 = vmatpush1.msra.mxu0 0.0
    %4188 = vmatprep.subr.mxu0 0.0
    %4189 = vmatpush1.msra.mxu0 0.0
    %4190 = vmatprep.subr.mxu0 0.0
    %4191 = vmatpush1.msra.mxu0 0.0
    %4192 = vmatprep.subr.mxu0 0.0
    %4193 = vmatpush1.msra.mxu0 0.0
    %4194 = vmatprep.subr.mxu0 0.0
    %4195 = vmatpush1.msra.mxu0 0.0
    %4196 = vmatprep.subr.mxu0 0.0
    %4197 = vmatpush1.msra.mxu0 0.0
    %4198 = vmatprep.subr.mxu0 0.0
    %4199 = vmatpush1.msra.mxu0 0.0
    %4200 = vmatprep.subr.mxu0 0.0
    %4201 = vmatpush1.msra.mxu0 0.0
    %4202 = vmatprep.subr.mxu0 0.0
    %4203 = vmatpush1.msra.mxu0 0.0
    %4204 = vmatprep.subr.mxu0 0.0
    %4205 = vmatpush1.msra.mxu0 0.0
    %4206 = vmatprep.subr.mxu0 0.0
    %4207 = vmatpush1.msra.mxu0 0.0
    %4208 = vmatprep.subr.mxu0 0.0
    %4209 = vmatpush1.msra.mxu0 0.0
    %4210 = vmatprep.subr.mxu0 0.0
    %4211 = vmatpush1.msra.mxu0 0.0
    %4212 = vmatprep.subr.mxu0 0.0
    %4213 = vmatpush1.msra.mxu0 0.0
    %4214 = vmatprep.subr.mxu0 0.0
    %4215 = vmatpush1.msra.mxu0 0.0
    %4216 = vmatprep.subr.mxu0 0.0
    %4217 = vmatpush1.msra.mxu0 0.0
    %4218 = vmatprep.subr.mxu0 0.0
    %4219 = vmatpush1.msra.mxu0 0.0
    %4220 = vmatprep.subr.mxu0 0.0
    %4221 = vmatpush1.msra.mxu0 0.0
    %4222 = vmatprep.subr.mxu0 0.0
    %4223 = vmatpush1.msra.mxu0 0.0
    %4224 = vmatprep.subr.mxu0 0.0
    %4225 = vmatpush1.msra.mxu0 0.0
    %4226 = vmatprep.subr.mxu0 0.0
    %4227 = vmatpush1.msra.mxu0 0.0
    %4228 = vmatprep.subr.mxu0 0.0
    %4229 = vmatpush1.msra.mxu0 0.0
    %4230 = vmatprep.subr.mxu0 0.0
    %4231 = vmatpush1.msra.mxu0 0.0
    %4232 = vmatprep.subr.mxu0 0.0
    %4233 = vmatpush1.msra.mxu0 0.0
    %4234 = vmatprep.subr.mxu0 0.0
    %4235 = vmatpush1.msra.mxu0 0.0
    %4236 = vmatprep.subr.mxu0 0.0
    %4237 = vmatpush1.msra.mxu0 0.0
    %4238 = vmatprep.mubr.f32.mxu0 0.0
    %v4239 = vand.u32 %v3922, 4294901760
    %v4240 = vsub.f32 %v3922, %v4239
    %v4241 = vand.u32 %v4240, 4294901760
    %4242 = vmatmul.mubr.f32.gmra.mrb[0].mxu0 %v4241
    %v4243 = vpop.f32.mrb[0].mxu0
    %v4244 = vadd.f32 %v4163, %v4243
    %v4245 = vpop.f32.mrb[0].mxu0
    %4246 = vmatprep.mubr.f32.mxu0 0.0
    %v4247 = vand.u32 %v3922, 4294901760
    %v4248 = vsub.f32 %v3922, %v4247
    %v4249 = vand.u32 %v4248, 4294901760
    %4250 = vmatmul.mubr.f32.gmra.mrb[0].mxu0 %v4249
    %v4251 = vpop.f32.mrb[0].mxu0
    %v4252 = vadd.f32 %v4170, %v4251
    %v4253 = vpop.f32.mrb[0].mxu0
    %4254 = vdwg.mxu0
    %4255 = vmatprep.subr.mxu0 0.0
    %v4256 = vand.u32 %v79, 4294901760
    %v4257 = vsub.f32 %v79, %v4256
    %v4258 = vand.u32 %v4257, 4294901760
    %4259 = vmatpush1.msra.mxu0 %v4258
    %4260 = vmatprep.subr.mxu0 0.0
    %4261 = vmatpush1.msra.mxu0 0.0
    %4262 = vmatprep.subr.mxu0 0.0
    %4263 = vmatpush1.msra.mxu0 0.0
    %4264 = vmatprep.subr.mxu0 0.0
    %4265 = vmatpush1.msra.mxu0 0.0
    %4266 = vmatprep.subr.mxu0 0.0
    %4267 = vmatpush1.msra.mxu0 0.0
    %4268 = vmatprep.subr.mxu0 0.0
    %4269 = vmatpush1.msra.mxu0 0.0
    %4270 = vmatprep.subr.mxu0 0.0
    %4271 = vmatpush1.msra.mxu0 0.0
    %4272 = vmatprep.subr.mxu0 0.0
    %4273 = vmatpush1.msra.mxu0 0.0
    %4274 = vmatprep.subr.mxu0 0.0
    %4275 = vmatpush1.msra.mxu0 0.0
    %4276 = vmatprep.subr.mxu0 0.0
    %4277 = vmatpush1.msra.mxu0 0.0
    %4278 = vmatprep.subr.mxu0 0.0
    %4279 = vmatpush1.msra.mxu0 0.0
    %4280 = vmatprep.subr.mxu0 0.0
    %4281 = vmatpush1.msra.mxu0 0.0
    %4282 = vmatprep.subr.mxu0 0.0
    %4283 = vmatpush1.msra.mxu0 0.0
    %4284 = vmatprep.subr.mxu0 0.0
    %4285 = vmatpush1.msra.mxu0 0.0
    %4286 = vmatprep.subr.mxu0 0.0
    %4287 = vmatpush1.msra.mxu0 0.0
    %4288 = vmatprep.subr.mxu0 0.0
    %4289 = vmatpush1.msra.mxu0 0.0
    %4290 = vmatprep.subr.mxu0 0.0
    %4291 = vmatpush1.msra.mxu0 0.0
    %4292 = vmatprep.subr.mxu0 0.0
    %4293 = vmatpush1.msra.mxu0 0.0
    %4294 = vmatprep.subr.mxu0 0.0
    %4295 = vmatpush1.msra.mxu0 0.0
    %4296 = vmatprep.subr.mxu0 0.0
    %4297 = vmatpush1.msra.mxu0 0.0
    %4298 = vmatprep.subr.mxu0 0.0
    %4299 = vmatpush1.msra.mxu0 0.0
    %4300 = vmatprep.subr.mxu0 0.0
    %4301 = vmatpush1.msra.mxu0 0.0
    %4302 = vmatprep.subr.mxu0 0.0
    %4303 = vmatpush1.msra.mxu0 0.0
    %4304 = vmatprep.subr.mxu0 0.0
    %4305 = vmatpush1.msra.mxu0 0.0
    %4306 = vmatprep.subr.mxu0 0.0
    %4307 = vmatpush1.msra.mxu0 0.0
    %4308 = vmatprep.subr.mxu0 0.0
    %4309 = vmatpush1.msra.mxu0 0.0
    %4310 = vmatprep.subr.mxu0 0.0
    %4311 = vmatpush1.msra.mxu0 0.0
    %4312 = vmatprep.subr.mxu0 0.0
    %4313 = vmatpush1.msra.mxu0 0.0
    %4314 = vmatprep.subr.mxu0 0.0
    %4315 = vmatpush1.msra.mxu0 0.0
    %4316 = vmatprep.subr.mxu0 0.0
    %4317 = vmatpush1.msra.mxu0 0.0
    %4318 = vmatprep.subr.mxu0 0.0
    %4319 = vmatpush1.msra.mxu0 0.0
    %4320 = vmatprep.subr.mxu0 0.0
    %4321 = vmatpush1.msra.mxu0 0.0
    %4322 = vmatprep.mubr.f32.mxu0 0.0
    %v4323 = vand.u32 %v3922, 4294901760
    %4324 = vmatmul.mubr.f32.gmra.mrb[0].mxu0 %v4323
    %v4325 = vpop.f32.mrb[0].mxu0
    %v4326 = vadd.f32 %v4244, %v4325
    %v4327 = vpop.f32.mrb[0].mxu0
    %4328 = vmatprep.mubr.f32.mxu0 0.0
    %v4329 = vand.u32 %v3922, 4294901760
    %4330 = vmatmul.mubr.f32.gmra.mrb[0].mxu0 %v4329
    %v4331 = vpop.f32.mrb[0].mxu0
    %v4332 = vadd.f32 %v4252, %v4331
    %v4333 = vpop.f32.mrb[0].mxu0
    %4334 = vdwg.mxu0
    %4335 = vmatprep.subr.mxu0 0.0
    %v4336 = vand.u32 %v79, 4294901760
    %4337 = vmatpush1.msra.mxu0 %v4336
    %4338 = vmatprep.subr.mxu0 0.0
    %4339 = vmatpush1.msra.mxu0 0.0
    %4340 = vmatprep.subr.mxu0 0.0
    %4341 = vmatpush1.msra.mxu0 0.0
    %4342 = vmatprep.subr.mxu0 0.0
    %4343 = vmatpush1.msra.mxu0 0.0
    %4344 = vmatprep.subr.mxu0 0.0
    %4345 = vmatpush1.msra.mxu0 0.0
    %4346 = vmatprep.subr.mxu0 0.0
    %4347 = vmatpush1.msra.mxu0 0.0
    %4348 = vmatprep.subr.mxu0 0.0
    %4349 = vmatpush1.msra.mxu0 0.0
    %4350 = vmatprep.subr.mxu0 0.0
    %4351 = vmatpush1.msra.mxu0 0.0
    %4352 = vmatprep.subr.mxu0 0.0
    %4353 = vmatpush1.msra.mxu0 0.0
    %4354 = vmatprep.subr.mxu0 0.0
    %4355 = vmatpush1.msra.mxu0 0.0
    %4356 = vmatprep.subr.mxu0 0.0
    %4357 = vmatpush1.msra.mxu0 0.0
    %4358 = vmatprep.subr.mxu0 0.0
    %4359 = vmatpush1.msra.mxu0 0.0
    %4360 = vmatprep.subr.mxu0 0.0
    %4361 = vmatpush1.msra.mxu0 0.0
    %4362 = vmatprep.subr.mxu0 0.0
    %4363 = vmatpush1.msra.mxu0 0.0
    %4364 = vmatprep.subr.mxu0 0.0
    %4365 = vmatpush1.msra.mxu0 0.0
    %4366 = vmatprep.subr.mxu0 0.0
    %4367 = vmatpush1.msra.mxu0 0.0
    %4368 = vmatprep.subr.mxu0 0.0
    %4369 = vmatpush1.msra.mxu0 0.0
    %4370 = vmatprep.subr.mxu0 0.0
    %4371 = vmatpush1.msra.mxu0 0.0
    %4372 = vmatprep.subr.mxu0 0.0
    %4373 = vmatpush1.msra.mxu0 0.0
    %4374 = vmatprep.subr.mxu0 0.0
    %4375 = vmatpush1.msra.mxu0 0.0
    %4376 = vmatprep.subr.mxu0 0.0
    %4377 = vmatpush1.msra.mxu0 0.0
    %4378 = vmatprep.subr.mxu0 0.0
    %4379 = vmatpush1.msra.mxu0 0.0
    %4380 = vmatprep.subr.mxu0 0.0
    %4381 = vmatpush1.msra.mxu0 0.0
    %4382 = vmatprep.subr.mxu0 0.0
    %4383 = vmatpush1.msra.mxu0 0.0
    %4384 = vmatprep.subr.mxu0 0.0
    %4385 = vmatpush1.msra.mxu0 0.0
    %4386 = vmatprep.subr.mxu0 0.0
    %4387 = vmatpush1.msra.mxu0 0.0
    %4388 = vmatprep.subr.mxu0 0.0
    %4389 = vmatpush1.msra.mxu0 0.0
    %4390 = vmatprep.subr.mxu0 0.0
    %4391 = vmatpush1.msra.mxu0 0.0
    %4392 = vmatprep.subr.mxu0 0.0
    %4393 = vmatpush1.msra.mxu0 0.0
    %4394 = vmatprep.subr.mxu0 0.0
    %4395 = vmatpush1.msra.mxu0 0.0
    %4396 = vmatprep.subr.mxu0 0.0
    %4397 = vmatpush1.msra.mxu0 0.0
    %4398 = vmatprep.subr.mxu0 0.0
    %4399 = vmatpush1.msra.mxu0 0.0
    %4400 = vmatprep.mubr.f32.mxu0 0.0
    %v4401 = vand.u32 %v3922, 4294901760
    %4402 = vmatmul.mubr.f32.gmra.mrb[0].mxu0 %v4401
    %v4403 = vpop.f32.mrb[0].mxu0
    %v4404 = vadd.f32 %v4326, %v4403
    %v4405 = vpop.f32.mrb[0].mxu0
    %4406 = vmatprep.mubr.f32.mxu0 0.0
    %v4407 = vand.u32 %v3922, 4294901760
    %4408 = vmatmul.mubr.f32.gmra.mrb[0].mxu0 %v4407
    %v4409 = vpop.f32.mrb[0].mxu0
    %v4410 = vadd.f32 %v4332, %v4409
    %v4411 = vpop.f32.mrb[0].mxu0
    %4412 = vdwg.mxu0
    %v4413 = vsub.f32 %v3226, %v4404
    %v4414 = vsub.f32 %v3227, %v4410
    %v4415 = vmul.f32 %v4413, %v4413
    %v4416 = vmul.f32 %v4414, %v4414
    %4417 = vmatprep.subr.mxu0 0.0
    %v4418 = vand.u32 %v63, 4294901760
    %4419 = vmatpush1.msra.mxu0 %v4418
    %4420 = vmatprep.subr.mxu0 0.0
    %v4421 = vand.u32 %v64, 4294901760
    %4422 = vmatpush1.msra.mxu0 %v4421
    %4423 = vmatprep.subr.mxu0 0.0
    %v4424 = vand.u32 %v65, 4294901760
    %4425 = vmatpush1.msra.mxu0 %v4424
    %4426 = vmatprep.subr.mxu0 0.0
    %v4427 = vand.u32 %v66, 4294901760
    %4428 = vmatpush1.msra.mxu0 %v4427
    %4429 = vmatprep.subr.mxu0 0.0
    %v4430 = vand.u32 %v67, 4294901760
    %4431 = vmatpush1.msra.mxu0 %v4430
    %4432 = vmatprep.subr.mxu0 0.0
    %v4433 = vand.u32 %v68, 4294901760
    %4434 = vmatpush1.msra.mxu0 %v4433
    %4435 = vmatprep.subr.mxu0 0.0
    %v4436 = vand.u32 %v69, 4294901760
    %4437 = vmatpush1.msra.mxu0 %v4436
    %4438 = vmatprep.subr.mxu0 0.0
    %v4439 = vand.u32 %v70, 4294901760
    %4440 = vmatpush1.msra.mxu0 %v4439
    %4441 = vmatprep.subr.mxu0 0.0
    %v4442 = vand.u32 %v71, 4294901760
    %4443 = vmatpush1.msra.mxu0 %v4442
    %4444 = vmatprep.subr.mxu0 0.0
    %v4445 = vand.u32 %v72, 4294901760
    %4446 = vmatpush1.msra.mxu0 %v4445
    %4447 = vmatprep.subr.mxu0 0.0
    %v4448 = vand.u32 %v73, 4294901760
    %4449 = vmatpush1.msra.mxu0 %v4448
    %4450 = vmatprep.subr.mxu0 0.0
    %v4451 = vand.u32 %v74, 4294901760
    %4452 = vmatpush1.msra.mxu0 %v4451
    %4453 = vmatprep.subr.mxu0 0.0
    %v4454 = vand.u32 %v75, 4294901760
    %4455 = vmatpush1.msra.mxu0 %v4454
    %4456 = vmatprep.subr.mxu0 0.0
    %v4457 = vand.u32 %v76, 4294901760
    %4458 = vmatpush1.msra.mxu0 %v4457
    %4459 = vmatprep.subr.mxu0 0.0
    %v4460 = vand.u32 %v77, 4294901760
    %4461 = vmatpush1.msra.mxu0 %v4460
    %4462 = vmatprep.subr.mxu0 0.0
    %v4463 = vand.u32 %v78, 4294901760
    %4464 = vmatpush1.msra.mxu0 %v4463
    %4465 = vmatprep.subr.mxu0 0.0
    %4466 = vmatpush1.msra.mxu0 0.0
    %4467 = vmatprep.subr.mxu0 0.0
    %4468 = vmatpush1.msra.mxu0 0.0
    %4469 = vmatprep.subr.mxu0 0.0
    %4470 = vmatpush1.msra.mxu0 0.0
    %4471 = vmatprep.subr.mxu0 0.0
    %4472 = vmatpush1.msra.mxu0 0.0
    %4473 = vmatprep.subr.mxu0 0.0
    %4474 = vmatpush1.msra.mxu0 0.0
    %4475 = vmatprep.subr.mxu0 0.0
    %4476 = vmatpush1.msra.mxu0 0.0
    %4477 = vmatprep.subr.mxu0 0.0
    %4478 = vmatpush1.msra.mxu0 0.0
    %4479 = vmatprep.subr.mxu0 0.0
    %4480 = vmatpush1.msra.mxu0 0.0
    %4481 = vmatprep.subr.mxu0 0.0
    %4482 = vmatpush1.msra.mxu0 0.0
    %4483 = vmatprep.subr.mxu0 0.0
    %4484 = vmatpush1.msra.mxu0 0.0
    %4485 = vmatprep.subr.mxu0 0.0
    %4486 = vmatpush1.msra.mxu0 0.0
    %4487 = vmatprep.subr.mxu0 0.0
    %4488 = vmatpush1.msra.mxu0 0.0
    %4489 = vmatprep.subr.mxu0 0.0
    %4490 = vmatpush1.msra.mxu0 0.0
    %4491 = vmatprep.subr.mxu0 0.0
    %4492 = vmatpush1.msra.mxu0 0.0
    %4493 = vmatprep.subr.mxu0 0.0
    %4494 = vmatpush1.msra.mxu0 0.0
    %4495 = vmatprep.subr.mxu0 0.0
    %4496 = vmatpush1.msra.mxu0 0.0
    %4497 = vmatprep.mubr.f32.mxu0 0.0
    %v4498 = vand.u32 %v4415, 4294901760
    %v4499 = vsub.f32 %v4415, %v4498
    %v4500 = vand.u32 %v4499, 4294901760
    %v4501 = vsub.f32 %v4499, %v4500
    %v4502 = vand.u32 %v4501, 4294901760
    %4503 = vmatmul.mubr.f32.gmra.mrb[0].mxu0 %v4502
    %v4504 = vpop.f32.mrb[0].mxu0
    %v4505 = vadd.f32 0.0, %v4504
    %v4506 = vpop.f32.mrb[0].mxu0
    %4507 = vmatprep.mubr.f32.mxu0 0.0
    %v4508 = vand.u32 %v4416, 4294901760
    %v4509 = vsub.f32 %v4416, %v4508
    %v4510 = vand.u32 %v4509, 4294901760
    %v4511 = vsub.f32 %v4509, %v4510
    %v4512 = vand.u32 %v4511, 4294901760
    %4513 = vmatmul.mubr.f32.gmra.mrb[0].mxu0 %v4512
    %v4514 = vpop.f32.mrb[0].mxu0
    %v4515 = vadd.f32 0.0, %v4514
    %v4516 = vpop.f32.mrb[0].mxu0
    %4517 = vdwg.mxu0
    %4518 = vmatprep.subr.mxu0 0.0
    %v4519 = vand.u32 %v63, 4294901760
    %v4520 = vsub.f32 %v63, %v4519
    %v4521 = vand.u32 %v4520, 4294901760
    %v4522 = vsub.f32 %v4520, %v4521
    %v4523 = vand.u32 %v4522, 4294901760
    %4524 = vmatpush1.msra.mxu0 %v4523
    %4525 = vmatprep.subr.mxu0 0.0
    %v4526 = vand.u32 %v64, 4294901760
    %v4527 = vsub.f32 %v64, %v4526
    %v4528 = vand.u32 %v4527, 4294901760
    %v4529 = vsub.f32 %v4527, %v4528
    %v4530 = vand.u32 %v4529, 4294901760
    %4531 = vmatpush1.msra.mxu0 %v4530
    %4532 = vmatprep.subr.mxu0 0.0
    %v4533 = vand.u32 %v65, 4294901760
    %v4534 = vsub.f32 %v65, %v4533
    %v4535 = vand.u32 %v4534, 4294901760
    %v4536 = vsub.f32 %v4534, %v4535
    %v4537 = vand.u32 %v4536, 4294901760
    %4538 = vmatpush1.msra.mxu0 %v4537
    %4539 = vmatprep.subr.mxu0 0.0
    %v4540 = vand.u32 %v66, 4294901760
    %v4541 = vsub.f32 %v66, %v4540
    %v4542 = vand.u32 %v4541, 4294901760
    %v4543 = vsub.f32 %v4541, %v4542
    %v4544 = vand.u32 %v4543, 4294901760
    %4545 = vmatpush1.msra.mxu0 %v4544
    %4546 = vmatprep.subr.mxu0 0.0
    %v4547 = vand.u32 %v67, 4294901760
    %v4548 = vsub.f32 %v67, %v4547
    %v4549 = vand.u32 %v4548, 4294901760
    %v4550 = vsub.f32 %v4548, %v4549
    %v4551 = vand.u32 %v4550, 4294901760
    %4552 = vmatpush1.msra.mxu0 %v4551
    %4553 = vmatprep.subr.mxu0 0.0
    %v4554 = vand.u32 %v68, 4294901760
    %v4555 = vsub.f32 %v68, %v4554
    %v4556 = vand.u32 %v4555, 4294901760
    %v4557 = vsub.f32 %v4555, %v4556
    %v4558 = vand.u32 %v4557, 4294901760
    %4559 = vmatpush1.msra.mxu0 %v4558
    %4560 = vmatprep.subr.mxu0 0.0
    %v4561 = vand.u32 %v69, 4294901760
    %v4562 = vsub.f32 %v69, %v4561
    %v4563 = vand.u32 %v4562, 4294901760
    %v4564 = vsub.f32 %v4562, %v4563
    %v4565 = vand.u32 %v4564, 4294901760
    %4566 = vmatpush1.msra.mxu0 %v4565
    %4567 = vmatprep.subr.mxu0 0.0
    %v4568 = vand.u32 %v70, 4294901760
    %v4569 = vsub.f32 %v70, %v4568
    %v4570 = vand.u32 %v4569, 4294901760
    %v4571 = vsub.f32 %v4569, %v4570
    %v4572 = vand.u32 %v4571, 4294901760
    %4573 = vmatpush1.msra.mxu0 %v4572
    %4574 = vmatprep.subr.mxu0 0.0
    %v4575 = vand.u32 %v71, 4294901760
    %v4576 = vsub.f32 %v71, %v4575
    %v4577 = vand.u32 %v4576, 4294901760
    %v4578 = vsub.f32 %v4576, %v4577
    %v4579 = vand.u32 %v4578, 4294901760
    %4580 = vmatpush1.msra.mxu0 %v4579
    %4581 = vmatprep.subr.mxu0 0.0
    %v4582 = vand.u32 %v72, 4294901760
    %v4583 = vsub.f32 %v72, %v4582
    %v4584 = vand.u32 %v4583, 4294901760
    %v4585 = vsub.f32 %v4583, %v4584
    %v4586 = vand.u32 %v4585, 4294901760
    %4587 = vmatpush1.msra.mxu0 %v4586
    %4588 = vmatprep.subr.mxu0 0.0
    %v4589 = vand.u32 %v73, 4294901760
    %v4590 = vsub.f32 %v73, %v4589
    %v4591 = vand.u32 %v4590, 4294901760
    %v4592 = vsub.f32 %v4590, %v4591
    %v4593 = vand.u32 %v4592, 4294901760
    %4594 = vmatpush1.msra.mxu0 %v4593
    %4595 = vmatprep.subr.mxu0 0.0
    %v4596 = vand.u32 %v74, 4294901760
    %v4597 = vsub.f32 %v74, %v4596
    %v4598 = vand.u32 %v4597, 4294901760
    %v4599 = vsub.f32 %v4597, %v4598
    %v4600 = vand.u32 %v4599, 4294901760
    %4601 = vmatpush1.msra.mxu0 %v4600
    %4602 = vmatprep.subr.mxu0 0.0
    %v4603 = vand.u32 %v75, 4294901760
    %v4604 = vsub.f32 %v75, %v4603
    %v4605 = vand.u32 %v4604, 4294901760
    %v4606 = vsub.f32 %v4604, %v4605
    %v4607 = vand.u32 %v4606, 4294901760
    %4608 = vmatpush1.msra.mxu0 %v4607
    %4609 = vmatprep.subr.mxu0 0.0
    %v4610 = vand.u32 %v76, 4294901760
    %v4611 = vsub.f32 %v76, %v4610
    %v4612 = vand.u32 %v4611, 4294901760
    %v4613 = vsub.f32 %v4611, %v4612
    %v4614 = vand.u32 %v4613, 4294901760
    %4615 = vmatpush1.msra.mxu0 %v4614
    %4616 = vmatprep.subr.mxu0 0.0
    %v4617 = vand.u32 %v77, 4294901760
    %v4618 = vsub.f32 %v77, %v4617
    %v4619 = vand.u32 %v4618, 4294901760
    %v4620 = vsub.f32 %v4618, %v4619
    %v4621 = vand.u32 %v4620, 4294901760
    %4622 = vmatpush1.msra.mxu0 %v4621
    %4623 = vmatprep.subr.mxu0 0.0
    %v4624 = vand.u32 %v78, 4294901760
    %v4625 = vsub.f32 %v78, %v4624
    %v4626 = vand.u32 %v4625, 4294901760
    %v4627 = vsub.f32 %v4625, %v4626
    %v4628 = vand.u32 %v4627, 4294901760
    %4629 = vmatpush1.msra.mxu0 %v4628
    %4630 = vmatprep.subr.mxu0 0.0
    %4631 = vmatpush1.msra.mxu0 0.0
    %4632 = vmatprep.subr.mxu0 0.0
    %4633 = vmatpush1.msra.mxu0 0.0
    %4634 = vmatprep.subr.mxu0 0.0
    %4635 = vmatpush1.msra.mxu0 0.0
    %4636 = vmatprep.subr.mxu0 0.0
    %4637 = vmatpush1.msra.mxu0 0.0
    %4638 = vmatprep.subr.mxu0 0.0
    %4639 = vmatpush1.msra.mxu0 0.0
    %4640 = vmatprep.subr.mxu0 0.0
    %4641 = vmatpush1.msra.mxu0 0.0
    %4642 = vmatprep.subr.mxu0 0.0
    %4643 = vmatpush1.msra.mxu0 0.0
    %4644 = vmatprep.subr.mxu0 0.0
    %4645 = vmatpush1.msra.mxu0 0.0
    %4646 = vmatprep.subr.mxu0 0.0
    %4647 = vmatpush1.msra.mxu0 0.0
    %4648 = vmatprep.subr.mxu0 0.0
    %4649 = vmatpush1.msra.mxu0 0.0
    %4650 = vmatprep.subr.mxu0 0.0
    %4651 = vmatpush1.msra.mxu0 0.0
    %4652 = vmatprep.subr.mxu0 0.0
    %4653 = vmatpush1.msra.mxu0 0.0
    %4654 = vmatprep.subr.mxu0 0.0
    %4655 = vmatpush1.msra.mxu0 0.0
    %4656 = vmatprep.subr.mxu0 0.0
    %4657 = vmatpush1.msra.mxu0 0.0
    %4658 = vmatprep.subr.mxu0 0.0
    %4659 = vmatpush1.msra.mxu0 0.0
    %4660 = vmatprep.subr.mxu0 0.0
    %4661 = vmatpush1.msra.mxu0 0.0
    %4662 = vmatprep.mubr.f32.mxu0 0.0
    %v4663 = vand.u32 %v4415, 4294901760
    %4664 = vmatmul.mubr.f32.gmra.mrb[0].mxu0 %v4663
    %v4665 = vpop.f32.mrb[0].mxu0
    %v4666 = vadd.f32 %v4505, %v4665
    %v4667 = vpop.f32.mrb[0].mxu0
    %4668 = vmatprep.mubr.f32.mxu0 0.0
    %v4669 = vand.u32 %v4416, 4294901760
    %4670 = vmatmul.mubr.f32.gmra.mrb[0].mxu0 %v4669
    %v4671 = vpop.f32.mrb[0].mxu0
    %v4672 = vadd.f32 %v4515, %v4671
    %v4673 = vpop.f32.mrb[0].mxu0
    %4674 = vdwg.mxu0
    %4675 = vmatprep.subr.mxu0 0.0
    %v4676 = vand.u32 %v63, 4294901760
    %v4677 = vsub.f32 %v63, %v4676
    %4678 = vmatpush1.msra.mxu0 %v4677
    %4679 = vmatprep.subr.mxu0 0.0
    %v4680 = vand.u32 %v64, 4294901760
    %v4681 = vsub.f32 %v64, %v4680
    %4682 = vmatpush1.msra.mxu0 %v4681
    %4683 = vmatprep.subr.mxu0 0.0
    %v4684 = vand.u32 %v65, 4294901760
    %v4685 = vsub.f32 %v65, %v4684
    %4686 = vmatpush1.msra.mxu0 %v4685
    %4687 = vmatprep.subr.mxu0 0.0
    %v4688 = vand.u32 %v66, 4294901760
    %v4689 = vsub.f32 %v66, %v4688
    %4690 = vmatpush1.msra.mxu0 %v4689
    %4691 = vmatprep.subr.mxu0 0.0
    %v4692 = vand.u32 %v67, 4294901760
    %v4693 = vsub.f32 %v67, %v4692
    %4694 = vmatpush1.msra.mxu0 %v4693
    %4695 = vmatprep.subr.mxu0 0.0
    %v4696 = vand.u32 %v68, 4294901760
    %v4697 = vsub.f32 %v68, %v4696
    %4698 = vmatpush1.msra.mxu0 %v4697
    %4699 = vmatprep.subr.mxu0 0.0
    %v4700 = vand.u32 %v69, 4294901760
    %v4701 = vsub.f32 %v69, %v4700
    %4702 = vmatpush1.msra.mxu0 %v4701
    %4703 = vmatprep.subr.mxu0 0.0
    %v4704 = vand.u32 %v70, 4294901760
    %v4705 = vsub.f32 %v70, %v4704
    %4706 = vmatpush1.msra.mxu0 %v4705
    %4707 = vmatprep.subr.mxu0 0.0
    %v4708 = vand.u32 %v71, 4294901760
    %v4709 = vsub.f32 %v71, %v4708
    %4710 = vmatpush1.msra.mxu0 %v4709
    %4711 = vmatprep.subr.mxu0 0.0
    %v4712 = vand.u32 %v72, 4294901760
    %v4713 = vsub.f32 %v72, %v4712
    %4714 = vmatpush1.msra.mxu0 %v4713
    %4715 = vmatprep.subr.mxu0 0.0
    %v4716 = vand.u32 %v73, 4294901760
    %v4717 = vsub.f32 %v73, %v4716
    %4718 = vmatpush1.msra.mxu0 %v4717
    %4719 = vmatprep.subr.mxu0 0.0
    %v4720 = vand.u32 %v74, 4294901760
    %v4721 = vsub.f32 %v74, %v4720
    %4722 = vmatpush1.msra.mxu0 %v4721
    %4723 = vmatprep.subr.mxu0 0.0
    %v4724 = vand.u32 %v75, 4294901760
    %v4725 = vsub.f32 %v75, %v4724
    %4726 = vmatpush1.msra.mxu0 %v4725
    %4727 = vmatprep.subr.mxu0 0.0
    %v4728 = vand.u32 %v76, 4294901760
    %v4729 = vsub.f32 %v76, %v4728
    %4730 = vmatpush1.msra.mxu0 %v4729
    %4731 = vmatprep.subr.mxu0 0.0
    %v4732 = vand.u32 %v77, 4294901760
    %v4733 = vsub.f32 %v77, %v4732
    %4734 = vmatpush1.msra.mxu0 %v4733
    %4735 = vmatprep.subr.mxu0 0.0
    %v4736 = vand.u32 %v78, 4294901760
    %v4737 = vsub.f32 %v78, %v4736
    %4738 = vmatpush1.msra.mxu0 %v4737
    %4739 = vmatprep.subr.mxu0 0.0
    %4740 = vmatpush1.msra.mxu0 0.0
    %4741 = vmatprep.subr.mxu0 0.0
    %4742 = vmatpush1.msra.mxu0 0.0
    %4743 = vmatprep.subr.mxu0 0.0
    %4744 = vmatpush1.msra.mxu0 0.0
    %4745 = vmatprep.subr.mxu0 0.0
    %4746 = vmatpush1.msra.mxu0 0.0
    %4747 = vmatprep.subr.mxu0 0.0
    %4748 = vmatpush1.msra.mxu0 0.0
    %4749 = vmatprep.subr.mxu0 0.0
    %4750 = vmatpush1.msra.mxu0 0.0
    %4751 = vmatprep.subr.mxu0 0.0
    %4752 = vmatpush1.msra.mxu0 0.0
    %4753 = vmatprep.subr.mxu0 0.0
    %4754 = vmatpush1.msra.mxu0 0.0
    %4755 = vmatprep.subr.mxu0 0.0
    %4756 = vmatpush1.msra.mxu0 0.0
    %4757 = vmatprep.subr.mxu0 0.0
    %4758 = vmatpush1.msra.mxu0 0.0
    %4759 = vmatprep.subr.mxu0 0.0
    %4760 = vmatpush1.msra.mxu0 0.0
    %4761 = vmatprep.subr.mxu0 0.0
    %4762 = vmatpush1.msra.mxu0 0.0
    %4763 = vmatprep.subr.mxu0 0.0
    %4764 = vmatpush1.msra.mxu0 0.0
    %4765 = vmatprep.subr.mxu0 0.0
    %4766 = vmatpush1.msra.mxu0 0.0
    %4767 = vmatprep.subr.mxu0 0.0
    %4768 = vmatpush1.msra.mxu0 0.0
    %4769 = vmatprep.subr.mxu0 0.0
    %4770 = vmatpush1.msra.mxu0 0.0
    %4771 = vmatprep.mubr.f32.mxu0 0.0
    %v4772 = vand.u32 %v4415, 4294901760
    %v4773 = vsub.f32 %v4415, %v4772
    %4774 = vmatmul.mubr.f32.gmra.mrb[0].mxu0 %v4773
    %v4775 = vpop.f32.mrb[0].mxu0
    %v4776 = vadd.f32 %v4666, %v4775
    %v4777 = vpop.f32.mrb[0].mxu0
    %4778 = vmatprep.mubr.f32.mxu0 0.0
    %v4779 = vand.u32 %v4416, 4294901760
    %v4780 = vsub.f32 %v4416, %v4779
    %4781 = vmatmul.mubr.f32.gmra.mrb[0].mxu0 %v4780
    %v4782 = vpop.f32.mrb[0].mxu0
    %v4783 = vadd.f32 %v4672, %v4782
    %v4784 = vpop.f32.mrb[0].mxu0
    %4785 = vdwg.mxu0
    %4786 = vmatprep.subr.mxu0 0.0
    %v4787 = vand.u32 %v63, 4294901760
    %4788 = vmatpush1.msra.mxu0 %v4787
    %4789 = vmatprep.subr.mxu0 0.0
    %v4790 = vand.u32 %v64, 4294901760
    %4791 = vmatpush1.msra.mxu0 %v4790
    %4792 = vmatprep.subr.mxu0 0.0
    %v4793 = vand.u32 %v65, 4294901760
    %4794 = vmatpush1.msra.mxu0 %v4793
    %4795 = vmatprep.subr.mxu0 0.0
    %v4796 = vand.u32 %v66, 4294901760
    %4797 = vmatpush1.msra.mxu0 %v4796
    %4798 = vmatprep.subr.mxu0 0.0
    %v4799 = vand.u32 %v67, 4294901760
    %4800 = vmatpush1.msra.mxu0 %v4799
    %4801 = vmatprep.subr.mxu0 0.0
    %v4802 = vand.u32 %v68, 4294901760
    %4803 = vmatpush1.msra.mxu0 %v4802
    %4804 = vmatprep.subr.mxu0 0.0
    %v4805 = vand.u32 %v69, 4294901760
    %4806 = vmatpush1.msra.mxu0 %v4805
    %4807 = vmatprep.subr.mxu0 0.0
    %v4808 = vand.u32 %v70, 4294901760
    %4809 = vmatpush1.msra.mxu0 %v4808
    %4810 = vmatprep.subr.mxu0 0.0
    %v4811 = vand.u32 %v71, 4294901760
    %4812 = vmatpush1.msra.mxu0 %v4811
    %4813 = vmatprep.subr.mxu0 0.0
    %v4814 = vand.u32 %v72, 4294901760
    %4815 = vmatpush1.msra.mxu0 %v4814
    %4816 = vmatprep.subr.mxu0 0.0
    %v4817 = vand.u32 %v73, 4294901760
    %4818 = vmatpush1.msra.mxu0 %v4817
    %4819 = vmatprep.subr.mxu0 0.0
    %v4820 = vand.u32 %v74, 4294901760
    %4821 = vmatpush1.msra.mxu0 %v4820
    %4822 = vmatprep.subr.mxu0 0.0
    %v4823 = vand.u32 %v75, 4294901760
    %4824 = vmatpush1.msra.mxu0 %v4823
    %4825 = vmatprep.subr.mxu0 0.0
    %v4826 = vand.u32 %v76, 4294901760
    %4827 = vmatpush1.msra.mxu0 %v4826
    %4828 = vmatprep.subr.mxu0 0.0
    %v4829 = vand.u32 %v77, 4294901760
    %4830 = vmatpush1.msra.mxu0 %v4829
    %4831 = vmatprep.subr.mxu0 0.0
    %v4832 = vand.u32 %v78, 4294901760
    %4833 = vmatpush1.msra.mxu0 %v4832
    %4834 = vmatprep.subr.mxu0 0.0
    %4835 = vmatpush1.msra.mxu0 0.0
    %4836 = vmatprep.subr.mxu0 0.0
    %4837 = vmatpush1.msra.mxu0 0.0
    %4838 = vmatprep.subr.mxu0 0.0
    %4839 = vmatpush1.msra.mxu0 0.0
    %4840 = vmatprep.subr.mxu0 0.0
    %4841 = vmatpush1.msra.mxu0 0.0
    %4842 = vmatprep.subr.mxu0 0.0
    %4843 = vmatpush1.msra.mxu0 0.0
    %4844 = vmatprep.subr.mxu0 0.0
    %4845 = vmatpush1.msra.mxu0 0.0
    %4846 = vmatprep.subr.mxu0 0.0
    %4847 = vmatpush1.msra.mxu0 0.0
    %4848 = vmatprep.subr.mxu0 0.0
    %4849 = vmatpush1.msra.mxu0 0.0
    %4850 = vmatprep.subr.mxu0 0.0
    %4851 = vmatpush1.msra.mxu0 0.0
    %4852 = vmatprep.subr.mxu0 0.0
    %4853 = vmatpush1.msra.mxu0 0.0
    %4854 = vmatprep.subr.mxu0 0.0
    %4855 = vmatpush1.msra.mxu0 0.0
    %4856 = vmatprep.subr.mxu0 0.0
    %4857 = vmatpush1.msra.mxu0 0.0
    %4858 = vmatprep.subr.mxu0 0.0
    %4859 = vmatpush1.msra.mxu0 0.0
    %4860 = vmatprep.subr.mxu0 0.0
    %4861 = vmatpush1.msra.mxu0 0.0
    %4862 = vmatprep.subr.mxu0 0.0
    %4863 = vmatpush1.msra.mxu0 0.0
    %4864 = vmatprep.subr.mxu0 0.0
    %4865 = vmatpush1.msra.mxu0 0.0
    %4866 = vmatprep.mubr.f32.mxu0 0.0
    %v4867 = vand.u32 %v4415, 4294901760
    %v4868 = vsub.f32 %v4415, %v4867
    %v4869 = vand.u32 %v4868, 4294901760
    %4870 = vmatmul.mubr.f32.gmra.mrb[0].mxu0 %v4869
    %v4871 = vpop.f32.mrb[0].mxu0
    %v4872 = vadd.f32 %v4776, %v4871
    %v4873 = vpop.f32.mrb[0].mxu0
    %4874 = vmatprep.mubr.f32.mxu0 0.0
    %v4875 = vand.u32 %v4416, 4294901760
    %v4876 = vsub.f32 %v4416, %v4875
    %v4877 = vand.u32 %v4876, 4294901760
    %4878 = vmatmul.mubr.f32.gmra.mrb[0].mxu0 %v4877
    %v4879 = vpop.f32.mrb[0].mxu0
    %v4880 = vadd.f32 %v4783, %v4879
    %v4881 = vpop.f32.mrb[0].mxu0
    %4882 = vdwg.mxu0
    %4883 = vmatprep.subr.mxu0 0.0
    %v4884 = vand.u32 %v63, 4294901760
    %v4885 = vsub.f32 %v63, %v4884
    %v4886 = vand.u32 %v4885, 4294901760
    %4887 = vmatpush1.msra.mxu0 %v4886
    %4888 = vmatprep.subr.mxu0 0.0
    %v4889 = vand.u32 %v64, 4294901760
    %v4890 = vsub.f32 %v64, %v4889
    %v4891 = vand.u32 %v4890, 4294901760
    %4892 = vmatpush1.msra.mxu0 %v4891
    %4893 = vmatprep.subr.mxu0 0.0
    %v4894 = vand.u32 %v65, 4294901760
    %v4895 = vsub.f32 %v65, %v4894
    %v4896 = vand.u32 %v4895, 4294901760
    %4897 = vmatpush1.msra.mxu0 %v4896
    %4898 = vmatprep.subr.mxu0 0.0
    %v4899 = vand.u32 %v66, 4294901760
    %v4900 = vsub.f32 %v66, %v4899
    %v4901 = vand.u32 %v4900, 4294901760
    %4902 = vmatpush1.msra.mxu0 %v4901
    %4903 = vmatprep.subr.mxu0 0.0
    %v4904 = vand.u32 %v67, 4294901760
    %v4905 = vsub.f32 %v67, %v4904
    %v4906 = vand.u32 %v4905, 4294901760
    %4907 = vmatpush1.msra.mxu0 %v4906
    %4908 = vmatprep.subr.mxu0 0.0
    %v4909 = vand.u32 %v68, 4294901760
    %v4910 = vsub.f32 %v68, %v4909
    %v4911 = vand.u32 %v4910, 4294901760
    %4912 = vmatpush1.msra.mxu0 %v4911
    %4913 = vmatprep.subr.mxu0 0.0
    %v4914 = vand.u32 %v69, 4294901760
    %v4915 = vsub.f32 %v69, %v4914
    %v4916 = vand.u32 %v4915, 4294901760
    %4917 = vmatpush1.msra.mxu0 %v4916
    %4918 = vmatprep.subr.mxu0 0.0
    %v4919 = vand.u32 %v70, 4294901760
    %v4920 = vsub.f32 %v70, %v4919
    %v4921 = vand.u32 %v4920, 4294901760
    %4922 = vmatpush1.msra.mxu0 %v4921
    %4923 = vmatprep.subr.mxu0 0.0
    %v4924 = vand.u32 %v71, 4294901760
    %v4925 = vsub.f32 %v71, %v4924
    %v4926 = vand.u32 %v4925, 4294901760
    %4927 = vmatpush1.msra.mxu0 %v4926
    %4928 = vmatprep.subr.mxu0 0.0
    %v4929 = vand.u32 %v72, 4294901760
    %v4930 = vsub.f32 %v72, %v4929
    %v4931 = vand.u32 %v4930, 4294901760
    %4932 = vmatpush1.msra.mxu0 %v4931
    %4933 = vmatprep.subr.mxu0 0.0
    %v4934 = vand.u32 %v73, 4294901760
    %v4935 = vsub.f32 %v73, %v4934
    %v4936 = vand.u32 %v4935, 4294901760
    %4937 = vmatpush1.msra.mxu0 %v4936
    %4938 = vmatprep.subr.mxu0 0.0
    %v4939 = vand.u32 %v74, 4294901760
    %v4940 = vsub.f32 %v74, %v4939
    %v4941 = vand.u32 %v4940, 4294901760
    %4942 = vmatpush1.msra.mxu0 %v4941
    %4943 = vmatprep.subr.mxu0 0.0
    %v4944 = vand.u32 %v75, 4294901760
    %v4945 = vsub.f32 %v75, %v4944
    %v4946 = vand.u32 %v4945, 4294901760
    %4947 = vmatpush1.msra.mxu0 %v4946
    %4948 = vmatprep.subr.mxu0 0.0
    %v4949 = vand.u32 %v76, 4294901760
    %v4950 = vsub.f32 %v76, %v4949
    %v4951 = vand.u32 %v4950, 4294901760
    %4952 = vmatpush1.msra.mxu0 %v4951
    %4953 = vmatprep.subr.mxu0 0.0
    %v4954 = vand.u32 %v77, 4294901760
    %v4955 = vsub.f32 %v77, %v4954
    %v4956 = vand.u32 %v4955, 4294901760
    %4957 = vmatpush1.msra.mxu0 %v4956
    %4958 = vmatprep.subr.mxu0 0.0
    %v4959 = vand.u32 %v78, 4294901760
    %v4960 = vsub.f32 %v78, %v4959
    %v4961 = vand.u32 %v4960, 4294901760
    %4962 = vmatpush1.msra.mxu0 %v4961
    %4963 = vmatprep.subr.mxu0 0.0
    %4964 = vmatpush1.msra.mxu0 0.0
    %4965 = vmatprep.subr.mxu0 0.0
    %4966 = vmatpush1.msra.mxu0 0.0
    %4967 = vmatprep.subr.mxu0 0.0
    %4968 = vmatpush1.msra.mxu0 0.0
    %4969 = vmatprep.subr.mxu0 0.0
    %4970 = vmatpush1.msra.mxu0 0.0
    %4971 = vmatprep.subr.mxu0 0.0
    %4972 = vmatpush1.msra.mxu0 0.0
    %4973 = vmatprep.subr.mxu0 0.0
    %4974 = vmatpush1.msra.mxu0 0.0
    %4975 = vmatprep.subr.mxu0 0.0
    %4976 = vmatpush1.msra.mxu0 0.0
    %4977 = vmatprep.subr.mxu0 0.0
    %4978 = vmatpush1.msra.mxu0 0.0
    %4979 = vmatprep.subr.mxu0 0.0
    %4980 = vmatpush1.msra.mxu0 0.0
    %4981 = vmatprep.subr.mxu0 0.0
    %4982 = vmatpush1.msra.mxu0 0.0
    %4983 = vmatprep.subr.mxu0 0.0
    %4984 = vmatpush1.msra.mxu0 0.0
    %4985 = vmatprep.subr.mxu0 0.0
    %4986 = vmatpush1.msra.mxu0 0.0
    %4987 = vmatprep.subr.mxu0 0.0
    %4988 = vmatpush1.msra.mxu0 0.0
    %4989 = vmatprep.subr.mxu0 0.0
    %4990 = vmatpush1.msra.mxu0 0.0
    %4991 = vmatprep.subr.mxu0 0.0
    %4992 = vmatpush1.msra.mxu0 0.0
    %4993 = vmatprep.subr.mxu0 0.0
    %4994 = vmatpush1.msra.mxu0 0.0
    %4995 = vmatprep.mubr.f32.mxu0 0.0
    %v4996 = vand.u32 %v4415, 4294901760
    %4997 = vmatmul.mubr.f32.gmra.mrb[0].mxu0 %v4996
    %v4998 = vpop.f32.mrb[0].mxu0
    %v4999 = vadd.f32 %v4872, %v4998
    %v5000 = vpop.f32.mrb[0].mxu0
    %5001 = vmatprep.mubr.f32.mxu0 0.0
    %v5002 = vand.u32 %v4416, 4294901760
    %5003 = vmatmul.mubr.f32.gmra.mrb[0].mxu0 %v5002
    %v5004 = vpop.f32.mrb[0].mxu0
    %v5005 = vadd.f32 %v4880, %v5004
    %v5006 = vpop.f32.mrb[0].mxu0
    %5007 = vdwg.mxu0
    %5008 = vmatprep.subr.mxu0 0.0
    %v5009 = vand.u32 %v63, 4294901760
    %5010 = vmatpush1.msra.mxu0 %v5009
    %5011 = vmatprep.subr.mxu0 0.0
    %v5012 = vand.u32 %v64, 4294901760
    %5013 = vmatpush1.msra.mxu0 %v5012
    %5014 = vmatprep.subr.mxu0 0.0
    %v5015 = vand.u32 %v65, 4294901760
    %5016 = vmatpush1.msra.mxu0 %v5015
    %5017 = vmatprep.subr.mxu0 0.0
    %v5018 = vand.u32 %v66, 4294901760
    %5019 = vmatpush1.msra.mxu0 %v5018
    %5020 = vmatprep.subr.mxu0 0.0
    %v5021 = vand.u32 %v67, 4294901760
    %5022 = vmatpush1.msra.mxu0 %v5021
    %5023 = vmatprep.subr.mxu0 0.0
    %v5024 = vand.u32 %v68, 4294901760
    %5025 = vmatpush1.msra.mxu0 %v5024
    %5026 = vmatprep.subr.mxu0 0.0
    %v5027 = vand.u32 %v69, 4294901760
    %5028 = vmatpush1.msra.mxu0 %v5027
    %5029 = vmatprep.subr.mxu0 0.0
    %v5030 = vand.u32 %v70, 4294901760
    %5031 = vmatpush1.msra.mxu0 %v5030
    %5032 = vmatprep.subr.mxu0 0.0
    %v5033 = vand.u32 %v71, 4294901760
    %5034 = vmatpush1.msra.mxu0 %v5033
    %5035 = vmatprep.subr.mxu0 0.0
    %v5036 = vand.u32 %v72, 4294901760
    %5037 = vmatpush1.msra.mxu0 %v5036
    %5038 = vmatprep.subr.mxu0 0.0
    %v5039 = vand.u32 %v73, 4294901760
    %5040 = vmatpush1.msra.mxu0 %v5039
    %5041 = vmatprep.subr.mxu0 0.0
    %v5042 = vand.u32 %v74, 4294901760
    %5043 = vmatpush1.msra.mxu0 %v5042
    %5044 = vmatprep.subr.mxu0 0.0
    %v5045 = vand.u32 %v75, 4294901760
    %5046 = vmatpush1.msra.mxu0 %v5045
    %5047 = vmatprep.subr.mxu0 0.0
    %v5048 = vand.u32 %v76, 4294901760
    %5049 = vmatpush1.msra.mxu0 %v5048
    %5050 = vmatprep.subr.mxu0 0.0
    %v5051 = vand.u32 %v77, 4294901760
    %5052 = vmatpush1.msra.mxu0 %v5051
    %5053 = vmatprep.subr.mxu0 0.0
    %v5054 = vand.u32 %v78, 4294901760
    %5055 = vmatpush1.msra.mxu0 %v5054
    %5056 = vmatprep.subr.mxu0 0.0
    %5057 = vmatpush1.msra.mxu0 0.0
    %5058 = vmatprep.subr.mxu0 0.0
    %5059 = vmatpush1.msra.mxu0 0.0
    %5060 = vmatprep.subr.mxu0 0.0
    %5061 = vmatpush1.msra.mxu0 0.0
    %5062 = vmatprep.subr.mxu0 0.0
    %5063 = vmatpush1.msra.mxu0 0.0
    %5064 = vmatprep.subr.mxu0 0.0
    %5065 = vmatpush1.msra.mxu0 0.0
    %5066 = vmatprep.subr.mxu0 0.0
    %5067 = vmatpush1.msra.mxu0 0.0
    %5068 = vmatprep.subr.mxu0 0.0
    %5069 = vmatpush1.msra.mxu0 0.0
    %5070 = vmatprep.subr.mxu0 0.0
    %5071 = vmatpush1.msra.mxu0 0.0
    %5072 = vmatprep.subr.mxu0 0.0
    %5073 = vmatpush1.msra.mxu0 0.0
    %5074 = vmatprep.subr.mxu0 0.0
    %5075 = vmatpush1.msra.mxu0 0.0
    %5076 = vmatprep.subr.mxu0 0.0
    %5077 = vmatpush1.msra.mxu0 0.0
    %5078 = vmatprep.subr.mxu0 0.0
    %5079 = vmatpush1.msra.mxu0 0.0
    %5080 = vmatprep.subr.mxu0 0.0
    %5081 = vmatpush1.msra.mxu0 0.0
    %5082 = vmatprep.subr.mxu0 0.0
    %5083 = vmatpush1.msra.mxu0 0.0
    %5084 = vmatprep.subr.mxu0 0.0
    %5085 = vmatpush1.msra.mxu0 0.0
    %5086 = vmatprep.subr.mxu0 0.0
    %5087 = vmatpush1.msra.mxu0 0.0
    %5088 = vmatprep.mubr.f32.mxu0 0.0
    %v5089 = vand.u32 %v4415, 4294901760
    %5090 = vmatmul.mubr.f32.gmra.mrb[0].mxu0 %v5089
    %v5091 = vpop.f32.mrb[0].mxu0
    %v5092 = vadd.f32 %v4999, %v5091
    %v5093 = vpop.f32.mrb[0].mxu0
    %5094 = vmatprep.mubr.f32.mxu0 0.0
    %v5095 = vand.u32 %v4416, 4294901760
    %5096 = vmatmul.mubr.f32.gmra.mrb[0].mxu0 %v5095
    %v5097 = vpop.f32.mrb[0].mxu0
    %v5098 = vadd.f32 %v5005, %v5097
    %v5099 = vpop.f32.mrb[0].mxu0
    %5100 = vdwg.mxu0
    %v5101 = vsel %vm1180, %v5092, 0.0
    %v5102 = vsel %vm1180, %v5098, 0.0
    %v5103 = vadd.f32 %v5101, %v5102
    %v5104 = vrot.slane %v5103, 4
    %v5105 = vadd.f32 %v5103, %v5104
    %v5106 = vrot.slane %v5105, 2
    %v5107 = vadd.f32 %v5105, %v5106
    %v5108 = vrot.slane %v5107, 1
    %v5109 = vadd.f32 %v5107, %v5108
    %v5111 = vsel %vm1180, %v5109, 0
    %5113 = vmatprep.subr.mxu0 0.0
    %v5114 = vand.u32 %v79, 4294901760
    %5115 = vmatpush1.msra.mxu0 %v5114
    %5116 = vmatprep.subr.mxu0 0.0
    %5117 = vmatpush1.msra.mxu0 0.0
    %5118 = vmatprep.subr.mxu0 0.0
    %5119 = vmatpush1.msra.mxu0 0.0
    %5120 = vmatprep.subr.mxu0 0.0
    %5121 = vmatpush1.msra.mxu0 0.0
    %5122 = vmatprep.subr.mxu0 0.0
    %5123 = vmatpush1.msra.mxu0 0.0
    %5124 = vmatprep.subr.mxu0 0.0
    %5125 = vmatpush1.msra.mxu0 0.0
    %5126 = vmatprep.subr.mxu0 0.0
    %5127 = vmatpush1.msra.mxu0 0.0
    %5128 = vmatprep.subr.mxu0 0.0
    %5129 = vmatpush1.msra.mxu0 0.0
    %5130 = vmatprep.subr.mxu0 0.0
    %5131 = vmatpush1.msra.mxu0 0.0
    %5132 = vmatprep.subr.mxu0 0.0
    %5133 = vmatpush1.msra.mxu0 0.0
    %5134 = vmatprep.subr.mxu0 0.0
    %5135 = vmatpush1.msra.mxu0 0.0
    %5136 = vmatprep.subr.mxu0 0.0
    %5137 = vmatpush1.msra.mxu0 0.0
    %5138 = vmatprep.subr.mxu0 0.0
    %5139 = vmatpush1.msra.mxu0 0.0
    %5140 = vmatprep.subr.mxu0 0.0
    %5141 = vmatpush1.msra.mxu0 0.0
    %5142 = vmatprep.subr.mxu0 0.0
    %5143 = vmatpush1.msra.mxu0 0.0
    %5144 = vmatprep.subr.mxu0 0.0
    %5145 = vmatpush1.msra.mxu0 0.0
    %5146 = vmatprep.subr.mxu0 0.0
    %5147 = vmatpush1.msra.mxu0 0.0
    %5148 = vmatprep.subr.mxu0 0.0
    %5149 = vmatpush1.msra.mxu0 0.0
    %5150 = vmatprep.subr.mxu0 0.0
    %5151 = vmatpush1.msra.mxu0 0.0
    %5152 = vmatprep.subr.mxu0 0.0
    %5153 = vmatpush1.msra.mxu0 0.0
    %5154 = vmatprep.subr.mxu0 0.0
    %5155 = vmatpush1.msra.mxu0 0.0
    %5156 = vmatprep.subr.mxu0 0.0
    %5157 = vmatpush1.msra.mxu0 0.0
    %5158 = vmatprep.subr.mxu0 0.0
    %5159 = vmatpush1.msra.mxu0 0.0
    %5160 = vmatprep.subr.mxu0 0.0
    %5161 = vmatpush1.msra.mxu0 0.0
    %5162 = vmatprep.subr.mxu0 0.0
    %5163 = vmatpush1.msra.mxu0 0.0
    %5164 = vmatprep.subr.mxu0 0.0
    %5165 = vmatpush1.msra.mxu0 0.0
    %5166 = vmatprep.subr.mxu0 0.0
    %5167 = vmatpush1.msra.mxu0 0.0
    %5168 = vmatprep.subr.mxu0 0.0
    %5169 = vmatpush1.msra.mxu0 0.0
    %5170 = vmatprep.subr.mxu0 0.0
    %5171 = vmatpush1.msra.mxu0 0.0
    %5172 = vmatprep.subr.mxu0 0.0
    %5173 = vmatpush1.msra.mxu0 0.0
    %5174 = vmatprep.subr.mxu0 0.0
    %5175 = vmatpush1.msra.mxu0 0.0
    %5176 = vmatprep.subr.mxu0 0.0
    %5177 = vmatpush1.msra.mxu0 0.0
    %5178 = vmatprep.mubr.f32.mxu0 0.0
    %v5179 = vand.u32 %v5111, 4294901760
    %v5180 = vsub.f32 %v5111, %v5179
    %v5181 = vand.u32 %v5180, 4294901760
    %v5182 = vsub.f32 %v5180, %v5181
    %v5183 = vand.u32 %v5182, 4294901760
    %5184 = vmatmul.mubr.f32.gmra.mrb[0].mxu0 %v5183
    %v5185 = vpop.f32.mrb[0].mxu0
    %v5186 = vadd.f32 1e-05, %v5185
    %v5187 = vpop.f32.mrb[0].mxu0
    %5188 = vmatprep.mubr.f32.mxu0 0.0
    %v5189 = vand.u32 %v5111, 4294901760
    %v5190 = vsub.f32 %v5111, %v5189
    %v5191 = vand.u32 %v5190, 4294901760
    %v5192 = vsub.f32 %v5190, %v5191
    %v5193 = vand.u32 %v5192, 4294901760
    %5194 = vmatmul.mubr.f32.gmra.mrb[0].mxu0 %v5193
    %v5195 = vpop.f32.mrb[0].mxu0
    %v5196 = vadd.f32 1e-05, %v5195
    %v5197 = vpop.f32.mrb[0].mxu0
    %5198 = vdwg.mxu0
    %5199 = vmatprep.subr.mxu0 0.0
    %v5200 = vand.u32 %v79, 4294901760
    %v5201 = vsub.f32 %v79, %v5200
    %v5202 = vand.u32 %v5201, 4294901760
    %v5203 = vsub.f32 %v5201, %v5202
    %v5204 = vand.u32 %v5203, 4294901760
    %5205 = vmatpush1.msra.mxu0 %v5204
    %5206 = vmatprep.subr.mxu0 0.0
    %5207 = vmatpush1.msra.mxu0 0.0
    %5208 = vmatprep.subr.mxu0 0.0
    %5209 = vmatpush1.msra.mxu0 0.0
    %5210 = vmatprep.subr.mxu0 0.0
    %5211 = vmatpush1.msra.mxu0 0.0
    %5212 = vmatprep.subr.mxu0 0.0
    %5213 = vmatpush1.msra.mxu0 0.0
    %5214 = vmatprep.subr.mxu0 0.0
    %5215 = vmatpush1.msra.mxu0 0.0
    %5216 = vmatprep.subr.mxu0 0.0
    %5217 = vmatpush1.msra.mxu0 0.0
    %5218 = vmatprep.subr.mxu0 0.0
    %5219 = vmatpush1.msra.mxu0 0.0
    %5220 = vmatprep.subr.mxu0 0.0
    %5221 = vmatpush1.msra.mxu0 0.0
    %5222 = vmatprep.subr.mxu0 0.0
    %5223 = vmatpush1.msra.mxu0 0.0
    %5224 = vmatprep.subr.mxu0 0.0
    %5225 = vmatpush1.msra.mxu0 0.0
    %5226 = vmatprep.subr.mxu0 0.0
    %5227 = vmatpush1.msra.mxu0 0.0
    %5228 = vmatprep.subr.mxu0 0.0
    %5229 = vmatpush1.msra.mxu0 0.0
    %5230 = vmatprep.subr.mxu0 0.0
    %5231 = vmatpush1.msra.mxu0 0.0
    %5232 = vmatprep.subr.mxu0 0.0
    %5233 = vmatpush1.msra.mxu0 0.0
    %5234 = vmatprep.subr.mxu0 0.0
    %5235 = vmatpush1.msra.mxu0 0.0
    %5236 = vmatprep.subr.mxu0 0.0
    %5237 = vmatpush1.msra.mxu0 0.0
    %5238 = vmatprep.subr.mxu0 0.0
    %5239 = vmatpush1.msra.mxu0 0.0
    %5240 = vmatprep.subr.mxu0 0.0
    %5241 = vmatpush1.msra.mxu0 0.0
    %5242 = vmatprep.subr.mxu0 0.0
    %5243 = vmatpush1.msra.mxu0 0.0
    %5244 = vmatprep.subr.mxu0 0.0
    %5245 = vmatpush1.msra.mxu0 0.0
    %5246 = vmatprep.subr.mxu0 0.0
    %5247 = vmatpush1.msra.mxu0 0.0
    %5248 = vmatprep.subr.mxu0 0.0
    %5249 = vmatpush1.msra.mxu0 0.0
    %5250 = vmatprep.subr.mxu0 0.0
    %5251 = vmatpush1.msra.mxu0 0.0
    %5252 = vmatprep.subr.mxu0 0.0
    %5253 = vmatpush1.msra.mxu0 0.0
    %5254 = vmatprep.subr.mxu0 0.0
    %5255 = vmatpush1.msra.mxu0 0.0
    %5256 = vmatprep.subr.mxu0 0.0
    %5257 = vmatpush1.msra.mxu0 0.0
    %5258 = vmatprep.subr.mxu0 0.0
    %5259 = vmatpush1.msra.mxu0 0.0
    %5260 = vmatprep.subr.mxu0 0.0
    %5261 = vmatpush1.msra.mxu0 0.0
    %5262 = vmatprep.subr.mxu0 0.0
    %5263 = vmatpush1.msra.mxu0 0.0
    %5264 = vmatprep.subr.mxu0 0.0
    %5265 = vmatpush1.msra.mxu0 0.0
    %5266 = vmatprep.subr.mxu0 0.0
    %5267 = vmatpush1.msra.mxu0 0.0
    %5268 = vmatprep.mubr.f32.mxu0 0.0
    %v5269 = vand.u32 %v5111, 4294901760
    %5270 = vmatmul.mubr.f32.gmra.mrb[0].mxu0 %v5269
    %v5271 = vpop.f32.mrb[0].mxu0
    %v5272 = vadd.f32 %v5186, %v5271
    %v5273 = vpop.f32.mrb[0].mxu0
    %5274 = vmatprep.mubr.f32.mxu0 0.0
    %v5275 = vand.u32 %v5111, 4294901760
    %5276 = vmatmul.mubr.f32.gmra.mrb[0].mxu0 %v5275
    %v5277 = vpop.f32.mrb[0].mxu0
    %v5278 = vadd.f32 %v5196, %v5277
    %v5279 = vpop.f32.mrb[0].mxu0
    %5280 = vdwg.mxu0
    %5281 = vmatprep.subr.mxu0 0.0
    %v5282 = vand.u32 %v79, 4294901760
    %v5283 = vsub.f32 %v79, %v5282
    %5284 = vmatpush1.msra.mxu0 %v5283
    %5285 = vmatprep.subr.mxu0 0.0
    %5286 = vmatpush1.msra.mxu0 0.0
    %5287 = vmatprep.subr.mxu0 0.0
    %5288 = vmatpush1.msra.mxu0 0.0
    %5289 = vmatprep.subr.mxu0 0.0
    %5290 = vmatpush1.msra.mxu0 0.0
    %5291 = vmatprep.subr.mxu0 0.0
    %5292 = vmatpush1.msra.mxu0 0.0
    %5293 = vmatprep.subr.mxu0 0.0
    %5294 = vmatpush1.msra.mxu0 0.0
    %5295 = vmatprep.subr.mxu0 0.0
    %5296 = vmatpush1.msra.mxu0 0.0
    %5297 = vmatprep.subr.mxu0 0.0
    %5298 = vmatpush1.msra.mxu0 0.0
    %5299 = vmatprep.subr.mxu0 0.0
    %5300 = vmatpush1.msra.mxu0 0.0
    %5301 = vmatprep.subr.mxu0 0.0
    %5302 = vmatpush1.msra.mxu0 0.0
    %5303 = vmatprep.subr.mxu0 0.0
    %5304 = vmatpush1.msra.mxu0 0.0
    %5305 = vmatprep.subr.mxu0 0.0
    %5306 = vmatpush1.msra.mxu0 0.0
    %5307 = vmatprep.subr.mxu0 0.0
    %5308 = vmatpush1.msra.mxu0 0.0
    %5309 = vmatprep.subr.mxu0 0.0
    %5310 = vmatpush1.msra.mxu0 0.0
    %5311 = vmatprep.subr.mxu0 0.0
    %5312 = vmatpush1.msra.mxu0 0.0
    %5313 = vmatprep.subr.mxu0 0.0
    %5314 = vmatpush1.msra.mxu0 0.0
    %5315 = vmatprep.subr.mxu0 0.0
    %5316 = vmatpush1.msra.mxu0 0.0
    %5317 = vmatprep.subr.mxu0 0.0
    %5318 = vmatpush1.msra.mxu0 0.0
    %5319 = vmatprep.subr.mxu0 0.0
    %5320 = vmatpush1.msra.mxu0 0.0
    %5321 = vmatprep.subr.mxu0 0.0
    %5322 = vmatpush1.msra.mxu0 0.0
    %5323 = vmatprep.subr.mxu0 0.0
    %5324 = vmatpush1.msra.mxu0 0.0
    %5325 = vmatprep.subr.mxu0 0.0
    %5326 = vmatpush1.msra.mxu0 0.0
    %5327 = vmatprep.subr.mxu0 0.0
    %5328 = vmatpush1.msra.mxu0 0.0
    %5329 = vmatprep.subr.mxu0 0.0
    %5330 = vmatpush1.msra.mxu0 0.0
    %5331 = vmatprep.subr.mxu0 0.0
    %5332 = vmatpush1.msra.mxu0 0.0
    %5333 = vmatprep.subr.mxu0 0.0
    %5334 = vmatpush1.msra.mxu0 0.0
    %5335 = vmatprep.subr.mxu0 0.0
    %5336 = vmatpush1.msra.mxu0 0.0
    %5337 = vmatprep.subr.mxu0 0.0
    %5338 = vmatpush1.msra.mxu0 0.0
    %5339 = vmatprep.subr.mxu0 0.0
    %5340 = vmatpush1.msra.mxu0 0.0
    %5341 = vmatprep.subr.mxu0 0.0
    %5342 = vmatpush1.msra.mxu0 0.0
    %5343 = vmatprep.subr.mxu0 0.0
    %5344 = vmatpush1.msra.mxu0 0.0
    %5345 = vmatprep.subr.mxu0 0.0
    %5346 = vmatpush1.msra.mxu0 0.0
    %5347 = vmatprep.mubr.f32.mxu0 0.0
    %v5348 = vand.u32 %v5111, 4294901760
    %v5349 = vsub.f32 %v5111, %v5348
    %5350 = vmatmul.mubr.f32.gmra.mrb[0].mxu0 %v5349
    %v5351 = vpop.f32.mrb[0].mxu0
    %v5352 = vadd.f32 %v5272, %v5351
    %v5353 = vpop.f32.mrb[0].mxu0
    %5354 = vmatprep.mubr.f32.mxu0 0.0
    %v5355 = vand.u32 %v5111, 4294901760
    %v5356 = vsub.f32 %v5111, %v5355
    %5357 = vmatmul.mubr.f32.gmra.mrb[0].mxu0 %v5356
    %v5358 = vpop.f32.mrb[0].mxu0
    %v5359 = vadd.f32 %v5278, %v5358
    %v5360 = vpop.f32.mrb[0].mxu0
    %5361 = vdwg.mxu0
    %5362 = vmatprep.subr.mxu0 0.0
    %v5363 = vand.u32 %v79, 4294901760
    %5364 = vmatpush1.msra.mxu0 %v5363
    %5365 = vmatprep.subr.mxu0 0.0
    %5366 = vmatpush1.msra.mxu0 0.0
    %5367 = vmatprep.subr.mxu0 0.0
    %5368 = vmatpush1.msra.mxu0 0.0
    %5369 = vmatprep.subr.mxu0 0.0
    %5370 = vmatpush1.msra.mxu0 0.0
    %5371 = vmatprep.subr.mxu0 0.0
    %5372 = vmatpush1.msra.mxu0 0.0
    %5373 = vmatprep.subr.mxu0 0.0
    %5374 = vmatpush1.msra.mxu0 0.0
    %5375 = vmatprep.subr.mxu0 0.0
    %5376 = vmatpush1.msra.mxu0 0.0
    %5377 = vmatprep.subr.mxu0 0.0
    %5378 = vmatpush1.msra.mxu0 0.0
    %5379 = vmatprep.subr.mxu0 0.0
    %5380 = vmatpush1.msra.mxu0 0.0
    %5381 = vmatprep.subr.mxu0 0.0
    %5382 = vmatpush1.msra.mxu0 0.0
    %5383 = vmatprep.subr.mxu0 0.0
    %5384 = vmatpush1.msra.mxu0 0.0
    %5385 = vmatprep.subr.mxu0 0.0
    %5386 = vmatpush1.msra.mxu0 0.0
    %5387 = vmatprep.subr.mxu0 0.0
    %5388 = vmatpush1.msra.mxu0 0.0
    %5389 = vmatprep.subr.mxu0 0.0
    %5390 = vmatpush1.msra.mxu0 0.0
    %5391 = vmatprep.subr.mxu0 0.0
    %5392 = vmatpush1.msra.mxu0 0.0
    %5393 = vmatprep.subr.mxu0 0.0
    %5394 = vmatpush1.msra.mxu0 0.0
    %5395 = vmatprep.subr.mxu0 0.0
    %5396 = vmatpush1.msra.mxu0 0.0
    %5397 = vmatprep.subr.mxu0 0.0
    %5398 = vmatpush1.msra.mxu0 0.0
    %5399 = vmatprep.subr.mxu0 0.0
    %5400 = vmatpush1.msra.mxu0 0.0
    %5401 = vmatprep.subr.mxu0 0.0
    %5402 = vmatpush1.msra.mxu0 0.0
    %5403 = vmatprep.subr.mxu0 0.0
    %5404 = vmatpush1.msra.mxu0 0.0
    %5405 = vmatprep.subr.mxu0 0.0
    %5406 = vmatpush1.msra.mxu0 0.0
    %5407 = vmatprep.subr.mxu0 0.0
    %5408 = vmatpush1.msra.mxu0 0.0
    %5409 = vmatprep.subr.mxu0 0.0
    %5410 = vmatpush1.msra.mxu0 0.0
    %5411 = vmatprep.subr.mxu0 0.0
    %5412 = vmatpush1.msra.mxu0 0.0
    %5413 = vmatprep.subr.mxu0 0.0
    %5414 = vmatpush1.msra.mxu0 0.0
    %5415 = vmatprep.subr.mxu0 0.0
    %5416 = vmatpush1.msra.mxu0 0.0
    %5417 = vmatprep.subr.mxu0 0.0
    %5418 = vmatpush1.msra.mxu0 0.0
    %5419 = vmatprep.subr.mxu0 0.0
    %5420 = vmatpush1.msra.mxu0 0.0
    %5421 = vmatprep.subr.mxu0 0.0
    %5422 = vmatpush1.msra.mxu0 0.0
    %5423 = vmatprep.subr.mxu0 0.0
    %5424 = vmatpush1.msra.mxu0 0.0
    %5425 = vmatprep.subr.mxu0 0.0
    %5426 = vmatpush1.msra.mxu0 0.0
    %5427 = vmatprep.mubr.f32.mxu0 0.0
    %v5428 = vand.u32 %v5111, 4294901760
    %v5429 = vsub.f32 %v5111, %v5428
    %v5430 = vand.u32 %v5429, 4294901760
    %5431 = vmatmul.mubr.f32.gmra.mrb[0].mxu0 %v5430
    %v5432 = vpop.f32.mrb[0].mxu0
    %v5433 = vadd.f32 %v5352, %v5432
    %v5434 = vpop.f32.mrb[0].mxu0
    %5435 = vmatprep.mubr.f32.mxu0 0.0
    %v5436 = vand.u32 %v5111, 4294901760
    %v5437 = vsub.f32 %v5111, %v5436
    %v5438 = vand.u32 %v5437, 4294901760
    %5439 = vmatmul.mubr.f32.gmra.mrb[0].mxu0 %v5438
    %v5440 = vpop.f32.mrb[0].mxu0
    %v5441 = vadd.f32 %v5359, %v5440
    %v5442 = vpop.f32.mrb[0].mxu0
    %5443 = vdwg.mxu0
    %5444 = vmatprep.subr.mxu0 0.0
    %v5445 = vand.u32 %v79, 4294901760
    %v5446 = vsub.f32 %v79, %v5445
    %v5447 = vand.u32 %v5446, 4294901760
    %5448 = vmatpush1.msra.mxu0 %v5447
    %5449 = vmatprep.subr.mxu0 0.0
    %5450 = vmatpush1.msra.mxu0 0.0
    %5451 = vmatprep.subr.mxu0 0.0
    %5452 = vmatpush1.msra.mxu0 0.0
    %5453 = vmatprep.subr.mxu0 0.0
    %5454 = vmatpush1.msra.mxu0 0.0
    %5455 = vmatprep.subr.mxu0 0.0
    %5456 = vmatpush1.msra.mxu0 0.0
    %5457 = vmatprep.subr.mxu0 0.0
    %5458 = vmatpush1.msra.mxu0 0.0
    %5459 = vmatprep.subr.mxu0 0.0
    %5460 = vmatpush1.msra.mxu0 0.0
    %5461 = vmatprep.subr.mxu0 0.0
    %5462 = vmatpush1.msra.mxu0 0.0
    %5463 = vmatprep.subr.mxu0 0.0
    %5464 = vmatpush1.msra.mxu0 0.0
    %5465 = vmatprep.subr.mxu0 0.0
    %5466 = vmatpush1.msra.mxu0 0.0
    %5467 = vmatprep.subr.mxu0 0.0
    %5468 = vmatpush1.msra.mxu0 0.0
    %5469 = vmatprep.subr.mxu0 0.0
    %5470 = vmatpush1.msra.mxu0 0.0
    %5471 = vmatprep.subr.mxu0 0.0
    %5472 = vmatpush1.msra.mxu0 0.0
    %5473 = vmatprep.subr.mxu0 0.0
    %5474 = vmatpush1.msra.mxu0 0.0
    %5475 = vmatprep.subr.mxu0 0.0
    %5476 = vmatpush1.msra.mxu0 0.0
    %5477 = vmatprep.subr.mxu0 0.0
    %5478 = vmatpush1.msra.mxu0 0.0
    %5479 = vmatprep.subr.mxu0 0.0
    %5480 = vmatpush1.msra.mxu0 0.0
    %5481 = vmatprep.subr.mxu0 0.0
    %5482 = vmatpush1.msra.mxu0 0.0
    %5483 = vmatprep.subr.mxu0 0.0
    %5484 = vmatpush1.msra.mxu0 0.0
    %5485 = vmatprep.subr.mxu0 0.0
    %5486 = vmatpush1.msra.mxu0 0.0
    %5487 = vmatprep.subr.mxu0 0.0
    %5488 = vmatpush1.msra.mxu0 0.0
    %5489 = vmatprep.subr.mxu0 0.0
    %5490 = vmatpush1.msra.mxu0 0.0
    %5491 = vmatprep.subr.mxu0 0.0
    %5492 = vmatpush1.msra.mxu0 0.0
    %5493 = vmatprep.subr.mxu0 0.0
    %5494 = vmatpush1.msra.mxu0 0.0
    %5495 = vmatprep.subr.mxu0 0.0
    %5496 = vmatpush1.msra.mxu0 0.0
    %5497 = vmatprep.subr.mxu0 0.0
    %5498 = vmatpush1.msra.mxu0 0.0
    %5499 = vmatprep.subr.mxu0 0.0
    %5500 = vmatpush1.msra.mxu0 0.0
    %5501 = vmatprep.subr.mxu0 0.0
    %5502 = vmatpush1.msra.mxu0 0.0
    %5503 = vmatprep.subr.mxu0 0.0
    %5504 = vmatpush1.msra.mxu0 0.0
    %5505 = vmatprep.subr.mxu0 0.0
    %5506 = vmatpush1.msra.mxu0 0.0
    %5507 = vmatprep.subr.mxu0 0.0
    %5508 = vmatpush1.msra.mxu0 0.0
    %5509 = vmatprep.subr.mxu0 0.0
    %5510 = vmatpush1.msra.mxu0 0.0
    %5511 = vmatprep.mubr.f32.mxu0 0.0
    %v5512 = vand.u32 %v5111, 4294901760
    %5513 = vmatmul.mubr.f32.gmra.mrb[0].mxu0 %v5512
    %v5514 = vpop.f32.mrb[0].mxu0
    %v5515 = vadd.f32 %v5433, %v5514
    %v5516 = vpop.f32.mrb[0].mxu0
    %5517 = vmatprep.mubr.f32.mxu0 0.0
    %v5518 = vand.u32 %v5111, 4294901760
    %5519 = vmatmul.mubr.f32.gmra.mrb[0].mxu0 %v5518
    %v5520 = vpop.f32.mrb[0].mxu0
    %v5521 = vadd.f32 %v5441, %v5520
    %v5522 = vpop.f32.mrb[0].mxu0
    %5523 = vdwg.mxu0
    %5524 = vmatprep.subr.mxu0 0.0
    %v5525 = vand.u32 %v79, 4294901760
    %5526 = vmatpush1.msra.mxu0 %v5525
    %5527 = vmatprep.subr.mxu0 0.0
    %5528 = vmatpush1.msra.mxu0 0.0
    %5529 = vmatprep.subr.mxu0 0.0
    %5530 = vmatpush1.msra.mxu0 0.0
    %5531 = vmatprep.subr.mxu0 0.0
    %5532 = vmatpush1.msra.mxu0 0.0
    %5533 = vmatprep.subr.mxu0 0.0
    %5534 = vmatpush1.msra.mxu0 0.0
    %5535 = vmatprep.subr.mxu0 0.0
    %5536 = vmatpush1.msra.mxu0 0.0
    %5537 = vmatprep.subr.mxu0 0.0
    %5538 = vmatpush1.msra.mxu0 0.0
    %5539 = vmatprep.subr.mxu0 0.0
    %5540 = vmatpush1.msra.mxu0 0.0
    %5541 = vmatprep.subr.mxu0 0.0
    %5542 = vmatpush1.msra.mxu0 0.0
    %5543 = vmatprep.subr.mxu0 0.0
    %5544 = vmatpush1.msra.mxu0 0.0
    %5545 = vmatprep.subr.mxu0 0.0
    %5546 = vmatpush1.msra.mxu0 0.0
    %5547 = vmatprep.subr.mxu0 0.0
    %5548 = vmatpush1.msra.mxu0 0.0
    %5549 = vmatprep.subr.mxu0 0.0
    %5550 = vmatpush1.msra.mxu0 0.0
    %5551 = vmatprep.subr.mxu0 0.0
    %5552 = vmatpush1.msra.mxu0 0.0
    %5553 = vmatprep.subr.mxu0 0.0
    %5554 = vmatpush1.msra.mxu0 0.0
    %5555 = vmatprep.subr.mxu0 0.0
    %5556 = vmatpush1.msra.mxu0 0.0
    %5557 = vmatprep.subr.mxu0 0.0
    %5558 = vmatpush1.msra.mxu0 0.0
    %5559 = vmatprep.subr.mxu0 0.0
    %5560 = vmatpush1.msra.mxu0 0.0
    %5561 = vmatprep.subr.mxu0 0.0
    %5562 = vmatpush1.msra.mxu0 0.0
    %5563 = vmatprep.subr.mxu0 0.0
    %5564 = vmatpush1.msra.mxu0 0.0
    %5565 = vmatprep.subr.mxu0 0.0
    %5566 = vmatpush1.msra.mxu0 0.0
    %5567 = vmatprep.subr.mxu0 0.0
    %5568 = vmatpush1.msra.mxu0 0.0
    %5569 = vmatprep.subr.mxu0 0.0
    %5570 = vmatpush1.msra.mxu0 0.0
    %5571 = vmatprep.subr.mxu0 0.0
    %5572 = vmatpush1.msra.mxu0 0.0
    %5573 = vmatprep.subr.mxu0 0.0
    %5574 = vmatpush1.msra.mxu0 0.0
    %5575 = vmatprep.subr.mxu0 0.0
    %5576 = vmatpush1.msra.mxu0 0.0
    %5577 = vmatprep.subr.mxu0 0.0
    %5578 = vmatpush1.msra.mxu0 0.0
    %5579 = vmatprep.subr.mxu0 0.0
    %5580 = vmatpush1.msra.mxu0 0.0
    %5581 = vmatprep.subr.mxu0 0.0
    %5582 = vmatpush1.msra.mxu0 0.0
    %5583 = vmatprep.subr.mxu0 0.0
    %5584 = vmatpush1.msra.mxu0 0.0
    %5585 = vmatprep.subr.mxu0 0.0
    %5586 = vmatpush1.msra.mxu0 0.0
    %5587 = vmatprep.subr.mxu0 0.0
    %5588 = vmatpush1.msra.mxu0 0.0
    %5589 = vmatprep.mubr.f32.mxu0 0.0
    %v5590 = vand.u32 %v5111, 4294901760
    %5591 = vmatmul.mubr.f32.gmra.mrb[0].mxu0 %v5590
    %v5592 = vpop.f32.mrb[0].mxu0
    %v5593 = vadd.f32 %v5515, %v5592
    %v5594 = vpop.f32.mrb[0].mxu0
    %5595 = vmatprep.mubr.f32.mxu0 0.0
    %v5596 = vand.u32 %v5111, 4294901760
    %5597 = vmatmul.mubr.f32.gmra.mrb[0].mxu0 %v5596
    %v5598 = vpop.f32.mrb[0].mxu0
    %v5599 = vadd.f32 %v5521, %v5598
    %v5600 = vpop.f32.mrb[0].mxu0
    %5601 = vdwg.mxu0
    %v5602 = vrsqrt.pop %v5593
    %v5603 = vrsqrt.pop %v5599
    %v5604 = vmul.f32 %v4413, %v5602
    %v5605 = vmul.f32 %v4414, %v5603
    %v5606 = vunpack.c.l.bf16 %v111
    %v5607 = vunpack.c.l.bf16 %v112
    %v5608 = vadd.f32 %v5604, %v5606
    %v5609 = vadd.f32 %v5605, %v5607
    %vm5610 = vcmp.ge.f32.partialorder %v5608, 0.0
    %vm5611 = vcmp.ge.f32.partialorder %v5609, 0.0
    %v5612 = vmul.f32 %v2877, %v5608
    %v5613 = vmul.f32 %v2877, %v5609
    %v5614 = vsel %vm5610, %v5608, %v5612
    %v5615 = vsel %vm5611, %v5609, %v5613
    %5616 = vst [vmem:[#allocation8] sm:$0xff] %v5614
    %5617 = vst [vmem:[#allocation8 + $0x8] sm:$0xff] %v5615
    // Predicated region
    $region42: #{tpu_custom_call.1} parent=1 // pred_check
      _
    $region43: #{tpu_custom_call.1} parent=1 // pred_check_branch
      %5619 = sbr.rel (0) target = $region45
    $region44: #{tpu_custom_call.1} parent=1 // pred_region
      %s5621 = ssub.s32 256, 256
      %5622 = vsyncadd [#allocation5], %s5621
      %s5623 = sshll.u32 [#allocation8], 4
      %s5624 = int_to_ptr.vmem [resolvable:$true] %s5623
      %5629 = dma.vmem_to_hbm [thread:$0]  %s5624, 256, %s8, [#allocation5], 128, 128, 8
    $region45: #{tpu_custom_call.1} parent=1 // pred_fallthru
      _
    // Predicated region
    $region46: #{tpu_custom_call.1} parent=1 // pred_check
      _
    $region47: #{tpu_custom_call.1} parent=1 // pred_check_branch
      %5631 = sbr.rel (0) target = $region49
    $region48: #{tpu_custom_call.1} parent=1 // pred_region
      %5632 = dma.done [#allocation5], 256
    $region49: #{tpu_custom_call.1} parent=1 // pred_fallthru
      _
    %5633 = vsyncpa [#allocation4], 1
    %5634 = vsyncpa [#allocation7], 1
    %5635 = vsyncpa [#allocation5], 1

</llo_original>
